<compile_context>
chip_gen: v6e
topology: v6e:2x2x1
jax: 0.10.0
libtpu: 0.0.40
codegen_flags: <defaults>
</compile_context>

<pallas_src>
import functools

import jax
import jax.numpy as jnp
from jax.experimental import pallas as pl
from jax.experimental.pallas import tpu as pltpu

# ----------------------- tiny synthetic BERT config -----------------------
VOCAB = 100
MAX_POS = 64
TYPE_VOCAB = 2
HIDDEN = 32
N_HEADS = 4
HEAD_DIM = HIDDEN // N_HEADS
INTER = 64
N_LAYERS = 2
LN_EPS = 1e-12  # matches torch constant (effectively a no-op in f32)

# Packed small-vector tensor layout (biases + LN gammas/betas), one row per vector,
# padded to the widest row (fused QKV bias = 3*HIDDEN).
VEC_W = 3 * HIDDEN
VEC_EMB_G, VEC_EMB_B = 0, 1
VEC_LAYER_BASE = 2
VEC_PER_LAYER = 8
(VB_QKV, VB_BO, VB_LN1G, VB_LN1B, VB_B1, VB_B2, VB_LN2G, VB_LN2B) = range(8)
VEC_ROWS = VEC_LAYER_BASE + N_LAYERS * VEC_PER_LAYER


# ----------------------- in-kernel helpers (pure value math) -----------------------
def _ln(x, g, b):
    mean = jnp.mean(x, axis=-1, keepdims=True)
    xc = x - mean
    var = jnp.mean(xc * xc, axis=-1, keepdims=True)
    return xc * jax.lax.rsqrt(var + LN_EPS) * g + b


def _gelu_tanh(y):
    # TODO(synk): HF BERT default is exact erf-GELU; tanh approximation (gelu_new)
    # is used since it lowers to a single EUP tanh on all TPU generations.
    c = 0.7978845608028654  # sqrt(2/pi)
    return 0.5 * y * (1.0 + jnp.tanh(c * (y + 0.044715 * y * y * y)))


# ----------------------- the single fused kernel (one program, no grid) -----------------------
def _bert_fused_kernel(ids_ref, wemb_ref, pos_type_ref,
                       wqkv_ref, wo_ref, w1_ref, w2_ref, vec_ref,
                       out_ref, ctx_scratch, *, batch, seq):
    BS = batch * seq
    vecs = vec_ref[...]                                           # (VEC_ROWS, 3H)

    def vrow(r, width):
        return vecs[r:r + 1, 0:width]                             # (1, width)

    # ---- fused embedding gather: one-hot @ word_emb on the MXU + pos/type add ----
    ids = ids_ref[...]                                            # (BS, 1) int32
    vocab_iota = jax.lax.broadcasted_iota(jnp.int32, (BS, VOCAB), 1)
    one_hot = (ids == vocab_iota).astype(jnp.float32)             # (BS, VOCAB)
    tok = jnp.dot(one_hot, wemb_ref[...], preferred_element_type=jnp.float32)
    pos_type = jnp.concatenate([pos_type_ref[...]] * batch, axis=0)   # (BS, H)
    h = _ln(tok + pos_type, vrow(VEC_EMB_G, HIDDEN), vrow(VEC_EMB_B, HIDDEN))

    # ---- block-diagonal additive attention bias: -inf across batch boundaries ----
    ri = jax.lax.broadcasted_iota(jnp.int32, (BS, BS), 0)
    ci = jax.lax.broadcasted_iota(jnp.int32, (BS, BS), 1)
    same_batch = None
    for b in range(batch):                                        # static unroll (tiny B)
        rb = (ri >= b * seq) & (ri < (b + 1) * seq)
        cb = (ci >= b * seq) & (ci < (b + 1) * seq)
        blk = rb & cb
        same_batch = blk if same_batch is None else (same_batch | blk)
    neg_bias = jnp.where(same_batch, 0.0, -1e30)                  # (BS, BS)

    for l in range(N_LAYERS):                                     # static unroll
        base = VEC_LAYER_BASE + l * VEC_PER_LAYER

        # ---- self attention: fused QKV (1/sqrt(dh) pre-folded into Q columns) ----
        qkv = (jnp.dot(h, wqkv_ref[l], preferred_element_type=jnp.float32)
               + vrow(base + VB_QKV, 3 * HIDDEN))                 # (BS, 3H)

        for hh in range(N_HEADS):                                 # static unroll
            lo = hh * HEAD_DIM
            qh = qkv[:, lo:lo + HEAD_DIM]                         # (BS, dh) lane slices
            kh = qkv[:, HIDDEN + lo:HIDDEN + lo + HEAD_DIM]
            vh = qkv[:, 2 * HIDDEN + lo:2 * HIDDEN + lo + HEAD_DIM]
            s = jax.lax.dot_general(qh, kh, (((1,), (1,)), ((), ())),
                                    preferred_element_type=jnp.float32)   # (BS, BS)
            s = s + neg_bias                                      # mask cross-batch keys
            s = s - jnp.max(s, axis=-1, keepdims=True)
            p = jnp.exp(s)
            p = p * pl.reciprocal(jnp.sum(p, axis=-1, keepdims=True), approx=True)
            # static lane-slice store -> no concat / relayout; one Wo matmul below
            ctx_scratch[:, lo:lo + HEAD_DIM] = jnp.dot(
                p, vh, preferred_element_type=jnp.float32)        # (BS, dh)

        attn = (jnp.dot(ctx_scratch[...], wo_ref[l], preferred_element_type=jnp.float32)
                + vrow(base + VB_BO, HIDDEN))
        h = _ln(attn + h, vrow(base + VB_LN1G, HIDDEN), vrow(base + VB_LN1B, HIDDEN))

        # ---- feed forward ----
        ff = jnp.dot(h, w1_ref[l], preferred_element_type=jnp.float32) + vrow(base + VB_B1, INTER)
        ff = _gelu_tanh(ff)
        ff = jnp.dot(ff, w2_ref[l], preferred_element_type=jnp.float32) + vrow(base + VB_B2, HIDDEN)
        h = _ln(ff + h, vrow(base + VB_LN2G, HIDDEN), vrow(base + VB_LN2B, HIDDEN))

    # torch: last_hidden_state.sum(axis=1)  -> one consolidated (B, H) store
    pooled = jnp.concatenate(
        [jnp.sum(h[b * seq:(b + 1) * seq, :], axis=0, keepdims=True) for b in range(batch)],
        axis=0)                                                   # (B, H)
    out_ref[...] = pooled


# ----------------------- deterministic parameter init -----------------------
def init_params(key):
    def nrm(k, shape, scale=0.02):
        return scale * jax.random.normal(k, shape, jnp.float32)

    keys = iter(jax.random.split(key, 8 + N_LAYERS * 16))
    p = {
        "word_emb": nrm(next(keys), (VOCAB, HIDDEN)),
        "pos_emb": nrm(next(keys), (MAX_POS, HIDDEN)),
        "type_emb": nrm(next(keys), (TYPE_VOCAB, HIDDEN)),
        "emb_ln_g": jnp.ones((HIDDEN,), jnp.float32),
        "emb_ln_b": jnp.zeros((HIDDEN,), jnp.float32),
        "layers": [],
    }
    for _ in range(N_LAYERS):
        layer = {
            "wq": nrm(next(keys), (HIDDEN, HIDDEN)), "bq": jnp.zeros((HIDDEN,), jnp.float32),
            "wk": nrm(next(keys), (HIDDEN, HIDDEN)), "bk": jnp.zeros((HIDDEN,), jnp.float32),
            "wv": nrm(next(keys), (HIDDEN, HIDDEN)), "bv": jnp.zeros((HIDDEN,), jnp.float32),
            "wo": nrm(next(keys), (HIDDEN, HIDDEN)), "bo": jnp.zeros((HIDDEN,), jnp.float32),
            "ln1_g": jnp.ones((HIDDEN,), jnp.float32), "ln1_b": jnp.zeros((HIDDEN,), jnp.float32),
            "w1": nrm(next(keys), (HIDDEN, INTER)), "b1": jnp.zeros((INTER,), jnp.float32),
            "w2": nrm(next(keys), (INTER, HIDDEN)), "b2": jnp.zeros((HIDDEN,), jnp.float32),
            "ln2_g": jnp.ones((HIDDEN,), jnp.float32), "ln2_b": jnp.zeros((HIDDEN,), jnp.float32),
        }
        p["layers"].append(layer)
    return p


def fuse_params(params):
    """One-time re-packing:
       - QKV concat with 1/sqrt(dh) folded into the Q columns/bias,
       - per-layer big weights stacked into (L, ...) tensors,
       - ALL tiny bias / gamma / beta vectors packed into one (VEC_ROWS, 3H) tensor
         (single DMA, no per-array (8,128) VMEM tile padding)."""
    scale = 1.0 / (HEAD_DIM ** 0.5)
    L = params["layers"]

    def row(v):
        v = jnp.asarray(v, jnp.float32).reshape(-1)
        return jnp.pad(v, (0, VEC_W - v.shape[0])).reshape(1, VEC_W)

    rows = [row(params["emb_ln_g"]), row(params["emb_ln_b"])]
    for l in L:
        rows += [row(jnp.concatenate([l["bq"] * scale, l["bk"], l["bv"]])),
                 row(l["bo"]), row(l["ln1_g"]), row(l["ln1_b"]),
                 row(l["b1"]), row(l["b2"]), row(l["ln2_g"]), row(l["ln2_b"])]
    vec = jnp.concatenate(rows, axis=0)                           # (VEC_ROWS, 3H)

    return {
        "word_emb": params["word_emb"],
        "pos_emb": params["pos_emb"],
        "type_emb": params["type_emb"],
        "wqkv": jnp.stack([jnp.concatenate([l["wq"] * scale, l["wk"], l["wv"]], axis=1) for l in L]),
        "wo": jnp.stack([l["wo"] for l in L]),
        "w1": jnp.stack([l["w1"] for l in L]),
        "w2": jnp.stack([l["w2"] for l in L]),
        "vec": vec,
    }


# ----------------------- forward pass -----------------------
@jax.jit
def bert_model_forward(fused, input_ids):
    B, S = input_ids.shape
    BS = B * S

    ids2d = input_ids.reshape(BS, 1).astype(jnp.int32)            # tiny; gathered in-kernel
    # token_type_ids == 0 in the reference model -> fold pos + type into one (S, H) table
    pos_type = (fused["pos_emb"][:S] + fused["type_emb"][0][None, :]).astype(jnp.float32)

    args = (ids2d, fused["word_emb"], pos_type,
            fused["wqkv"], fused["wo"], fused["w1"], fused["w2"], fused["vec"])

    per_layer_flops = (2 * BS * HIDDEN * 3 * HIDDEN               # fused QKV
                       + 4 * N_HEADS * BS * BS * HEAD_DIM         # scores + ctx
                       + 2 * BS * HIDDEN * HIDDEN                 # Wo
                       + 4 * BS * HIDDEN * INTER)                 # FFN
    flops = 2 * BS * VOCAB * HIDDEN + N_LAYERS * per_layer_flops
    transcendentals = N_LAYERS * (N_HEADS * BS * BS + BS * INTER)
    bytes_accessed = int(sum(4 * a.size for a in args) + 4 * B * HIDDEN)

    vmem = pl.BlockSpec(memory_space=pltpu.MemorySpace.VMEM)      # whole array VMEM-resident
    pooled = pl.pallas_call(
        functools.partial(_bert_fused_kernel, batch=B, seq=S),
        out_shape=jax.ShapeDtypeStruct((B, HIDDEN), jnp.float32),
        in_specs=[vmem] * len(args),
        out_specs=vmem,
        scratch_shapes=[pltpu.VMEM((BS, HIDDEN), jnp.float32)],   # per-layer ctx buffer
        cost_estimate=pl.CostEstimate(flops=flops, transcendentals=transcendentals,
                                      bytes_accessed=bytes_accessed),
    )(*args)
    return pooled


# ----------------------- pure-JAX reference (correctness check, unfused params) -----------------------
def _reference_forward(params, input_ids):
    B, S = input_ids.shape
    scale = 1.0 / (HEAD_DIM ** 0.5)

    def ln(x, g, b):
        m = jnp.mean(x, -1, keepdims=True)
        xc = x - m
        v = jnp.mean(xc * xc, -1, keepdims=True)
        return xc * jax.lax.rsqrt(v + LN_EPS) * g + b

    tok = params["word_emb"][input_ids]                           # (B, S, H)
    h = tok + params["pos_emb"][:S][None] + params["type_emb"][0][None, None]
    h = ln(h, params["emb_ln_g"], params["emb_ln_b"])

    for layer in params["layers"]:
        q = jnp.einsum("bsh,hk->bsk", h, layer["wq"]) + layer["bq"]
        k = jnp.einsum("bsh,hk->bsk", h, layer["wk"]) + layer["bk"]
        v = jnp.einsum("bsh,hk->bsk", h, layer["wv"]) + layer["bv"]

        def heads(t):
            return t.reshape(B, S, N_HEADS, HEAD_DIM).transpose(0, 2, 1, 3)

        s = jnp.einsum("bnqd,bnkd->bnqk", heads(q), heads(k)) * scale
        p = jax.nn.softmax(s, axis=-1)
        ctx = jnp.einsum("bnqk,bnkd->bnqd", p, heads(v)).transpose(0, 2, 1, 3).reshape(B, S, HIDDEN)
        attn = jnp.einsum("bsh,hk->bsk", ctx, layer["wo"]) + layer["bo"]
        h = ln(attn + h, layer["ln1_g"], layer["ln1_b"])
        ff = jnp.einsum("bsh,hi->bsi", h, layer["w1"]) + layer["b1"]
        ff = _gelu_tanh(ff)
        ff = jnp.einsum("bsi,ih->bsh", ff, layer["w2"]) + layer["b2"]
        h = ln(ff + h, layer["ln2_g"], layer["ln2_b"])
    return h.sum(axis=1)


if __name__ == "__main__":
    key = jax.random.PRNGKey(0)
    pkey, dkey = jax.random.split(key)

    params = init_params(pkey)
    fused = fuse_params(params)

    batch, seq = 2, 8
    input_ids = jax.random.randint(dkey, (batch, seq), 0, VOCAB, dtype=jnp.int32)

    out = jax.block_until_ready(bert_model_forward(fused, input_ids))

    assert out.shape == (batch, HIDDEN), out.shape
    assert out.dtype == jnp.float32

    ref = _reference_forward(params, input_ids)
    assert jnp.allclose(out, ref, atol=2e-2, rtol=2e-2), float(jnp.max(jnp.abs(out - ref)))

    print("KERNEL_OK")
</pallas_src>

<mosaic_0001>
module attributes {stable_mosaic.version = 11 : i64} {
  func.func @_bert_fused_kernel(%arg0: memref<16x1xi32, #tpu.memory_space<vmem>>, %arg1: memref<100x32xf32, #tpu.memory_space<vmem>>, %arg2: memref<8x32xf32, #tpu.memory_space<vmem>>, %arg3: memref<2x32x96xf32, #tpu.memory_space<vmem>>, %arg4: memref<2x32x32xf32, #tpu.memory_space<vmem>>, %arg5: memref<2x32x64xf32, #tpu.memory_space<vmem>>, %arg6: memref<2x64x32xf32, #tpu.memory_space<vmem>>, %arg7: memref<18x96xf32, #tpu.memory_space<vmem>>, %arg8: memref<2x32xf32, #tpu.memory_space<vmem>>, %arg9: memref<16x32xf32, #tpu.memory_space<vmem>>) attributes {dimension_semantics = [], scalar_prefetch = 0 : i64, scratch_operands = 1 : i64, tpu.core_type = #tpu.core_type<tc>} {
    %c0 = arith.constant 0 : index
    %c0_0 = arith.constant 0 : index
    %0 = vector.load %arg7[%c0, %c0_0] : memref<18x96xf32, #tpu.memory_space<vmem>>, vector<18x96xf32>
    %c0_1 = arith.constant 0 : index
    %c0_2 = arith.constant 0 : index
    %1 = vector.load %arg0[%c0_1, %c0_2] : memref<16x1xi32, #tpu.memory_space<vmem>>, vector<16x1xi32>
    %2 = tpu.iota {dimensions = array<i32: 1>} : vector<16x100xi32>
    %3 = vector.broadcast %1 : vector<16x1xi32> to vector<16x100xi32>
    %4 = arith.cmpi eq, %3, %2 : vector<16x100xi32>
    %5 = arith.extui %4 : vector<16x100xi1> to vector<16x100xi32>
    %6 = arith.sitofp %5 : vector<16x100xi32> to vector<16x100xf32>
    %c0_3 = arith.constant 0 : index
    %c0_4 = arith.constant 0 : index
    %7 = vector.load %arg1[%c0_3, %c0_4] : memref<100x32xf32, #tpu.memory_space<vmem>>, vector<100x32xf32>
    %cst = arith.constant dense<0.000000e+00> : vector<16x32xf32>
    %8 = tpu.matmul %6, %7, %cst {dimension_numbers = #tpu.dot_dimension_numbers<[1], [0], [0], [1], [0, 0, 1, 1], [], []>} : vector<16x100xf32>, vector<100x32xf32>, vector<16x32xf32> -> vector<16x32xf32>
    %c0_5 = arith.constant 0 : index
    %c0_6 = arith.constant 0 : index
    %9 = vector.load %arg2[%c0_5, %c0_6] : memref<8x32xf32, #tpu.memory_space<vmem>>, vector<8x32xf32>
    %10 = tpu.concatenate %9, %9 in 0 : vector<8x32xf32>, vector<8x32xf32> -> vector<16x32xf32>
    %11 = arith.addf %8, %10 : vector<16x32xf32>
    %12 = vector.extract_strided_slice %0 {offsets = [0, 0], sizes = [1, 32], strides = [1, 1]} : vector<18x96xf32> to vector<1x32xf32>
    %13 = vector.extract_strided_slice %0 {offsets = [1, 0], sizes = [1, 32], strides = [1, 1]} : vector<18x96xf32> to vector<1x32xf32>
    %cst_7 = arith.constant dense<0.000000e+00> : vector<16xf32>
    %14 = vector.multi_reduction <add>, %11, %cst_7 [1] : vector<16x32xf32> to vector<16xf32>
    %15 = vector.shape_cast %14 : vector<16xf32> to vector<16x1xf32>
    %cst_8 = arith.constant 3.200000e+01 : f32
    %16 = vector.broadcast %cst_8 : f32 to vector<16x1xf32>
    %17 = arith.divf %15, %16 : vector<16x1xf32>
    %18 = vector.broadcast %17 : vector<16x1xf32> to vector<16x32xf32>
    %19 = arith.subf %11, %18 : vector<16x32xf32>
    %20 = arith.mulf %19, %19 : vector<16x32xf32>
    %cst_9 = arith.constant dense<0.000000e+00> : vector<16xf32>
    %21 = vector.multi_reduction <add>, %20, %cst_9 [1] : vector<16x32xf32> to vector<16xf32>
    %22 = vector.shape_cast %21 : vector<16xf32> to vector<16x1xf32>
    %cst_10 = arith.constant 3.200000e+01 : f32
    %23 = vector.broadcast %cst_10 : f32 to vector<16x1xf32>
    %24 = arith.divf %22, %23 : vector<16x1xf32>
    %cst_11 = arith.constant 9.99999996E-13 : f32
    %25 = vector.broadcast %cst_11 : f32 to vector<16x1xf32>
    %26 = arith.addf %24, %25 : vector<16x1xf32>
    %27 = math.rsqrt %26 : vector<16x1xf32>
    %28 = vector.broadcast %27 : vector<16x1xf32> to vector<16x32xf32>
    %29 = arith.mulf %19, %28 : vector<16x32xf32>
    %30 = vector.broadcast %12 : vector<1x32xf32> to vector<16x32xf32>
    %31 = arith.mulf %29, %30 : vector<16x32xf32>
    %32 = vector.broadcast %13 : vector<1x32xf32> to vector<16x32xf32>
    %33 = arith.addf %31, %32 : vector<16x32xf32>
    %34 = tpu.iota {dimensions = array<i32: 0>} : vector<16x16xi32>
    %35 = tpu.iota {dimensions = array<i32: 1>} : vector<16x16xi32>
    %c0_i32 = arith.constant 0 : i32
    %36 = vector.broadcast %c0_i32 : i32 to vector<16x16xi32>
    %37 = arith.cmpi sge, %34, %36 : vector<16x16xi32>
    %c8_i32 = arith.constant 8 : i32
    %38 = vector.broadcast %c8_i32 : i32 to vector<16x16xi32>
    %39 = arith.cmpi slt, %34, %38 : vector<16x16xi32>
    %40 = arith.andi %37, %39 : vector<16x16xi1>
    %c0_i32_12 = arith.constant 0 : i32
    %41 = vector.broadcast %c0_i32_12 : i32 to vector<16x16xi32>
    %42 = arith.cmpi sge, %35, %41 : vector<16x16xi32>
    %c8_i32_13 = arith.constant 8 : i32
    %43 = vector.broadcast %c8_i32_13 : i32 to vector<16x16xi32>
    %44 = arith.cmpi slt, %35, %43 : vector<16x16xi32>
    %45 = arith.andi %42, %44 : vector<16x16xi1>
    %46 = arith.andi %40, %45 : vector<16x16xi1>
    %c8_i32_14 = arith.constant 8 : i32
    %47 = vector.broadcast %c8_i32_14 : i32 to vector<16x16xi32>
    %48 = arith.cmpi sge, %34, %47 : vector<16x16xi32>
    %c16_i32 = arith.constant 16 : i32
    %49 = vector.broadcast %c16_i32 : i32 to vector<16x16xi32>
    %50 = arith.cmpi slt, %34, %49 : vector<16x16xi32>
    %51 = arith.andi %48, %50 : vector<16x16xi1>
    %c8_i32_15 = arith.constant 8 : i32
    %52 = vector.broadcast %c8_i32_15 : i32 to vector<16x16xi32>
    %53 = arith.cmpi sge, %35, %52 : vector<16x16xi32>
    %c16_i32_16 = arith.constant 16 : i32
    %54 = vector.broadcast %c16_i32_16 : i32 to vector<16x16xi32>
    %55 = arith.cmpi slt, %35, %54 : vector<16x16xi32>
    %56 = arith.andi %53, %55 : vector<16x16xi1>
    %57 = arith.andi %51, %56 : vector<16x16xi1>
    %58 = arith.ori %46, %57 : vector<16x16xi1>
    %cst_17 = arith.constant 0.000000e+00 : f32
    %cst_18 = arith.constant -1.000000e+30 : f32
    %59 = vector.broadcast %cst_17 : f32 to vector<16x16xf32>
    %60 = vector.broadcast %cst_18 : f32 to vector<16x16xf32>
    %61 = arith.select %58, %59, %60 : vector<16x16xi1>, vector<16x16xf32>
    %c0_19 = arith.constant 0 : index
    %c0_20 = arith.constant 0 : index
    %c0_21 = arith.constant 0 : index
    %62 = vector.load %arg3[%c0_19, %c0_20, %c0_21] : memref<2x32x96xf32, #tpu.memory_space<vmem>>, vector<1x32x96xf32>
    %63 = vector.shape_cast %62 : vector<1x32x96xf32> to vector<32x96xf32>
    %cst_22 = arith.constant dense<0.000000e+00> : vector<16x96xf32>
    %64 = tpu.matmul %33, %63, %cst_22 {dimension_numbers = #tpu.dot_dimension_numbers<[1], [0], [0], [1], [0, 0, 1, 1], [], []>} : vector<16x32xf32>, vector<32x96xf32>, vector<16x96xf32> -> vector<16x96xf32>
    %65 = vector.extract_strided_slice %0 {offsets = [2, 0], sizes = [1, 96], strides = [1, 1]} : vector<18x96xf32> to vector<1x96xf32>
    %66 = vector.broadcast %65 : vector<1x96xf32> to vector<16x96xf32>
    %67 = arith.addf %64, %66 : vector<16x96xf32>
    %68 = vector.extract_strided_slice %67 {offsets = [0, 0], sizes = [16, 8], strides = [1, 1]} : vector<16x96xf32> to vector<16x8xf32>
    %69 = vector.extract_strided_slice %67 {offsets = [0, 32], sizes = [16, 8], strides = [1, 1]} : vector<16x96xf32> to vector<16x8xf32>
    %70 = vector.extract_strided_slice %67 {offsets = [0, 64], sizes = [16, 8], strides = [1, 1]} : vector<16x96xf32> to vector<16x8xf32>
    %cst_23 = arith.constant dense<0.000000e+00> : vector<16x16xf32>
    %71 = tpu.matmul %68, %69, %cst_23 {dimension_numbers = #tpu.dot_dimension_numbers<[1], [1], [0], [0], [0, 0, 1, 0], [], []>} : vector<16x8xf32>, vector<16x8xf32>, vector<16x16xf32> -> vector<16x16xf32>
    %72 = arith.addf %71, %61 : vector<16x16xf32>
    %cst_24 = arith.constant dense<0xFF800000> : vector<16xf32>
    %73 = vector.multi_reduction <maximumf>, %72, %cst_24 [1] : vector<16x16xf32> to vector<16xf32>
    %74 = vector.shape_cast %73 : vector<16xf32> to vector<16x1xf32>
    %75 = vector.broadcast %74 : vector<16x1xf32> to vector<16x16xf32>
    %76 = arith.subf %72, %75 : vector<16x16xf32>
    %77 = math.exp %76 : vector<16x16xf32>
    %cst_25 = arith.constant dense<0.000000e+00> : vector<16xf32>
    %78 = vector.multi_reduction <add>, %77, %cst_25 [1] : vector<16x16xf32> to vector<16xf32>
    %79 = vector.shape_cast %78 : vector<16xf32> to vector<16x1xf32>
    %80 = tpu.reciprocal %79 {approx = true} : vector<16x1xf32> -> vector<16x1xf32>
    %81 = vector.broadcast %80 : vector<16x1xf32> to vector<16x16xf32>
    %82 = arith.mulf %77, %81 : vector<16x16xf32>
    %cst_26 = arith.constant dense<0.000000e+00> : vector<16x8xf32>
    %83 = tpu.matmul %82, %70, %cst_26 {dimension_numbers = #tpu.dot_dimension_numbers<[1], [0], [0], [1], [0, 0, 1, 1], [], []>} : vector<16x16xf32>, vector<16x8xf32>, vector<16x8xf32> -> vector<16x8xf32>
    %c0_27 = arith.constant 0 : index
    %c0_28 = arith.constant 0 : index
    %84 = vector.load %arg9[%c0_27, %c0_28] : memref<16x32xf32, #tpu.memory_space<vmem>>, vector<16x8xf32>
    tpu.vector_store %arg9[%c0_27, %c0_28], %83 {strides = array<i32>} : memref<16x32xf32, #tpu.memory_space<vmem>>, vector<16x8xf32>,
    %85 = vector.extract_strided_slice %67 {offsets = [0, 8], sizes = [16, 8], strides = [1, 1]} : vector<16x96xf32> to vector<16x8xf32>
    %86 = vector.extract_strided_slice %67 {offsets = [0, 40], sizes = [16, 8], strides = [1, 1]} : vector<16x96xf32> to vector<16x8xf32>
    %87 = vector.extract_strided_slice %67 {offsets = [0, 72], sizes = [16, 8], strides = [1, 1]} : vector<16x96xf32> to vector<16x8xf32>
    %cst_29 = arith.constant dense<0.000000e+00> : vector<16x16xf32>
    %88 = tpu.matmul %85, %86, %cst_29 {dimension_numbers = #tpu.dot_dimension_numbers<[1], [1], [0], [0], [0, 0, 1, 0], [], []>} : vector<16x8xf32>, vector<16x8xf32>, vector<16x16xf32> -> vector<16x16xf32>
    %89 = arith.addf %88, %61 : vector<16x16xf32>
    %cst_30 = arith.constant dense<0xFF800000> : vector<16xf32>
    %90 = vector.multi_reduction <maximumf>, %89, %cst_30 [1] : vector<16x16xf32> to vector<16xf32>
    %91 = vector.shape_cast %90 : vector<16xf32> to vector<16x1xf32>
    %92 = vector.broadcast %91 : vector<16x1xf32> to vector<16x16xf32>
    %93 = arith.subf %89, %92 : vector<16x16xf32>
    %94 = math.exp %93 : vector<16x16xf32>
    %cst_31 = arith.constant dense<0.000000e+00> : vector<16xf32>
    %95 = vector.multi_reduction <add>, %94, %cst_31 [1] : vector<16x16xf32> to vector<16xf32>
    %96 = vector.shape_cast %95 : vector<16xf32> to vector<16x1xf32>
    %97 = tpu.reciprocal %96 {approx = true} : vector<16x1xf32> -> vector<16x1xf32>
    %98 = vector.broadcast %97 : vector<16x1xf32> to vector<16x16xf32>
    %99 = arith.mulf %94, %98 : vector<16x16xf32>
    %cst_32 = arith.constant dense<0.000000e+00> : vector<16x8xf32>
    %100 = tpu.matmul %99, %87, %cst_32 {dimension_numbers = #tpu.dot_dimension_numbers<[1], [0], [0], [1], [0, 0, 1, 1], [], []>} : vector<16x16xf32>, vector<16x8xf32>, vector<16x8xf32> -> vector<16x8xf32>
    %c0_33 = arith.constant 0 : index
    %c8 = arith.constant 8 : index
    %101 = vector.load %arg9[%c0_33, %c8] : memref<16x32xf32, #tpu.memory_space<vmem>>, vector<16x8xf32>
    tpu.vector_store %arg9[%c0_33, %c8], %100 {strides = array<i32>} : memref<16x32xf32, #tpu.memory_space<vmem>>, vector<16x8xf32>,
    %102 = vector.extract_strided_slice %67 {offsets = [0, 16], sizes = [16, 8], strides = [1, 1]} : vector<16x96xf32> to vector<16x8xf32>
    %103 = vector.extract_strided_slice %67 {offsets = [0, 48], sizes = [16, 8], strides = [1, 1]} : vector<16x96xf32> to vector<16x8xf32>
    %104 = vector.extract_strided_slice %67 {offsets = [0, 80], sizes = [16, 8], strides = [1, 1]} : vector<16x96xf32> to vector<16x8xf32>
    %cst_34 = arith.constant dense<0.000000e+00> : vector<16x16xf32>
    %105 = tpu.matmul %102, %103, %cst_34 {dimension_numbers = #tpu.dot_dimension_numbers<[1], [1], [0], [0], [0, 0, 1, 0], [], []>} : vector<16x8xf32>, vector<16x8xf32>, vector<16x16xf32> -> vector<16x16xf32>
    %106 = arith.addf %105, %61 : vector<16x16xf32>
    %cst_35 = arith.constant dense<0xFF800000> : vector<16xf32>
    %107 = vector.multi_reduction <maximumf>, %106, %cst_35 [1] : vector<16x16xf32> to vector<16xf32>
    %108 = vector.shape_cast %107 : vector<16xf32> to vector<16x1xf32>
    %109 = vector.broadcast %108 : vector<16x1xf32> to vector<16x16xf32>
    %110 = arith.subf %106, %109 : vector<16x16xf32>
    %111 = math.exp %110 : vector<16x16xf32>
    %cst_36 = arith.constant dense<0.000000e+00> : vector<16xf32>
    %112 = vector.multi_reduction <add>, %111, %cst_36 [1] : vector<16x16xf32> to vector<16xf32>
    %113 = vector.shape_cast %112 : vector<16xf32> to vector<16x1xf32>
    %114 = tpu.reciprocal %113 {approx = true} : vector<16x1xf32> -> vector<16x1xf32>
    %115 = vector.broadcast %114 : vector<16x1xf32> to vector<16x16xf32>
    %116 = arith.mulf %111, %115 : vector<16x16xf32>
    %cst_37 = arith.constant dense<0.000000e+00> : vector<16x8xf32>
    %117 = tpu.matmul %116, %104, %cst_37 {dimension_numbers = #tpu.dot_dimension_numbers<[1], [0], [0], [1], [0, 0, 1, 1], [], []>} : vector<16x16xf32>, vector<16x8xf32>, vector<16x8xf32> -> vector<16x8xf32>
    %c0_38 = arith.constant 0 : index
    %c16 = arith.constant 16 : index
    %118 = vector.load %arg9[%c0_38, %c16] : memref<16x32xf32, #tpu.memory_space<vmem>>, vector<16x8xf32>
    tpu.vector_store %arg9[%c0_38, %c16], %117 {strides = array<i32>} : memref<16x32xf32, #tpu.memory_space<vmem>>, vector<16x8xf32>,
    %119 = vector.extract_strided_slice %67 {offsets = [0, 24], sizes = [16, 8], strides = [1, 1]} : vector<16x96xf32> to vector<16x8xf32>
    %120 = vector.extract_strided_slice %67 {offsets = [0, 56], sizes = [16, 8], strides = [1, 1]} : vector<16x96xf32> to vector<16x8xf32>
    %121 = vector.extract_strided_slice %67 {offsets = [0, 88], sizes = [16, 8], strides = [1, 1]} : vector<16x96xf32> to vector<16x8xf32>
    %cst_39 = arith.constant dense<0.000000e+00> : vector<16x16xf32>
    %122 = tpu.matmul %119, %120, %cst_39 {dimension_numbers = #tpu.dot_dimension_numbers<[1], [1], [0], [0], [0, 0, 1, 0], [], []>} : vector<16x8xf32>, vector<16x8xf32>, vector<16x16xf32> -> vector<16x16xf32>
    %123 = arith.addf %122, %61 : vector<16x16xf32>
    %cst_40 = arith.constant dense<0xFF800000> : vector<16xf32>
    %124 = vector.multi_reduction <maximumf>, %123, %cst_40 [1] : vector<16x16xf32> to vector<16xf32>
    %125 = vector.shape_cast %124 : vector<16xf32> to vector<16x1xf32>
    %126 = vector.broadcast %125 : vector<16x1xf32> to vector<16x16xf32>
    %127 = arith.subf %123, %126 : vector<16x16xf32>
    %128 = math.exp %127 : vector<16x16xf32>
    %cst_41 = arith.constant dense<0.000000e+00> : vector<16xf32>
    %129 = vector.multi_reduction <add>, %128, %cst_41 [1] : vector<16x16xf32> to vector<16xf32>
    %130 = vector.shape_cast %129 : vector<16xf32> to vector<16x1xf32>
    %131 = tpu.reciprocal %130 {approx = true} : vector<16x1xf32> -> vector<16x1xf32>
    %132 = vector.broadcast %131 : vector<16x1xf32> to vector<16x16xf32>
    %133 = arith.mulf %128, %132 : vector<16x16xf32>
    %cst_42 = arith.constant dense<0.000000e+00> : vector<16x8xf32>
    %134 = tpu.matmul %133, %121, %cst_42 {dimension_numbers = #tpu.dot_dimension_numbers<[1], [0], [0], [1], [0, 0, 1, 1], [], []>} : vector<16x16xf32>, vector<16x8xf32>, vector<16x8xf32> -> vector<16x8xf32>
    %c0_43 = arith.constant 0 : index
    %c24 = arith.constant 24 : index
    %135 = vector.load %arg9[%c0_43, %c24] : memref<16x32xf32, #tpu.memory_space<vmem>>, vector<16x8xf32>
    tpu.vector_store %arg9[%c0_43, %c24], %134 {strides = array<i32>} : memref<16x32xf32, #tpu.memory_space<vmem>>, vector<16x8xf32>,
    %c0_44 = arith.constant 0 : index
    %c0_45 = arith.constant 0 : index
    %136 = vector.load %arg9[%c0_44, %c0_45] : memref<16x32xf32, #tpu.memory_space<vmem>>, vector<16x32xf32>
    %c0_46 = arith.constant 0 : index
    %c0_47 = arith.constant 0 : index
    %c0_48 = arith.constant 0 : index
    %137 = vector.load %arg4[%c0_46, %c0_47, %c0_48] : memref<2x32x32xf32, #tpu.memory_space<vmem>>, vector<1x32x32xf32>
    %138 = vector.shape_cast %137 : vector<1x32x32xf32> to vector<32x32xf32>
    %cst_49 = arith.constant dense<0.000000e+00> : vector<16x32xf32>
    %139 = tpu.matmul %136, %138, %cst_49 {dimension_numbers = #tpu.dot_dimension_numbers<[1], [0], [0], [1], [0, 0, 1, 1], [], []>} : vector<16x32xf32>, vector<32x32xf32>, vector<16x32xf32> -> vector<16x32xf32>
    %140 = vector.extract_strided_slice %0 {offsets = [3, 0], sizes = [1, 32], strides = [1, 1]} : vector<18x96xf32> to vector<1x32xf32>
    %141 = vector.broadcast %140 : vector<1x32xf32> to vector<16x32xf32>
    %142 = arith.addf %139, %141 : vector<16x32xf32>
    %143 = arith.addf %142, %33 : vector<16x32xf32>
    %144 = vector.extract_strided_slice %0 {offsets = [4, 0], sizes = [1, 32], strides = [1, 1]} : vector<18x96xf32> to vector<1x32xf32>
    %145 = vector.extract_strided_slice %0 {offsets = [5, 0], sizes = [1, 32], strides = [1, 1]} : vector<18x96xf32> to vector<1x32xf32>
    %cst_50 = arith.constant dense<0.000000e+00> : vector<16xf32>
    %146 = vector.multi_reduction <add>, %143, %cst_50 [1] : vector<16x32xf32> to vector<16xf32>
    %147 = vector.shape_cast %146 : vector<16xf32> to vector<16x1xf32>
    %cst_51 = arith.constant 3.200000e+01 : f32
    %148 = vector.broadcast %cst_51 : f32 to vector<16x1xf32>
    %149 = arith.divf %147, %148 : vector<16x1xf32>
    %150 = vector.broadcast %149 : vector<16x1xf32> to vector<16x32xf32>
    %151 = arith.subf %143, %150 : vector<16x32xf32>
    %152 = arith.mulf %151, %151 : vector<16x32xf32>
    %cst_52 = arith.constant dense<0.000000e+00> : vector<16xf32>
    %153 = vector.multi_reduction <add>, %152, %cst_52 [1] : vector<16x32xf32> to vector<16xf32>
    %154 = vector.shape_cast %153 : vector<16xf32> to vector<16x1xf32>
    %cst_53 = arith.constant 3.200000e+01 : f32
    %155 = vector.broadcast %cst_53 : f32 to vector<16x1xf32>
    %156 = arith.divf %154, %155 : vector<16x1xf32>
    %cst_54 = arith.constant 9.99999996E-13 : f32
    %157 = vector.broadcast %cst_54 : f32 to vector<16x1xf32>
    %158 = arith.addf %156, %157 : vector<16x1xf32>
    %159 = math.rsqrt %158 : vector<16x1xf32>
    %160 = vector.broadcast %159 : vector<16x1xf32> to vector<16x32xf32>
    %161 = arith.mulf %151, %160 : vector<16x32xf32>
    %162 = vector.broadcast %144 : vector<1x32xf32> to vector<16x32xf32>
    %163 = arith.mulf %161, %162 : vector<16x32xf32>
    %164 = vector.broadcast %145 : vector<1x32xf32> to vector<16x32xf32>
    %165 = arith.addf %163, %164 : vector<16x32xf32>
    %c0_55 = arith.constant 0 : index
    %c0_56 = arith.constant 0 : index
    %c0_57 = arith.constant 0 : index
    %166 = vector.load %arg5[%c0_55, %c0_56, %c0_57] : memref<2x32x64xf32, #tpu.memory_space<vmem>>, vector<1x32x64xf32>
    %167 = vector.shape_cast %166 : vector<1x32x64xf32> to vector<32x64xf32>
    %cst_58 = arith.constant dense<0.000000e+00> : vector<16x64xf32>
    %168 = tpu.matmul %165, %167, %cst_58 {dimension_numbers = #tpu.dot_dimension_numbers<[1], [0], [0], [1], [0, 0, 1, 1], [], []>} : vector<16x32xf32>, vector<32x64xf32>, vector<16x64xf32> -> vector<16x64xf32>
    %169 = vector.extract_strided_slice %0 {offsets = [6, 0], sizes = [1, 64], strides = [1, 1]} : vector<18x96xf32> to vector<1x64xf32>
    %170 = vector.broadcast %169 : vector<1x64xf32> to vector<16x64xf32>
    %171 = arith.addf %168, %170 : vector<16x64xf32>
    %cst_59 = arith.constant 5.000000e-01 : f32
    %172 = vector.broadcast %cst_59 : f32 to vector<16x64xf32>
    %173 = arith.mulf %172, %171 : vector<16x64xf32>
    %cst_60 = arith.constant 4.471500e-02 : f32
    %174 = vector.broadcast %cst_60 : f32 to vector<16x64xf32>
    %175 = arith.mulf %174, %171 : vector<16x64xf32>
    %176 = arith.mulf %175, %171 : vector<16x64xf32>
    %177 = arith.mulf %176, %171 : vector<16x64xf32>
    %178 = arith.addf %171, %177 : vector<16x64xf32>
    %cst_61 = arith.constant 0.797884583 : f32
    %179 = vector.broadcast %cst_61 : f32 to vector<16x64xf32>
    %180 = arith.mulf %179, %178 : vector<16x64xf32>
    %181 = math.tanh %180 : vector<16x64xf32>
    %cst_62 = arith.constant 1.000000e+00 : f32
    %182 = vector.broadcast %cst_62 : f32 to vector<16x64xf32>
    %183 = arith.addf %182, %181 : vector<16x64xf32>
    %184 = arith.mulf %173, %183 : vector<16x64xf32>
    %c0_63 = arith.constant 0 : index
    %c0_64 = arith.constant 0 : index
    %c0_65 = arith.constant 0 : index
    %185 = vector.load %arg6[%c0_63, %c0_64, %c0_65] : memref<2x64x32xf32, #tpu.memory_space<vmem>>, vector<1x64x32xf32>
    %186 = vector.shape_cast %185 : vector<1x64x32xf32> to vector<64x32xf32>
    %cst_66 = arith.constant dense<0.000000e+00> : vector<16x32xf32>
    %187 = tpu.matmul %184, %186, %cst_66 {dimension_numbers = #tpu.dot_dimension_numbers<[1], [0], [0], [1], [0, 0, 1, 1], [], []>} : vector<16x64xf32>, vector<64x32xf32>, vector<16x32xf32> -> vector<16x32xf32>
    %188 = vector.extract_strided_slice %0 {offsets = [7, 0], sizes = [1, 32], strides = [1, 1]} : vector<18x96xf32> to vector<1x32xf32>
    %189 = vector.broadcast %188 : vector<1x32xf32> to vector<16x32xf32>
    %190 = arith.addf %187, %189 : vector<16x32xf32>
    %191 = arith.addf %190, %165 : vector<16x32xf32>
    %192 = vector.extract_strided_slice %0 {offsets = [8, 0], sizes = [1, 32], strides = [1, 1]} : vector<18x96xf32> to vector<1x32xf32>
    %193 = vector.extract_strided_slice %0 {offsets = [9, 0], sizes = [1, 32], strides = [1, 1]} : vector<18x96xf32> to vector<1x32xf32>
    %cst_67 = arith.constant dense<0.000000e+00> : vector<16xf32>
    %194 = vector.multi_reduction <add>, %191, %cst_67 [1] : vector<16x32xf32> to vector<16xf32>
    %195 = vector.shape_cast %194 : vector<16xf32> to vector<16x1xf32>
    %cst_68 = arith.constant 3.200000e+01 : f32
    %196 = vector.broadcast %cst_68 : f32 to vector<16x1xf32>
    %197 = arith.divf %195, %196 : vector<16x1xf32>
    %198 = vector.broadcast %197 : vector<16x1xf32> to vector<16x32xf32>
    %199 = arith.subf %191, %198 : vector<16x32xf32>
    %200 = arith.mulf %199, %199 : vector<16x32xf32>
    %cst_69 = arith.constant dense<0.000000e+00> : vector<16xf32>
    %201 = vector.multi_reduction <add>, %200, %cst_69 [1] : vector<16x32xf32> to vector<16xf32>
    %202 = vector.shape_cast %201 : vector<16xf32> to vector<16x1xf32>
    %cst_70 = arith.constant 3.200000e+01 : f32
    %203 = vector.broadcast %cst_70 : f32 to vector<16x1xf32>
    %204 = arith.divf %202, %203 : vector<16x1xf32>
    %cst_71 = arith.constant 9.99999996E-13 : f32
    %205 = vector.broadcast %cst_71 : f32 to vector<16x1xf32>
    %206 = arith.addf %204, %205 : vector<16x1xf32>
    %207 = math.rsqrt %206 : vector<16x1xf32>
    %208 = vector.broadcast %207 : vector<16x1xf32> to vector<16x32xf32>
    %209 = arith.mulf %199, %208 : vector<16x32xf32>
    %210 = vector.broadcast %192 : vector<1x32xf32> to vector<16x32xf32>
    %211 = arith.mulf %209, %210 : vector<16x32xf32>
    %212 = vector.broadcast %193 : vector<1x32xf32> to vector<16x32xf32>
    %213 = arith.addf %211, %212 : vector<16x32xf32>
    %c1 = arith.constant 1 : index
    %c0_72 = arith.constant 0 : index
    %c0_73 = arith.constant 0 : index
    %214 = vector.load %arg3[%c1, %c0_72, %c0_73] : memref<2x32x96xf32, #tpu.memory_space<vmem>>, vector<1x32x96xf32>
    %215 = vector.shape_cast %214 : vector<1x32x96xf32> to vector<32x96xf32>
    %cst_74 = arith.constant dense<0.000000e+00> : vector<16x96xf32>
    %216 = tpu.matmul %213, %215, %cst_74 {dimension_numbers = #tpu.dot_dimension_numbers<[1], [0], [0], [1], [0, 0, 1, 1], [], []>} : vector<16x32xf32>, vector<32x96xf32>, vector<16x96xf32> -> vector<16x96xf32>
    %217 = vector.extract_strided_slice %0 {offsets = [10, 0], sizes = [1, 96], strides = [1, 1]} : vector<18x96xf32> to vector<1x96xf32>
    %218 = vector.broadcast %217 : vector<1x96xf32> to vector<16x96xf32>
    %219 = arith.addf %216, %218 : vector<16x96xf32>
    %220 = vector.extract_strided_slice %219 {offsets = [0, 0], sizes = [16, 8], strides = [1, 1]} : vector<16x96xf32> to vector<16x8xf32>
    %221 = vector.extract_strided_slice %219 {offsets = [0, 32], sizes = [16, 8], strides = [1, 1]} : vector<16x96xf32> to vector<16x8xf32>
    %222 = vector.extract_strided_slice %219 {offsets = [0, 64], sizes = [16, 8], strides = [1, 1]} : vector<16x96xf32> to vector<16x8xf32>
    %cst_75 = arith.constant dense<0.000000e+00> : vector<16x16xf32>
    %223 = tpu.matmul %220, %221, %cst_75 {dimension_numbers = #tpu.dot_dimension_numbers<[1], [1], [0], [0], [0, 0, 1, 0], [], []>} : vector<16x8xf32>, vector<16x8xf32>, vector<16x16xf32> -> vector<16x16xf32>
    %224 = arith.addf %223, %61 : vector<16x16xf32>
    %cst_76 = arith.constant dense<0xFF800000> : vector<16xf32>
    %225 = vector.multi_reduction <maximumf>, %224, %cst_76 [1] : vector<16x16xf32> to vector<16xf32>
    %226 = vector.shape_cast %225 : vector<16xf32> to vector<16x1xf32>
    %227 = vector.broadcast %226 : vector<16x1xf32> to vector<16x16xf32>
    %228 = arith.subf %224, %227 : vector<16x16xf32>
    %229 = math.exp %228 : vector<16x16xf32>
    %cst_77 = arith.constant dense<0.000000e+00> : vector<16xf32>
    %230 = vector.multi_reduction <add>, %229, %cst_77 [1] : vector<16x16xf32> to vector<16xf32>
    %231 = vector.shape_cast %230 : vector<16xf32> to vector<16x1xf32>
    %232 = tpu.reciprocal %231 {approx = true} : vector<16x1xf32> -> vector<16x1xf32>
    %233 = vector.broadcast %232 : vector<16x1xf32> to vector<16x16xf32>
    %234 = arith.mulf %229, %233 : vector<16x16xf32>
    %cst_78 = arith.constant dense<0.000000e+00> : vector<16x8xf32>
    %235 = tpu.matmul %234, %222, %cst_78 {dimension_numbers = #tpu.dot_dimension_numbers<[1], [0], [0], [1], [0, 0, 1, 1], [], []>} : vector<16x16xf32>, vector<16x8xf32>, vector<16x8xf32> -> vector<16x8xf32>
    %c0_79 = arith.constant 0 : index
    %c0_80 = arith.constant 0 : index
    %236 = vector.load %arg9[%c0_79, %c0_80] : memref<16x32xf32, #tpu.memory_space<vmem>>, vector<16x8xf32>
    tpu.vector_store %arg9[%c0_79, %c0_80], %235 {strides = array<i32>} : memref<16x32xf32, #tpu.memory_space<vmem>>, vector<16x8xf32>,
    %237 = vector.extract_strided_slice %219 {offsets = [0, 8], sizes = [16, 8], strides = [1, 1]} : vector<16x96xf32> to vector<16x8xf32>
    %238 = vector.extract_strided_slice %219 {offsets = [0, 40], sizes = [16, 8], strides = [1, 1]} : vector<16x96xf32> to vector<16x8xf32>
    %239 = vector.extract_strided_slice %219 {offsets = [0, 72], sizes = [16, 8], strides = [1, 1]} : vector<16x96xf32> to vector<16x8xf32>
    %cst_81 = arith.constant dense<0.000000e+00> : vector<16x16xf32>
    %240 = tpu.matmul %237, %238, %cst_81 {dimension_numbers = #tpu.dot_dimension_numbers<[1], [1], [0], [0], [0, 0, 1, 0], [], []>} : vector<16x8xf32>, vector<16x8xf32>, vector<16x16xf32> -> vector<16x16xf32>
    %241 = arith.addf %240, %61 : vector<16x16xf32>
    %cst_82 = arith.constant dense<0xFF800000> : vector<16xf32>
    %242 = vector.multi_reduction <maximumf>, %241, %cst_82 [1] : vector<16x16xf32> to vector<16xf32>
    %243 = vector.shape_cast %242 : vector<16xf32> to vector<16x1xf32>
    %244 = vector.broadcast %243 : vector<16x1xf32> to vector<16x16xf32>
    %245 = arith.subf %241, %244 : vector<16x16xf32>
    %246 = math.exp %245 : vector<16x16xf32>
    %cst_83 = arith.constant dense<0.000000e+00> : vector<16xf32>
    %247 = vector.multi_reduction <add>, %246, %cst_83 [1] : vector<16x16xf32> to vector<16xf32>
    %248 = vector.shape_cast %247 : vector<16xf32> to vector<16x1xf32>
    %249 = tpu.reciprocal %248 {approx = true} : vector<16x1xf32> -> vector<16x1xf32>
    %250 = vector.broadcast %249 : vector<16x1xf32> to vector<16x16xf32>
    %251 = arith.mulf %246, %250 : vector<16x16xf32>
    %cst_84 = arith.constant dense<0.000000e+00> : vector<16x8xf32>
    %252 = tpu.matmul %251, %239, %cst_84 {dimension_numbers = #tpu.dot_dimension_numbers<[1], [0], [0], [1], [0, 0, 1, 1], [], []>} : vector<16x16xf32>, vector<16x8xf32>, vector<16x8xf32> -> vector<16x8xf32>
    %c0_85 = arith.constant 0 : index
    %c8_86 = arith.constant 8 : index
    %253 = vector.load %arg9[%c0_85, %c8_86] : memref<16x32xf32, #tpu.memory_space<vmem>>, vector<16x8xf32>
    tpu.vector_store %arg9[%c0_85, %c8_86], %252 {strides = array<i32>} : memref<16x32xf32, #tpu.memory_space<vmem>>, vector<16x8xf32>,
    %254 = vector.extract_strided_slice %219 {offsets = [0, 16], sizes = [16, 8], strides = [1, 1]} : vector<16x96xf32> to vector<16x8xf32>
    %255 = vector.extract_strided_slice %219 {offsets = [0, 48], sizes = [16, 8], strides = [1, 1]} : vector<16x96xf32> to vector<16x8xf32>
    %256 = vector.extract_strided_slice %219 {offsets = [0, 80], sizes = [16, 8], strides = [1, 1]} : vector<16x96xf32> to vector<16x8xf32>
    %cst_87 = arith.constant dense<0.000000e+00> : vector<16x16xf32>
    %257 = tpu.matmul %254, %255, %cst_87 {dimension_numbers = #tpu.dot_dimension_numbers<[1], [1], [0], [0], [0, 0, 1, 0], [], []>} : vector<16x8xf32>, vector<16x8xf32>, vector<16x16xf32> -> vector<16x16xf32>
    %258 = arith.addf %257, %61 : vector<16x16xf32>
    %cst_88 = arith.constant dense<0xFF800000> : vector<16xf32>
    %259 = vector.multi_reduction <maximumf>, %258, %cst_88 [1] : vector<16x16xf32> to vector<16xf32>
    %260 = vector.shape_cast %259 : vector<16xf32> to vector<16x1xf32>
    %261 = vector.broadcast %260 : vector<16x1xf32> to vector<16x16xf32>
    %262 = arith.subf %258, %261 : vector<16x16xf32>
    %263 = math.exp %262 : vector<16x16xf32>
    %cst_89 = arith.constant dense<0.000000e+00> : vector<16xf32>
    %264 = vector.multi_reduction <add>, %263, %cst_89 [1] : vector<16x16xf32> to vector<16xf32>
    %265 = vector.shape_cast %264 : vector<16xf32> to vector<16x1xf32>
    %266 = tpu.reciprocal %265 {approx = true} : vector<16x1xf32> -> vector<16x1xf32>
    %267 = vector.broadcast %266 : vector<16x1xf32> to vector<16x16xf32>
    %268 = arith.mulf %263, %267 : vector<16x16xf32>
    %cst_90 = arith.constant dense<0.000000e+00> : vector<16x8xf32>
    %269 = tpu.matmul %268, %256, %cst_90 {dimension_numbers = #tpu.dot_dimension_numbers<[1], [0], [0], [1], [0, 0, 1, 1], [], []>} : vector<16x16xf32>, vector<16x8xf32>, vector<16x8xf32> -> vector<16x8xf32>
    %c0_91 = arith.constant 0 : index
    %c16_92 = arith.constant 16 : index
    %270 = vector.load %arg9[%c0_91, %c16_92] : memref<16x32xf32, #tpu.memory_space<vmem>>, vector<16x8xf32>
    tpu.vector_store %arg9[%c0_91, %c16_92], %269 {strides = array<i32>} : memref<16x32xf32, #tpu.memory_space<vmem>>, vector<16x8xf32>,
    %271 = vector.extract_strided_slice %219 {offsets = [0, 24], sizes = [16, 8], strides = [1, 1]} : vector<16x96xf32> to vector<16x8xf32>
    %272 = vector.extract_strided_slice %219 {offsets = [0, 56], sizes = [16, 8], strides = [1, 1]} : vector<16x96xf32> to vector<16x8xf32>
    %273 = vector.extract_strided_slice %219 {offsets = [0, 88], sizes = [16, 8], strides = [1, 1]} : vector<16x96xf32> to vector<16x8xf32>
    %cst_93 = arith.constant dense<0.000000e+00> : vector<16x16xf32>
    %274 = tpu.matmul %271, %272, %cst_93 {dimension_numbers = #tpu.dot_dimension_numbers<[1], [1], [0], [0], [0, 0, 1, 0], [], []>} : vector<16x8xf32>, vector<16x8xf32>, vector<16x16xf32> -> vector<16x16xf32>
    %275 = arith.addf %274, %61 : vector<16x16xf32>
    %cst_94 = arith.constant dense<0xFF800000> : vector<16xf32>
    %276 = vector.multi_reduction <maximumf>, %275, %cst_94 [1] : vector<16x16xf32> to vector<16xf32>
    %277 = vector.shape_cast %276 : vector<16xf32> to vector<16x1xf32>
    %278 = vector.broadcast %277 : vector<16x1xf32> to vector<16x16xf32>
    %279 = arith.subf %275, %278 : vector<16x16xf32>
    %280 = math.exp %279 : vector<16x16xf32>
    %cst_95 = arith.constant dense<0.000000e+00> : vector<16xf32>
    %281 = vector.multi_reduction <add>, %280, %cst_95 [1] : vector<16x16xf32> to vector<16xf32>
    %282 = vector.shape_cast %281 : vector<16xf32> to vector<16x1xf32>
    %283 = tpu.reciprocal %282 {approx = true} : vector<16x1xf32> -> vector<16x1xf32>
    %284 = vector.broadcast %283 : vector<16x1xf32> to vector<16x16xf32>
    %285 = arith.mulf %280, %284 : vector<16x16xf32>
    %cst_96 = arith.constant dense<0.000000e+00> : vector<16x8xf32>
    %286 = tpu.matmul %285, %273, %cst_96 {dimension_numbers = #tpu.dot_dimension_numbers<[1], [0], [0], [1], [0, 0, 1, 1], [], []>} : vector<16x16xf32>, vector<16x8xf32>, vector<16x8xf32> -> vector<16x8xf32>
    %c0_97 = arith.constant 0 : index
    %c24_98 = arith.constant 24 : index
    %287 = vector.load %arg9[%c0_97, %c24_98] : memref<16x32xf32, #tpu.memory_space<vmem>>, vector<16x8xf32>
    tpu.vector_store %arg9[%c0_97, %c24_98], %286 {strides = array<i32>} : memref<16x32xf32, #tpu.memory_space<vmem>>, vector<16x8xf32>,
    %c0_99 = arith.constant 0 : index
    %c0_100 = arith.constant 0 : index
    %288 = vector.load %arg9[%c0_99, %c0_100] : memref<16x32xf32, #tpu.memory_space<vmem>>, vector<16x32xf32>
    %c1_101 = arith.constant 1 : index
    %c0_102 = arith.constant 0 : index
    %c0_103 = arith.constant 0 : index
    %289 = vector.load %arg4[%c1_101, %c0_102, %c0_103] : memref<2x32x32xf32, #tpu.memory_space<vmem>>, vector<1x32x32xf32>
    %290 = vector.shape_cast %289 : vector<1x32x32xf32> to vector<32x32xf32>
    %cst_104 = arith.constant dense<0.000000e+00> : vector<16x32xf32>
    %291 = tpu.matmul %288, %290, %cst_104 {dimension_numbers = #tpu.dot_dimension_numbers<[1], [0], [0], [1], [0, 0, 1, 1], [], []>} : vector<16x32xf32>, vector<32x32xf32>, vector<16x32xf32> -> vector<16x32xf32>
    %292 = vector.extract_strided_slice %0 {offsets = [11, 0], sizes = [1, 32], strides = [1, 1]} : vector<18x96xf32> to vector<1x32xf32>
    %293 = vector.broadcast %292 : vector<1x32xf32> to vector<16x32xf32>
    %294 = arith.addf %291, %293 : vector<16x32xf32>
    %295 = arith.addf %294, %213 : vector<16x32xf32>
    %296 = vector.extract_strided_slice %0 {offsets = [12, 0], sizes = [1, 32], strides = [1, 1]} : vector<18x96xf32> to vector<1x32xf32>
    %297 = vector.extract_strided_slice %0 {offsets = [13, 0], sizes = [1, 32], strides = [1, 1]} : vector<18x96xf32> to vector<1x32xf32>
    %cst_105 = arith.constant dense<0.000000e+00> : vector<16xf32>
    %298 = vector.multi_reduction <add>, %295, %cst_105 [1] : vector<16x32xf32> to vector<16xf32>
    %299 = vector.shape_cast %298 : vector<16xf32> to vector<16x1xf32>
    %cst_106 = arith.constant 3.200000e+01 : f32
    %300 = vector.broadcast %cst_106 : f32 to vector<16x1xf32>
    %301 = arith.divf %299, %300 : vector<16x1xf32>
    %302 = vector.broadcast %301 : vector<16x1xf32> to vector<16x32xf32>
    %303 = arith.subf %295, %302 : vector<16x32xf32>
    %304 = arith.mulf %303, %303 : vector<16x32xf32>
    %cst_107 = arith.constant dense<0.000000e+00> : vector<16xf32>
    %305 = vector.multi_reduction <add>, %304, %cst_107 [1] : vector<16x32xf32> to vector<16xf32>
    %306 = vector.shape_cast %305 : vector<16xf32> to vector<16x1xf32>
    %cst_108 = arith.constant 3.200000e+01 : f32
    %307 = vector.broadcast %cst_108 : f32 to vector<16x1xf32>
    %308 = arith.divf %306, %307 : vector<16x1xf32>
    %cst_109 = arith.constant 9.99999996E-13 : f32
    %309 = vector.broadcast %cst_109 : f32 to vector<16x1xf32>
    %310 = arith.addf %308, %309 : vector<16x1xf32>
    %311 = math.rsqrt %310 : vector<16x1xf32>
    %312 = vector.broadcast %311 : vector<16x1xf32> to vector<16x32xf32>
    %313 = arith.mulf %303, %312 : vector<16x32xf32>
    %314 = vector.broadcast %296 : vector<1x32xf32> to vector<16x32xf32>
    %315 = arith.mulf %313, %314 : vector<16x32xf32>
    %316 = vector.broadcast %297 : vector<1x32xf32> to vector<16x32xf32>
    %317 = arith.addf %315, %316 : vector<16x32xf32>
    %c1_110 = arith.constant 1 : index
    %c0_111 = arith.constant 0 : index
    %c0_112 = arith.constant 0 : index
    %318 = vector.load %arg5[%c1_110, %c0_111, %c0_112] : memref<2x32x64xf32, #tpu.memory_space<vmem>>, vector<1x32x64xf32>
    %319 = vector.shape_cast %318 : vector<1x32x64xf32> to vector<32x64xf32>
    %cst_113 = arith.constant dense<0.000000e+00> : vector<16x64xf32>
    %320 = tpu.matmul %317, %319, %cst_113 {dimension_numbers = #tpu.dot_dimension_numbers<[1], [0], [0], [1], [0, 0, 1, 1], [], []>} : vector<16x32xf32>, vector<32x64xf32>, vector<16x64xf32> -> vector<16x64xf32>
    %321 = vector.extract_strided_slice %0 {offsets = [14, 0], sizes = [1, 64], strides = [1, 1]} : vector<18x96xf32> to vector<1x64xf32>
    %322 = vector.broadcast %321 : vector<1x64xf32> to vector<16x64xf32>
    %323 = arith.addf %320, %322 : vector<16x64xf32>
    %cst_114 = arith.constant 5.000000e-01 : f32
    %324 = vector.broadcast %cst_114 : f32 to vector<16x64xf32>
    %325 = arith.mulf %324, %323 : vector<16x64xf32>
    %cst_115 = arith.constant 4.471500e-02 : f32
    %326 = vector.broadcast %cst_115 : f32 to vector<16x64xf32>
    %327 = arith.mulf %326, %323 : vector<16x64xf32>
    %328 = arith.mulf %327, %323 : vector<16x64xf32>
    %329 = arith.mulf %328, %323 : vector<16x64xf32>
    %330 = arith.addf %323, %329 : vector<16x64xf32>
    %cst_116 = arith.constant 0.797884583 : f32
    %331 = vector.broadcast %cst_116 : f32 to vector<16x64xf32>
    %332 = arith.mulf %331, %330 : vector<16x64xf32>
    %333 = math.tanh %332 : vector<16x64xf32>
    %cst_117 = arith.constant 1.000000e+00 : f32
    %334 = vector.broadcast %cst_117 : f32 to vector<16x64xf32>
    %335 = arith.addf %334, %333 : vector<16x64xf32>
    %336 = arith.mulf %325, %335 : vector<16x64xf32>
    %c1_118 = arith.constant 1 : index
    %c0_119 = arith.constant 0 : index
    %c0_120 = arith.constant 0 : index
    %337 = vector.load %arg6[%c1_118, %c0_119, %c0_120] : memref<2x64x32xf32, #tpu.memory_space<vmem>>, vector<1x64x32xf32>
    %338 = vector.shape_cast %337 : vector<1x64x32xf32> to vector<64x32xf32>
    %cst_121 = arith.constant dense<0.000000e+00> : vector<16x32xf32>
    %339 = tpu.matmul %336, %338, %cst_121 {dimension_numbers = #tpu.dot_dimension_numbers<[1], [0], [0], [1], [0, 0, 1, 1], [], []>} : vector<16x64xf32>, vector<64x32xf32>, vector<16x32xf32> -> vector<16x32xf32>
    %340 = vector.extract_strided_slice %0 {offsets = [15, 0], sizes = [1, 32], strides = [1, 1]} : vector<18x96xf32> to vector<1x32xf32>
    %341 = vector.broadcast %340 : vector<1x32xf32> to vector<16x32xf32>
    %342 = arith.addf %339, %341 : vector<16x32xf32>
    %343 = arith.addf %342, %317 : vector<16x32xf32>
    %344 = vector.extract_strided_slice %0 {offsets = [16, 0], sizes = [1, 32], strides = [1, 1]} : vector<18x96xf32> to vector<1x32xf32>
    %345 = vector.extract_strided_slice %0 {offsets = [17, 0], sizes = [1, 32], strides = [1, 1]} : vector<18x96xf32> to vector<1x32xf32>
    %cst_122 = arith.constant dense<0.000000e+00> : vector<16xf32>
    %346 = vector.multi_reduction <add>, %343, %cst_122 [1] : vector<16x32xf32> to vector<16xf32>
    %347 = vector.shape_cast %346 : vector<16xf32> to vector<16x1xf32>
    %cst_123 = arith.constant 3.200000e+01 : f32
    %348 = vector.broadcast %cst_123 : f32 to vector<16x1xf32>
    %349 = arith.divf %347, %348 : vector<16x1xf32>
    %350 = vector.broadcast %349 : vector<16x1xf32> to vector<16x32xf32>
    %351 = arith.subf %343, %350 : vector<16x32xf32>
    %352 = arith.mulf %351, %351 : vector<16x32xf32>
    %cst_124 = arith.constant dense<0.000000e+00> : vector<16xf32>
    %353 = vector.multi_reduction <add>, %352, %cst_124 [1] : vector<16x32xf32> to vector<16xf32>
    %354 = vector.shape_cast %353 : vector<16xf32> to vector<16x1xf32>
    %cst_125 = arith.constant 3.200000e+01 : f32
    %355 = vector.broadcast %cst_125 : f32 to vector<16x1xf32>
    %356 = arith.divf %354, %355 : vector<16x1xf32>
    %cst_126 = arith.constant 9.99999996E-13 : f32
    %357 = vector.broadcast %cst_126 : f32 to vector<16x1xf32>
    %358 = arith.addf %356, %357 : vector<16x1xf32>
    %359 = math.rsqrt %358 : vector<16x1xf32>
    %360 = vector.broadcast %359 : vector<16x1xf32> to vector<16x32xf32>
    %361 = arith.mulf %351, %360 : vector<16x32xf32>
    %362 = vector.broadcast %344 : vector<1x32xf32> to vector<16x32xf32>
    %363 = arith.mulf %361, %362 : vector<16x32xf32>
    %364 = vector.broadcast %345 : vector<1x32xf32> to vector<16x32xf32>
    %365 = arith.addf %363, %364 : vector<16x32xf32>
    %366 = vector.extract_strided_slice %365 {offsets = [0, 0], sizes = [8, 32], strides = [1, 1]} : vector<16x32xf32> to vector<8x32xf32>
    %cst_127 = arith.constant dense<0.000000e+00> : vector<32xf32>
    %367 = vector.multi_reduction <add>, %366, %cst_127 [0] : vector<8x32xf32> to vector<32xf32>
    %368 = vector.shape_cast %367 : vector<32xf32> to vector<1x32xf32>
    %369 = vector.extract_strided_slice %365 {offsets = [8, 0], sizes = [8, 32], strides = [1, 1]} : vector<16x32xf32> to vector<8x32xf32>
    %cst_128 = arith.constant dense<0.000000e+00> : vector<32xf32>
    %370 = vector.multi_reduction <add>, %369, %cst_128 [0] : vector<8x32xf32> to vector<32xf32>
    %371 = vector.shape_cast %370 : vector<32xf32> to vector<1x32xf32>
    %372 = tpu.concatenate %368, %371 in 0 : vector<1x32xf32>, vector<1x32xf32> -> vector<2x32xf32>
    %c0_129 = arith.constant 0 : index
    %c0_130 = arith.constant 0 : index
    %373 = vector.load %arg8[%c0_129, %c0_130] : memref<2x32xf32, #tpu.memory_space<vmem>>, vector<2x32xf32>
    tpu.vector_store %arg8[%c0_129, %c0_130], %372 {strides = array<i32>} : memref<2x32xf32, #tpu.memory_space<vmem>>, vector<2x32xf32>,
    return
  }
}

</mosaic_0001>

<llo_original>
// kernel: bert_model_forward.1
$region0: #{bert_model_forward.1}
  #allocation0 [shape = 'u32[]', space=smem, size = 0x4, offset = 0x4, fixed_abs, tag = 'smem constant byte address 0x4 - core index']
  #allocation1 [shape = 'u32[144,128]{1,0:T(1,128)}', space=vmem, size = 0x12000, scoped, tag = 'internal scratch']
  #allocation2 [shape = 'f32[16,32]{1,0:T(8,128)}', space=vmem, size = 0x2000, scoped, tag = 'scratch operand']
  %s0 = inlined_call_operand.vmem [shape: s32[16,1], index: 0, kind: input, shape index: {}]
  %s1 = inlined_call_operand.vmem [shape: f32[100,32], index: 1, kind: input, shape index: {}]
  %s2 = inlined_call_operand.vmem [shape: f32[8,32], index: 2, kind: input, shape index: {}]
  %s3 = inlined_call_operand.vmem [shape: f32[2,32,96], index: 3, kind: input, shape index: {}]
  %s4 = inlined_call_operand.vmem [shape: f32[2,32,32], index: 4, kind: input, shape index: {}]
  %s5 = inlined_call_operand.vmem [shape: f32[2,32,64], index: 5, kind: input, shape index: {}]
  %s6 = inlined_call_operand.vmem [shape: f32[2,64,32], index: 6, kind: input, shape index: {}]
  %s7 = inlined_call_operand.vmem [shape: f32[18,96], index: 7, kind: input, shape index: {}]
  %s8 = inlined_call_operand.hbm [shape: f32[2,32], index: 8, kind: output, shape index: {}]
  %s9 = sld [smem:[#allocation0]]
  $region42: #{bert_model_forward.1} parent=0
    _
  %s11 = ssub.s32 1, %s9
  %s12 = scalar_select 0, %s11, %s9
  $region1: #{bert_model_forward.1} parent=0
    #allocation3 [shape = 'u8[1024]{0}', space=vmem, size = 0x400, scoped, tag = 'output window, operand 0, single buffered']
    #allocation4 [shape = 's32[1]{0}', space=sflag, size = 0x4, scoped, tag = 'scoped memory for bert_model_forward.1']
    %13 = vsyncpa [#allocation4], 0
    // Predicated region
    $region2: #{bert_model_forward.1} parent=1 // pred_check
      _
    $region3: #{bert_model_forward.1} parent=1 // pred_check_branch
      %15 = sbr.rel (0) target = $region5
    $region4: #{bert_model_forward.1} parent=1 // pred_region
      _
    $region5: #{bert_model_forward.1} parent=1 // pred_fallthru
      _
    // Predicated region
    $region6: #{bert_model_forward.1} parent=1 // pred_check
      _
    $region7: #{bert_model_forward.1} parent=1 // pred_check_branch
      %17 = sbr.rel (0) target = $region9
    $region8: #{bert_model_forward.1} parent=1 // pred_region
      _
    $region9: #{bert_model_forward.1} parent=1 // pred_fallthru
      _
    // Predicated region
    $region10: #{bert_model_forward.1} parent=1 // pred_check
      _
    $region11: #{bert_model_forward.1} parent=1 // pred_check_branch
      %19 = sbr.rel (0) target = $region13
    $region12: #{bert_model_forward.1} parent=1 // pred_region
      _
    $region13: #{bert_model_forward.1} parent=1 // pred_fallthru
      _
    // Predicated region
    $region14: #{bert_model_forward.1} parent=1 // pred_check
      _
    $region15: #{bert_model_forward.1} parent=1 // pred_check_branch
      %21 = sbr.rel (0) target = $region17
    $region16: #{bert_model_forward.1} parent=1 // pred_region
      _
    $region17: #{bert_model_forward.1} parent=1 // pred_fallthru
      _
    // Predicated region
    $region18: #{bert_model_forward.1} parent=1 // pred_check
      _
    $region19: #{bert_model_forward.1} parent=1 // pred_check_branch
      %23 = sbr.rel (0) target = $region21
    $region20: #{bert_model_forward.1} parent=1 // pred_region
      _
    $region21: #{bert_model_forward.1} parent=1 // pred_fallthru
      _
    // Predicated region
    $region22: #{bert_model_forward.1} parent=1 // pred_check
      _
    $region23: #{bert_model_forward.1} parent=1 // pred_check_branch
      %25 = sbr.rel (0) target = $region25
    $region24: #{bert_model_forward.1} parent=1 // pred_region
      _
    $region25: #{bert_model_forward.1} parent=1 // pred_fallthru
      _
    // Predicated region
    $region26: #{bert_model_forward.1} parent=1 // pred_check
      _
    $region27: #{bert_model_forward.1} parent=1 // pred_check_branch
      %27 = sbr.rel (0) target = $region29
    $region28: #{bert_model_forward.1} parent=1 // pred_region
      _
    $region29: #{bert_model_forward.1} parent=1 // pred_fallthru
      _
    // Predicated region
    $region30: #{bert_model_forward.1} parent=1 // pred_check
      _
    $region31: #{bert_model_forward.1} parent=1 // pred_check_branch
      %29 = sbr.rel (0) target = $region33
    $region32: #{bert_model_forward.1} parent=1 // pred_region
      _
    $region33: #{bert_model_forward.1} parent=1 // pred_fallthru
      _
    %v30 = vld [vmem:[%s7] sm:$0xff]
    %v31 = vld [vmem:[%s7 + $0x8] sm:$0xff]
    %v32 = vld [vmem:[%s7 + $0x10] sm:$0x3]
    %v33 = vld [vmem:[%s0] sm:$0xff]
    %v34 = vld [vmem:[%s0 + $0x8] sm:$0xff]
    %v35 = vlaneseq
    %v36 = vand.u32 %v35, 127
    %37 = vset.pattern.permute.xlu0 0
    %38 = vperm.xlu0 %37, %v33
    %v39 = vpop.permute.xlu0 %38
    %40 = vset.pattern.permute.xlu0 0
    %41 = vperm.xlu0 %40, %v34
    %v42 = vpop.permute.xlu0 %41
    %vm43 = vcmp.eq.s32.totalorder %v39, %v36
    %vm44 = vcmp.eq.s32.totalorder %v42, %v36
    %v45 = vsel %vm43, 1, 0
    %v46 = vsel %vm44, 1, 0
    %v47 = vcvt.s32.f32 %v45
    %v48 = vcvt.s32.f32 %v46
    %v49 = vld [vmem:[%s1] sm:$0xff]
    %v50 = vld [vmem:[%s1 + $0x8] sm:$0xff]
    %v51 = vld [vmem:[%s1 + $0x10] sm:$0xff]
    %v52 = vld [vmem:[%s1 + $0x18] sm:$0xff]
    %v53 = vld [vmem:[%s1 + $0x20] sm:$0xff]
    %v54 = vld [vmem:[%s1 + $0x28] sm:$0xff]
    %v55 = vld [vmem:[%s1 + $0x30] sm:$0xff]
    %v56 = vld [vmem:[%s1 + $0x38] sm:$0xff]
    %v57 = vld [vmem:[%s1 + $0x40] sm:$0xff]
    %v58 = vld [vmem:[%s1 + $0x48] sm:$0xff]
    %v59 = vld [vmem:[%s1 + $0x50] sm:$0xff]
    %v60 = vld [vmem:[%s1 + $0x58] sm:$0xff]
    %v61 = vld [vmem:[%s1 + $0x60] sm:$0xf]
    %v62 = vld [vmem:[%s2] sm:$0xff]
    %vm63 = vcmask 818176
    %v65 = vsel %vm63, %v47, 0
    %v68 = vsel %vm63, %v48, 0
    %vm70 = vcmask 1043456
    %v72 = vsel %vm70, %v61, 0
    %74 = vmatprep.subr.mxu0 0.0
    %75 = vmatpush1.msra.mxu0 0.0
    %76 = vmatprep.subr.mxu0 0.0
    %77 = vmatpush1.msra.mxu0 0.0
    %78 = vmatprep.subr.mxu0 0.0
    %79 = vmatpush1.msra.mxu0 0.0
    %80 = vmatprep.subr.mxu0 0.0
    %81 = vmatpush1.msra.mxu0 %v72
    %82 = vmatprep.subr.mxu0 0.0
    %83 = vmatpush1.msra.mxu0 %v60
    %84 = vmatprep.subr.mxu0 0.0
    %85 = vmatpush1.msra.mxu0 %v59
    %86 = vmatprep.subr.mxu0 0.0
    %87 = vmatpush1.msra.mxu0 %v58
    %88 = vmatprep.subr.mxu0 0.0
    %89 = vmatpush1.msra.mxu0 %v57
    %90 = vmatprep.subr.mxu0 0.0
    %91 = vmatpush1.msra.mxu0 %v56
    %92 = vmatprep.subr.mxu0 0.0
    %93 = vmatpush1.msra.mxu0 %v55
    %94 = vmatprep.subr.mxu0 0.0
    %95 = vmatpush1.msra.mxu0 %v54
    %96 = vmatprep.subr.mxu0 0.0
    %97 = vmatpush1.msra.mxu0 %v53
    %98 = vmatprep.subr.mxu0 0.0
    %99 = vmatpush1.msra.mxu0 %v52
    %100 = vmatprep.subr.mxu0 0.0
    %101 = vmatpush1.msra.mxu0 %v51
    %102 = vmatprep.subr.mxu0 0.0
    %103 = vmatpush1.msra.mxu0 %v50
    %104 = vmatprep.subr.mxu0 0.0
    %105 = vmatpush1.msra.mxu0 %v49
    %106 = vmatprep.subr.mxu0 0.0
    %107 = vmatpush2.msra.mxu0 0.0
    %108 = vmatprep.subr.mxu0 0.0
    %109 = vmatpush2.msra.mxu0 0.0
    %110 = vmatprep.subr.mxu0 0.0
    %111 = vmatpush2.msra.mxu0 0.0
    %112 = vmatprep.subr.mxu0 0.0
    %113 = vmatpush2.msra.mxu0 0.0
    %114 = vmatprep.subr.mxu0 0.0
    %115 = vmatpush2.msra.mxu0 0.0
    %116 = vmatprep.subr.mxu0 0.0
    %117 = vmatpush2.msra.mxu0 0.0
    %118 = vmatprep.subr.mxu0 0.0
    %119 = vmatpush2.msra.mxu0 0.0
    %120 = vmatprep.subr.mxu0 0.0
    %121 = vmatpush2.msra.mxu0 0.0
    %122 = vmatprep.subr.mxu0 0.0
    %123 = vmatpush2.msra.mxu0 0.0
    %124 = vmatprep.subr.mxu0 0.0
    %125 = vmatpush2.msra.mxu0 0.0
    %126 = vmatprep.subr.mxu0 0.0
    %127 = vmatpush2.msra.mxu0 0.0
    %128 = vmatprep.subr.mxu0 0.0
    %129 = vmatpush2.msra.mxu0 0.0
    %130 = vmatprep.subr.mxu0 0.0
    %131 = vmatpush2.msra.mxu0 0.0
    %132 = vmatprep.subr.mxu0 0.0
    %133 = vmatpush2.msra.mxu0 0.0
    %134 = vmatprep.subr.mxu0 0.0
    %135 = vmatpush2.msra.mxu0 0.0
    %136 = vmatprep.subr.mxu0 0.0
    %137 = vmatpush2.msra.mxu0 0.0
    %138 = vmatprep.mubr.f32.mxu0 0.0
    %139 = vmatmul.mubr.f32.gmra.mxu0 %v65
    %v140 = vpop.f32.mrf.mxu0
    %v141 = vadd.f32 %v62, %v140
    %v142 = vpop.f32.mrf.mxu0
    %143 = vmatprep.mubr.f32.mxu0 0.0
    %144 = vmatmul.mubr.f32.gmra.mxu0 %v68
    %v145 = vpop.f32.mrf.mxu0
    %v146 = vadd.f32 %v62, %v145
    %v147 = vpop.f32.mrf.mxu0
    %148 = vdwg.mxu0
    %vm149 = vcmask 261120
    %v150 = vsel %vm149, %v141, 0.0
    %151 = vadd.xlane.f32.xlu0 %v150
    %v152 = vpop.xlane.xlu0 %151
    %v153 = vsel %vm149, %v146, 0.0
    %154 = vadd.xlane.f32.xlu0 %v153
    %v155 = vpop.xlane.xlu0 %154
    %v156 = vrcp.pop 32.0
    %v157 = vmul.f32 %v152, %v156
    %v158 = vmul.f32 %v155, %v156
    %v159 = vsub.f32 %v141, %v157
    %v160 = vsub.f32 %v146, %v158
    %v161 = vmul.f32 %v159, %v159
    %v162 = vmul.f32 %v160, %v160
    %v163 = vsel %vm149, %v161, 0.0
    %164 = vadd.xlane.f32.xlu0 %v163
    %v165 = vpop.xlane.xlu0 %164
    %v166 = vsel %vm149, %v162, 0.0
    %167 = vadd.xlane.f32.xlu0 %v166
    %v168 = vpop.xlane.xlu0 %167
    %v169 = vmul.f32 %v165, %v156
    %v170 = vmul.f32 %v168, %v156
    %v171 = vadd.f32 %v169, 1e-12
    %v172 = vadd.f32 %v170, 1e-12
    %v173 = vrsqrt.pop %v171
    %v174 = vrsqrt.pop %v172
    %v175 = vmul.f32 %v159, %v173
    %v176 = vmul.f32 %v160, %v174
    %v177 = vlaneseq
    %v178 = vshrl.u32 %v177, 7
    %v179 = vsub.s32 0, %v178
    %v180 = vrot.slane %v30, %v179
    %v181 = vmul.f32 %v175, %v180
    %v182 = vmul.f32 %v176, %v180
    %v183 = vlaneseq
    %v184 = vshrl.u32 %v183, 7
    %v185 = vsub.s32 1, %v184
    %v186 = vrot.slane %v30, %v185
    %v187 = vadd.f32 %v181, %v186
    %v188 = vadd.f32 %v182, %v186
    %v189 = vlaneseq
    %v190 = vshrl.u32 %v189, 7
    %v191 = vadd.s32 %v190, 8
    %vm192 = vcmp.ge.s32.totalorder %v190, 0
    %vm193 = vcmp.ge.s32.totalorder %v191, 0
    %vm194 = vcmp.lt.s32.totalorder %v190, 8
    %vm195 = vcmp.lt.s32.totalorder %v191, 8
    %vm196 = vmand %vm192, %vm194
    %vm197 = vmand %vm193, %vm195
    %vm198 = vcmp.ge.s32.totalorder %v36, 0
    %vm199 = vcmp.lt.s32.totalorder %v36, 8
    %vm200 = vmand %vm198, %vm199
    %vm201 = vmand %vm196, %vm200
    %vm202 = vmand %vm197, %vm200
    %vm203 = vcmp.ge.s32.totalorder %v190, 8
    %vm204 = vcmp.ge.s32.totalorder %v191, 8
    %vm205 = vcmp.lt.s32.totalorder %v190, 16
    %vm206 = vcmp.lt.s32.totalorder %v191, 16
    %vm207 = vmand %vm203, %vm205
    %vm208 = vmand %vm204, %vm206
    %vm209 = vcmp.ge.s32.totalorder %v36, 8
    %vm210 = vcmp.lt.s32.totalorder %v36, 16
    %vm211 = vmand %vm209, %vm210
    %vm212 = vmand %vm207, %vm211
    %vm213 = vmand %vm208, %vm211
    %vm214 = vmor %vm201, %vm212
    %vm215 = vmor %vm202, %vm213
    %v216 = vsel %vm214, 0.0, -1e+30
    %v217 = vsel %vm215, 0.0, -1e+30
    %v218 = vld [vmem:[%s3] sm:$0xff]
    %v219 = vld [vmem:[%s3 + $0x8] sm:$0xff]
    %v220 = vld [vmem:[%s3 + $0x10] sm:$0xff]
    %v221 = vld [vmem:[%s3 + $0x18] sm:$0xff]
    %v222 = vlaneseq
    %v223 = vshrl.u32 %v222, 7
    %v224 = vsub.s32 2, %v223
    %v225 = vrot.slane %v30, %v224
    %v227 = vsel %vm149, %v187, 0
    %v230 = vsel %vm149, %v188, 0
    %232 = vmatprep.subr.mxu0 0.0
    %233 = vmatpush1.msra.mxu0 0.0
    %234 = vmatprep.subr.mxu0 0.0
    %235 = vmatpush1.msra.mxu0 0.0
    %236 = vmatprep.subr.mxu0 0.0
    %237 = vmatpush1.msra.mxu0 0.0
    %238 = vmatprep.subr.mxu0 0.0
    %239 = vmatpush1.msra.mxu0 0.0
    %240 = vmatprep.subr.mxu0 0.0
    %241 = vmatpush1.msra.mxu0 0.0
    %242 = vmatprep.subr.mxu0 0.0
    %243 = vmatpush1.msra.mxu0 0.0
    %244 = vmatprep.subr.mxu0 0.0
    %245 = vmatpush1.msra.mxu0 0.0
    %246 = vmatprep.subr.mxu0 0.0
    %247 = vmatpush1.msra.mxu0 0.0
    %248 = vmatprep.subr.mxu0 0.0
    %249 = vmatpush1.msra.mxu0 0.0
    %250 = vmatprep.subr.mxu0 0.0
    %251 = vmatpush1.msra.mxu0 0.0
    %252 = vmatprep.subr.mxu0 0.0
    %253 = vmatpush1.msra.mxu0 0.0
    %254 = vmatprep.subr.mxu0 0.0
    %255 = vmatpush1.msra.mxu0 0.0
    %256 = vmatprep.subr.mxu0 0.0
    %257 = vmatpush1.msra.mxu0 %v221
    %258 = vmatprep.subr.mxu0 0.0
    %259 = vmatpush1.msra.mxu0 %v220
    %260 = vmatprep.subr.mxu0 0.0
    %261 = vmatpush1.msra.mxu0 %v219
    %262 = vmatprep.subr.mxu0 0.0
    %263 = vmatpush1.msra.mxu0 %v218
    %264 = vmatprep.subr.mxu0 0.0
    %265 = vmatpush2.msra.mxu0 0.0
    %266 = vmatprep.subr.mxu0 0.0
    %267 = vmatpush2.msra.mxu0 0.0
    %268 = vmatprep.subr.mxu0 0.0
    %269 = vmatpush2.msra.mxu0 0.0
    %270 = vmatprep.subr.mxu0 0.0
    %271 = vmatpush2.msra.mxu0 0.0
    %272 = vmatprep.subr.mxu0 0.0
    %273 = vmatpush2.msra.mxu0 0.0
    %274 = vmatprep.subr.mxu0 0.0
    %275 = vmatpush2.msra.mxu0 0.0
    %276 = vmatprep.subr.mxu0 0.0
    %277 = vmatpush2.msra.mxu0 0.0
    %278 = vmatprep.subr.mxu0 0.0
    %279 = vmatpush2.msra.mxu0 0.0
    %280 = vmatprep.subr.mxu0 0.0
    %281 = vmatpush2.msra.mxu0 0.0
    %282 = vmatprep.subr.mxu0 0.0
    %283 = vmatpush2.msra.mxu0 0.0
    %284 = vmatprep.subr.mxu0 0.0
    %285 = vmatpush2.msra.mxu0 0.0
    %286 = vmatprep.subr.mxu0 0.0
    %287 = vmatpush2.msra.mxu0 0.0
    %288 = vmatprep.subr.mxu0 0.0
    %289 = vmatpush2.msra.mxu0 0.0
    %290 = vmatprep.subr.mxu0 0.0
    %291 = vmatpush2.msra.mxu0 0.0
    %292 = vmatprep.subr.mxu0 0.0
    %293 = vmatpush2.msra.mxu0 0.0
    %294 = vmatprep.subr.mxu0 0.0
    %295 = vmatpush2.msra.mxu0 0.0
    %296 = vmatprep.mubr.f32.mxu0 0.0
    %297 = vmatmul.mubr.f32.gmra.mxu0 %v227
    %v298 = vpop.f32.mrf.mxu0
    %v299 = vadd.f32 %v225, %v298
    %v300 = vpop.f32.mrf.mxu0
    %301 = vmatprep.mubr.f32.mxu0 0.0
    %302 = vmatmul.mubr.f32.gmra.mxu0 %v230
    %v303 = vpop.f32.mrf.mxu0
    %v304 = vadd.f32 %v225, %v303
    %v305 = vpop.f32.mrf.mxu0
    %306 = vdwg.mxu0
    %309 = vrot.lane.b32.xlu0 %v299, 96
    %v310 = vpop.permute.xlu0 %309
    %311 = vrot.lane.b32.xlu0 %v304, 96
    %v312 = vpop.permute.xlu0 %311
    %vm313 = vcmask 64512
    %v314 = vsel %vm313, %v299, 0
    %v316 = vsel %vm313, %v304, 0
    %v318 = vsel %vm313, %v310, 0
    %v320 = vsel %vm313, %v312, 0
    %322 = vmatprep.subr.mxu0 0.0
    %323 = vmatpush1.xpose.msra.mxu0 0.0
    %324 = vmatprep.subr.mxu0 0.0
    %325 = vmatpush1.xpose.msra.mxu0 0.0
    %326 = vmatprep.subr.mxu0 0.0
    %327 = vmatpush1.xpose.msra.mxu0 0.0
    %328 = vmatprep.subr.mxu0 0.0
    %329 = vmatpush1.xpose.msra.mxu0 0.0
    %330 = vmatprep.subr.mxu0 0.0
    %331 = vmatpush1.xpose.msra.mxu0 0.0
    %332 = vmatprep.subr.mxu0 0.0
    %333 = vmatpush1.xpose.msra.mxu0 0.0
    %334 = vmatprep.subr.mxu0 0.0
    %335 = vmatpush1.xpose.msra.mxu0 0.0
    %336 = vmatprep.subr.mxu0 0.0
    %337 = vmatpush1.xpose.msra.mxu0 0.0
    %338 = vmatprep.subr.mxu0 0.0
    %339 = vmatpush1.xpose.msra.mxu0 0.0
    %340 = vmatprep.subr.mxu0 0.0
    %341 = vmatpush1.xpose.msra.mxu0 0.0
    %342 = vmatprep.subr.mxu0 0.0
    %343 = vmatpush1.xpose.msra.mxu0 0.0
    %344 = vmatprep.subr.mxu0 0.0
    %345 = vmatpush1.xpose.msra.mxu0 0.0
    %346 = vmatprep.subr.mxu0 0.0
    %347 = vmatpush1.xpose.msra.mxu0 0.0
    %348 = vmatprep.subr.mxu0 0.0
    %349 = vmatpush1.xpose.msra.mxu0 0.0
    %350 = vmatprep.subr.mxu0 0.0
    %351 = vmatpush1.xpose.msra.mxu0 %v320
    %352 = vmatprep.subr.mxu0 0.0
    %353 = vmatpush1.xpose.msra.mxu0 %v318
    %354 = vmatprep.subr.mxu0 0.0
    %355 = vmatpush2.xpose.msra.mxu0 0.0
    %356 = vmatprep.subr.mxu0 0.0
    %357 = vmatpush2.xpose.msra.mxu0 0.0
    %358 = vmatprep.subr.mxu0 0.0
    %359 = vmatpush2.xpose.msra.mxu0 0.0
    %360 = vmatprep.subr.mxu0 0.0
    %361 = vmatpush2.xpose.msra.mxu0 0.0
    %362 = vmatprep.subr.mxu0 0.0
    %363 = vmatpush2.xpose.msra.mxu0 0.0
    %364 = vmatprep.subr.mxu0 0.0
    %365 = vmatpush2.xpose.msra.mxu0 0.0
    %366 = vmatprep.subr.mxu0 0.0
    %367 = vmatpush2.xpose.msra.mxu0 0.0
    %368 = vmatprep.subr.mxu0 0.0
    %369 = vmatpush2.xpose.msra.mxu0 0.0
    %370 = vmatprep.subr.mxu0 0.0
    %371 = vmatpush2.xpose.msra.mxu0 0.0
    %372 = vmatprep.subr.mxu0 0.0
    %373 = vmatpush2.xpose.msra.mxu0 0.0
    %374 = vmatprep.subr.mxu0 0.0
    %375 = vmatpush2.xpose.msra.mxu0 0.0
    %376 = vmatprep.subr.mxu0 0.0
    %377 = vmatpush2.xpose.msra.mxu0 0.0
    %378 = vmatprep.subr.mxu0 0.0
    %379 = vmatpush2.xpose.msra.mxu0 0.0
    %380 = vmatprep.subr.mxu0 0.0
    %381 = vmatpush2.xpose.msra.mxu0 0.0
    %382 = vmatprep.subr.mxu0 0.0
    %383 = vmatpush2.xpose.msra.mxu0 0.0
    %384 = vmatprep.subr.mxu0 0.0
    %385 = vmatpush2.xpose.msra.mxu0 0.0
    %386 = vmatprep.mubr.f32.mxu0 0.0
    %387 = vmatmul.mubr.f32.gmra.mxu0 %v314
    %v388 = vpop.f32.mrf.mxu0
    %v389 = vadd.f32 %v216, %v388
    %v390 = vpop.f32.mrf.mxu0
    %391 = vmatprep.mubr.f32.mxu0 0.0
    %392 = vmatmul.mubr.f32.gmra.mxu0 %v316
    %v393 = vpop.f32.mrf.mxu0
    %v394 = vadd.f32 %v217, %v393
    %v395 = vpop.f32.mrf.mxu0
    %396 = vdwg.mxu0
    %vm397 = vcmask 130048
    %v398 = vsel %vm397, %v389, -inf
    %399 = vmax.xlane.f32.xlu0 %v398
    %v400 = vpop.xlane.xlu0 %399
    %v401 = vsel %vm397, %v394, -inf
    %402 = vmax.xlane.f32.xlu0 %v401
    %v403 = vpop.xlane.xlu0 %402
    %v404 = vsub.f32 %v389, %v400
    %v405 = vsub.f32 %v394, %v403
    %v406 = vmul.f32 %v404, 1.442695
    %v407 = vpow.pop %v406
    %v408 = vmul.f32 %v405, 1.442695
    %v409 = vpow.pop %v408
    %v410 = vsel %vm397, %v407, 0.0
    %411 = vadd.xlane.f32.xlu0 %v410
    %v412 = vpop.xlane.xlu0 %411
    %v413 = vsel %vm397, %v409, 0.0
    %414 = vadd.xlane.f32.xlu0 %v413
    %v415 = vpop.xlane.xlu0 %414
    %v416 = vrcp.pop %v412
    %v417 = vrcp.pop %v415
    %v418 = vmul.f32 %v407, %v416
    %v419 = vmul.f32 %v409, %v417
    %420 = vrot.lane.b32.xlu0 %v299, 64
    %v421 = vpop.permute.xlu0 %420
    %422 = vrot.lane.b32.xlu0 %v304, 64
    %v423 = vpop.permute.xlu0 %422
    %v427 = vsel %vm397, %v418, 0
    %v430 = vsel %vm397, %v419, 0
    %432 = vmatprep.subr.mxu0 0.0
    %433 = vmatpush1.msra.mxu0 0.0
    %434 = vmatprep.subr.mxu0 0.0
    %435 = vmatpush1.msra.mxu0 0.0
    %436 = vmatprep.subr.mxu0 0.0
    %437 = vmatpush1.msra.mxu0 0.0
    %438 = vmatprep.subr.mxu0 0.0
    %439 = vmatpush1.msra.mxu0 0.0
    %440 = vmatprep.subr.mxu0 0.0
    %441 = vmatpush1.msra.mxu0 0.0
    %442 = vmatprep.subr.mxu0 0.0
    %443 = vmatpush1.msra.mxu0 0.0
    %444 = vmatprep.subr.mxu0 0.0
    %445 = vmatpush1.msra.mxu0 0.0
    %446 = vmatprep.subr.mxu0 0.0
    %447 = vmatpush1.msra.mxu0 0.0
    %448 = vmatprep.subr.mxu0 0.0
    %449 = vmatpush1.msra.mxu0 0.0
    %450 = vmatprep.subr.mxu0 0.0
    %451 = vmatpush1.msra.mxu0 0.0
    %452 = vmatprep.subr.mxu0 0.0
    %453 = vmatpush1.msra.mxu0 0.0
    %454 = vmatprep.subr.mxu0 0.0
    %455 = vmatpush1.msra.mxu0 0.0
    %456 = vmatprep.subr.mxu0 0.0
    %457 = vmatpush1.msra.mxu0 0.0
    %458 = vmatprep.subr.mxu0 0.0
    %459 = vmatpush1.msra.mxu0 0.0
    %460 = vmatprep.subr.mxu0 0.0
    %461 = vmatpush1.msra.mxu0 %v423
    %462 = vmatprep.subr.mxu0 0.0
    %463 = vmatpush1.msra.mxu0 %v421
    %464 = vmatprep.subr.mxu0 0.0
    %465 = vmatpush2.msra.mxu0 0.0
    %466 = vmatprep.subr.mxu0 0.0
    %467 = vmatpush2.msra.mxu0 0.0
    %468 = vmatprep.subr.mxu0 0.0
    %469 = vmatpush2.msra.mxu0 0.0
    %470 = vmatprep.subr.mxu0 0.0
    %471 = vmatpush2.msra.mxu0 0.0
    %472 = vmatprep.subr.mxu0 0.0
    %473 = vmatpush2.msra.mxu0 0.0
    %474 = vmatprep.subr.mxu0 0.0
    %475 = vmatpush2.msra.mxu0 0.0
    %476 = vmatprep.subr.mxu0 0.0
    %477 = vmatpush2.msra.mxu0 0.0
    %478 = vmatprep.subr.mxu0 0.0
    %479 = vmatpush2.msra.mxu0 0.0
    %480 = vmatprep.subr.mxu0 0.0
    %481 = vmatpush2.msra.mxu0 0.0
    %482 = vmatprep.subr.mxu0 0.0
    %483 = vmatpush2.msra.mxu0 0.0
    %484 = vmatprep.subr.mxu0 0.0
    %485 = vmatpush2.msra.mxu0 0.0
    %486 = vmatprep.subr.mxu0 0.0
    %487 = vmatpush2.msra.mxu0 0.0
    %488 = vmatprep.subr.mxu0 0.0
    %489 = vmatpush2.msra.mxu0 0.0
    %490 = vmatprep.subr.mxu0 0.0
    %491 = vmatpush2.msra.mxu0 0.0
    %492 = vmatprep.subr.mxu0 0.0
    %493 = vmatpush2.msra.mxu0 0.0
    %494 = vmatprep.subr.mxu0 0.0
    %495 = vmatpush2.msra.mxu0 0.0
    %496 = vmatprep.mubr.f32.mxu0 0.0
    %497 = vmatmul.mubr.f32.gmra.mxu0 %v427
    %v498 = vpop.f32.mrf.mxu0
    %v499 = vadd.f32 0.0, %v498
    %v500 = vpop.f32.mrf.mxu0
    %501 = vmatprep.mubr.f32.mxu0 0.0
    %502 = vmatmul.mubr.f32.gmra.mxu0 %v430
    %v503 = vpop.f32.mrf.mxu0
    %v504 = vadd.f32 0.0, %v503
    %v505 = vpop.f32.mrf.mxu0
    %506 = vdwg.mxu0
    %507 = vst.msk [vmem:[#allocation2] sm:$0xff] %vm313, %v499
    %508 = vst.msk [vmem:[#allocation2 + $0x8] sm:$0xff] %vm313, %v504
    %509 = vrot.lane.b32.xlu0 %v299, 120
    %v510 = vpop.permute.xlu0 %509
    %511 = vrot.lane.b32.xlu0 %v304, 120
    %v512 = vpop.permute.xlu0 %511
    %513 = vrot.lane.b32.xlu0 %v299, 88
    %v514 = vpop.permute.xlu0 %513
    %515 = vrot.lane.b32.xlu0 %v304, 88
    %v516 = vpop.permute.xlu0 %515
    %v517 = vsel %vm313, %v510, 0
    %v519 = vsel %vm313, %v512, 0
    %v521 = vsel %vm313, %v514, 0
    %v523 = vsel %vm313, %v516, 0
    %525 = vmatprep.subr.mxu0 0.0
    %526 = vmatpush1.xpose.msra.mxu0 0.0
    %527 = vmatprep.subr.mxu0 0.0
    %528 = vmatpush1.xpose.msra.mxu0 0.0
    %529 = vmatprep.subr.mxu0 0.0
    %530 = vmatpush1.xpose.msra.mxu0 0.0
    %531 = vmatprep.subr.mxu0 0.0
    %532 = vmatpush1.xpose.msra.mxu0 0.0
    %533 = vmatprep.subr.mxu0 0.0
    %534 = vmatpush1.xpose.msra.mxu0 0.0
    %535 = vmatprep.subr.mxu0 0.0
    %536 = vmatpush1.xpose.msra.mxu0 0.0
    %537 = vmatprep.subr.mxu0 0.0
    %538 = vmatpush1.xpose.msra.mxu0 0.0
    %539 = vmatprep.subr.mxu0 0.0
    %540 = vmatpush1.xpose.msra.mxu0 0.0
    %541 = vmatprep.subr.mxu0 0.0
    %542 = vmatpush1.xpose.msra.mxu0 0.0
    %543 = vmatprep.subr.mxu0 0.0
    %544 = vmatpush1.xpose.msra.mxu0 0.0
    %545 = vmatprep.subr.mxu0 0.0
    %546 = vmatpush1.xpose.msra.mxu0 0.0
    %547 = vmatprep.subr.mxu0 0.0
    %548 = vmatpush1.xpose.msra.mxu0 0.0
    %549 = vmatprep.subr.mxu0 0.0
    %550 = vmatpush1.xpose.msra.mxu0 0.0
    %551 = vmatprep.subr.mxu0 0.0
    %552 = vmatpush1.xpose.msra.mxu0 0.0
    %553 = vmatprep.subr.mxu0 0.0
    %554 = vmatpush1.xpose.msra.mxu0 %v523
    %555 = vmatprep.subr.mxu0 0.0
    %556 = vmatpush1.xpose.msra.mxu0 %v521
    %557 = vmatprep.subr.mxu0 0.0
    %558 = vmatpush2.xpose.msra.mxu0 0.0
    %559 = vmatprep.subr.mxu0 0.0
    %560 = vmatpush2.xpose.msra.mxu0 0.0
    %561 = vmatprep.subr.mxu0 0.0
    %562 = vmatpush2.xpose.msra.mxu0 0.0
    %563 = vmatprep.subr.mxu0 0.0
    %564 = vmatpush2.xpose.msra.mxu0 0.0
    %565 = vmatprep.subr.mxu0 0.0
    %566 = vmatpush2.xpose.msra.mxu0 0.0
    %567 = vmatprep.subr.mxu0 0.0
    %568 = vmatpush2.xpose.msra.mxu0 0.0
    %569 = vmatprep.subr.mxu0 0.0
    %570 = vmatpush2.xpose.msra.mxu0 0.0
    %571 = vmatprep.subr.mxu0 0.0
    %572 = vmatpush2.xpose.msra.mxu0 0.0
    %573 = vmatprep.subr.mxu0 0.0
    %574 = vmatpush2.xpose.msra.mxu0 0.0
    %575 = vmatprep.subr.mxu0 0.0
    %576 = vmatpush2.xpose.msra.mxu0 0.0
    %577 = vmatprep.subr.mxu0 0.0
    %578 = vmatpush2.xpose.msra.mxu0 0.0
    %579 = vmatprep.subr.mxu0 0.0
    %580 = vmatpush2.xpose.msra.mxu0 0.0
    %581 = vmatprep.subr.mxu0 0.0
    %582 = vmatpush2.xpose.msra.mxu0 0.0
    %583 = vmatprep.subr.mxu0 0.0
    %584 = vmatpush2.xpose.msra.mxu0 0.0
    %585 = vmatprep.subr.mxu0 0.0
    %586 = vmatpush2.xpose.msra.mxu0 0.0
    %587 = vmatprep.subr.mxu0 0.0
    %588 = vmatpush2.xpose.msra.mxu0 0.0
    %589 = vmatprep.mubr.f32.mxu0 0.0
    %590 = vmatmul.mubr.f32.gmra.mxu0 %v517
    %v591 = vpop.f32.mrf.mxu0
    %v592 = vadd.f32 %v216, %v591
    %v593 = vpop.f32.mrf.mxu0
    %594 = vmatprep.mubr.f32.mxu0 0.0
    %595 = vmatmul.mubr.f32.gmra.mxu0 %v519
    %v596 = vpop.f32.mrf.mxu0
    %v597 = vadd.f32 %v217, %v596
    %v598 = vpop.f32.mrf.mxu0
    %599 = vdwg.mxu0
    %v600 = vsel %vm397, %v592, -inf
    %601 = vmax.xlane.f32.xlu0 %v600
    %v602 = vpop.xlane.xlu0 %601
    %v603 = vsel %vm397, %v597, -inf
    %604 = vmax.xlane.f32.xlu0 %v603
    %v605 = vpop.xlane.xlu0 %604
    %v606 = vsub.f32 %v592, %v602
    %v607 = vsub.f32 %v597, %v605
    %v608 = vmul.f32 %v606, 1.442695
    %v609 = vpow.pop %v608
    %v610 = vmul.f32 %v607, 1.442695
    %v611 = vpow.pop %v610
    %v612 = vsel %vm397, %v609, 0.0
    %613 = vadd.xlane.f32.xlu0 %v612
    %v614 = vpop.xlane.xlu0 %613
    %v615 = vsel %vm397, %v611, 0.0
    %616 = vadd.xlane.f32.xlu0 %v615
    %v617 = vpop.xlane.xlu0 %616
    %v618 = vrcp.pop %v614
    %v619 = vrcp.pop %v617
    %v620 = vmul.f32 %v609, %v618
    %v621 = vmul.f32 %v611, %v619
    %622 = vrot.lane.b32.xlu0 %v299, 56
    %v623 = vpop.permute.xlu0 %622
    %624 = vrot.lane.b32.xlu0 %v304, 56
    %v625 = vpop.permute.xlu0 %624
    %v629 = vsel %vm397, %v620, 0
    %v632 = vsel %vm397, %v621, 0
    %634 = vmatprep.subr.mxu0 0.0
    %635 = vmatpush1.msra.mxu0 0.0
    %636 = vmatprep.subr.mxu0 0.0
    %637 = vmatpush1.msra.mxu0 0.0
    %638 = vmatprep.subr.mxu0 0.0
    %639 = vmatpush1.msra.mxu0 0.0
    %640 = vmatprep.subr.mxu0 0.0
    %641 = vmatpush1.msra.mxu0 0.0
    %642 = vmatprep.subr.mxu0 0.0
    %643 = vmatpush1.msra.mxu0 0.0
    %644 = vmatprep.subr.mxu0 0.0
    %645 = vmatpush1.msra.mxu0 0.0
    %646 = vmatprep.subr.mxu0 0.0
    %647 = vmatpush1.msra.mxu0 0.0
    %648 = vmatprep.subr.mxu0 0.0
    %649 = vmatpush1.msra.mxu0 0.0
    %650 = vmatprep.subr.mxu0 0.0
    %651 = vmatpush1.msra.mxu0 0.0
    %652 = vmatprep.subr.mxu0 0.0
    %653 = vmatpush1.msra.mxu0 0.0
    %654 = vmatprep.subr.mxu0 0.0
    %655 = vmatpush1.msra.mxu0 0.0
    %656 = vmatprep.subr.mxu0 0.0
    %657 = vmatpush1.msra.mxu0 0.0
    %658 = vmatprep.subr.mxu0 0.0
    %659 = vmatpush1.msra.mxu0 0.0
    %660 = vmatprep.subr.mxu0 0.0
    %661 = vmatpush1.msra.mxu0 0.0
    %662 = vmatprep.subr.mxu0 0.0
    %663 = vmatpush1.msra.mxu0 %v625
    %664 = vmatprep.subr.mxu0 0.0
    %665 = vmatpush1.msra.mxu0 %v623
    %666 = vmatprep.subr.mxu0 0.0
    %667 = vmatpush2.msra.mxu0 0.0
    %668 = vmatprep.subr.mxu0 0.0
    %669 = vmatpush2.msra.mxu0 0.0
    %670 = vmatprep.subr.mxu0 0.0
    %671 = vmatpush2.msra.mxu0 0.0
    %672 = vmatprep.subr.mxu0 0.0
    %673 = vmatpush2.msra.mxu0 0.0
    %674 = vmatprep.subr.mxu0 0.0
    %675 = vmatpush2.msra.mxu0 0.0
    %676 = vmatprep.subr.mxu0 0.0
    %677 = vmatpush2.msra.mxu0 0.0
    %678 = vmatprep.subr.mxu0 0.0
    %679 = vmatpush2.msra.mxu0 0.0
    %680 = vmatprep.subr.mxu0 0.0
    %681 = vmatpush2.msra.mxu0 0.0
    %682 = vmatprep.subr.mxu0 0.0
    %683 = vmatpush2.msra.mxu0 0.0
    %684 = vmatprep.subr.mxu0 0.0
    %685 = vmatpush2.msra.mxu0 0.0
    %686 = vmatprep.subr.mxu0 0.0
    %687 = vmatpush2.msra.mxu0 0.0
    %688 = vmatprep.subr.mxu0 0.0
    %689 = vmatpush2.msra.mxu0 0.0
    %690 = vmatprep.subr.mxu0 0.0
    %691 = vmatpush2.msra.mxu0 0.0
    %692 = vmatprep.subr.mxu0 0.0
    %693 = vmatpush2.msra.mxu0 0.0
    %694 = vmatprep.subr.mxu0 0.0
    %695 = vmatpush2.msra.mxu0 0.0
    %696 = vmatprep.subr.mxu0 0.0
    %697 = vmatpush2.msra.mxu0 0.0
    %698 = vmatprep.mubr.f32.mxu0 0.0
    %699 = vmatmul.mubr.f32.gmra.mxu0 %v629
    %v700 = vpop.f32.mrf.mxu0
    %v701 = vadd.f32 0.0, %v700
    %v702 = vpop.f32.mrf.mxu0
    %703 = vmatprep.mubr.f32.mxu0 0.0
    %704 = vmatmul.mubr.f32.gmra.mxu0 %v632
    %v705 = vpop.f32.mrf.mxu0
    %v706 = vadd.f32 0.0, %v705
    %v707 = vpop.f32.mrf.mxu0
    %708 = vdwg.mxu0
    %711 = vrot.lane.b32.xlu0 %v701, 8
    %v712 = vpop.permute.xlu0 %711
    %713 = vrot.lane.b32.xlu0 %v706, 8
    %v714 = vpop.permute.xlu0 %713
    %vm717 = vcmask 130112
    %718 = vst.msk [vmem:[#allocation2] sm:$0xff] %vm717, %v712
    %719 = vst.msk [vmem:[#allocation2 + $0x8] sm:$0xff] %vm717, %v714
    %720 = vrot.lane.b32.xlu0 %v299, 112
    %v721 = vpop.permute.xlu0 %720
    %722 = vrot.lane.b32.xlu0 %v304, 112
    %v723 = vpop.permute.xlu0 %722
    %724 = vrot.lane.b32.xlu0 %v299, 80
    %v725 = vpop.permute.xlu0 %724
    %726 = vrot.lane.b32.xlu0 %v304, 80
    %v727 = vpop.permute.xlu0 %726
    %v728 = vsel %vm313, %v721, 0
    %v730 = vsel %vm313, %v723, 0
    %v732 = vsel %vm313, %v725, 0
    %v734 = vsel %vm313, %v727, 0
    %736 = vmatprep.subr.mxu0 0.0
    %737 = vmatpush1.xpose.msra.mxu0 0.0
    %738 = vmatprep.subr.mxu0 0.0
    %739 = vmatpush1.xpose.msra.mxu0 0.0
    %740 = vmatprep.subr.mxu0 0.0
    %741 = vmatpush1.xpose.msra.mxu0 0.0
    %742 = vmatprep.subr.mxu0 0.0
    %743 = vmatpush1.xpose.msra.mxu0 0.0
    %744 = vmatprep.subr.mxu0 0.0
    %745 = vmatpush1.xpose.msra.mxu0 0.0
    %746 = vmatprep.subr.mxu0 0.0
    %747 = vmatpush1.xpose.msra.mxu0 0.0
    %748 = vmatprep.subr.mxu0 0.0
    %749 = vmatpush1.xpose.msra.mxu0 0.0
    %750 = vmatprep.subr.mxu0 0.0
    %751 = vmatpush1.xpose.msra.mxu0 0.0
    %752 = vmatprep.subr.mxu0 0.0
    %753 = vmatpush1.xpose.msra.mxu0 0.0
    %754 = vmatprep.subr.mxu0 0.0
    %755 = vmatpush1.xpose.msra.mxu0 0.0
    %756 = vmatprep.subr.mxu0 0.0
    %757 = vmatpush1.xpose.msra.mxu0 0.0
    %758 = vmatprep.subr.mxu0 0.0
    %759 = vmatpush1.xpose.msra.mxu0 0.0
    %760 = vmatprep.subr.mxu0 0.0
    %761 = vmatpush1.xpose.msra.mxu0 0.0
    %762 = vmatprep.subr.mxu0 0.0
    %763 = vmatpush1.xpose.msra.mxu0 0.0
    %764 = vmatprep.subr.mxu0 0.0
    %765 = vmatpush1.xpose.msra.mxu0 %v734
    %766 = vmatprep.subr.mxu0 0.0
    %767 = vmatpush1.xpose.msra.mxu0 %v732
    %768 = vmatprep.subr.mxu0 0.0
    %769 = vmatpush2.xpose.msra.mxu0 0.0
    %770 = vmatprep.subr.mxu0 0.0
    %771 = vmatpush2.xpose.msra.mxu0 0.0
    %772 = vmatprep.subr.mxu0 0.0
    %773 = vmatpush2.xpose.msra.mxu0 0.0
    %774 = vmatprep.subr.mxu0 0.0
    %775 = vmatpush2.xpose.msra.mxu0 0.0
    %776 = vmatprep.subr.mxu0 0.0
    %777 = vmatpush2.xpose.msra.mxu0 0.0
    %778 = vmatprep.subr.mxu0 0.0
    %779 = vmatpush2.xpose.msra.mxu0 0.0
    %780 = vmatprep.subr.mxu0 0.0
    %781 = vmatpush2.xpose.msra.mxu0 0.0
    %782 = vmatprep.subr.mxu0 0.0
    %783 = vmatpush2.xpose.msra.mxu0 0.0
    %784 = vmatprep.subr.mxu0 0.0
    %785 = vmatpush2.xpose.msra.mxu0 0.0
    %786 = vmatprep.subr.mxu0 0.0
    %787 = vmatpush2.xpose.msra.mxu0 0.0
    %788 = vmatprep.subr.mxu0 0.0
    %789 = vmatpush2.xpose.msra.mxu0 0.0
    %790 = vmatprep.subr.mxu0 0.0
    %791 = vmatpush2.xpose.msra.mxu0 0.0
    %792 = vmatprep.subr.mxu0 0.0
    %793 = vmatpush2.xpose.msra.mxu0 0.0
    %794 = vmatprep.subr.mxu0 0.0
    %795 = vmatpush2.xpose.msra.mxu0 0.0
    %796 = vmatprep.subr.mxu0 0.0
    %797 = vmatpush2.xpose.msra.mxu0 0.0
    %798 = vmatprep.subr.mxu0 0.0
    %799 = vmatpush2.xpose.msra.mxu0 0.0
    %800 = vmatprep.mubr.f32.mxu0 0.0
    %801 = vmatmul.mubr.f32.gmra.mxu0 %v728
    %v802 = vpop.f32.mrf.mxu0
    %v803 = vadd.f32 %v216, %v802
    %v804 = vpop.f32.mrf.mxu0
    %805 = vmatprep.mubr.f32.mxu0 0.0
    %806 = vmatmul.mubr.f32.gmra.mxu0 %v730
    %v807 = vpop.f32.mrf.mxu0
    %v808 = vadd.f32 %v217, %v807
    %v809 = vpop.f32.mrf.mxu0
    %810 = vdwg.mxu0
    %v811 = vsel %vm397, %v803, -inf
    %812 = vmax.xlane.f32.xlu0 %v811
    %v813 = vpop.xlane.xlu0 %812
    %v814 = vsel %vm397, %v808, -inf
    %815 = vmax.xlane.f32.xlu0 %v814
    %v816 = vpop.xlane.xlu0 %815
    %v817 = vsub.f32 %v803, %v813
    %v818 = vsub.f32 %v808, %v816
    %v819 = vmul.f32 %v817, 1.442695
    %v820 = vpow.pop %v819
    %v821 = vmul.f32 %v818, 1.442695
    %v822 = vpow.pop %v821
    %v823 = vsel %vm397, %v820, 0.0
    %824 = vadd.xlane.f32.xlu0 %v823
    %v825 = vpop.xlane.xlu0 %824
    %v826 = vsel %vm397, %v822, 0.0
    %827 = vadd.xlane.f32.xlu0 %v826
    %v828 = vpop.xlane.xlu0 %827
    %v829 = vrcp.pop %v825
    %v830 = vrcp.pop %v828
    %v831 = vmul.f32 %v820, %v829
    %v832 = vmul.f32 %v822, %v830
    %833 = vrot.lane.b32.xlu0 %v299, 48
    %v834 = vpop.permute.xlu0 %833
    %835 = vrot.lane.b32.xlu0 %v304, 48
    %v836 = vpop.permute.xlu0 %835
    %v840 = vsel %vm397, %v831, 0
    %v843 = vsel %vm397, %v832, 0
    %845 = vmatprep.subr.mxu0 0.0
    %846 = vmatpush1.msra.mxu0 0.0
    %847 = vmatprep.subr.mxu0 0.0
    %848 = vmatpush1.msra.mxu0 0.0
    %849 = vmatprep.subr.mxu0 0.0
    %850 = vmatpush1.msra.mxu0 0.0
    %851 = vmatprep.subr.mxu0 0.0
    %852 = vmatpush1.msra.mxu0 0.0
    %853 = vmatprep.subr.mxu0 0.0
    %854 = vmatpush1.msra.mxu0 0.0
    %855 = vmatprep.subr.mxu0 0.0
    %856 = vmatpush1.msra.mxu0 0.0
    %857 = vmatprep.subr.mxu0 0.0
    %858 = vmatpush1.msra.mxu0 0.0
    %859 = vmatprep.subr.mxu0 0.0
    %860 = vmatpush1.msra.mxu0 0.0
    %861 = vmatprep.subr.mxu0 0.0
    %862 = vmatpush1.msra.mxu0 0.0
    %863 = vmatprep.subr.mxu0 0.0
    %864 = vmatpush1.msra.mxu0 0.0
    %865 = vmatprep.subr.mxu0 0.0
    %866 = vmatpush1.msra.mxu0 0.0
    %867 = vmatprep.subr.mxu0 0.0
    %868 = vmatpush1.msra.mxu0 0.0
    %869 = vmatprep.subr.mxu0 0.0
    %870 = vmatpush1.msra.mxu0 0.0
    %871 = vmatprep.subr.mxu0 0.0
    %872 = vmatpush1.msra.mxu0 0.0
    %873 = vmatprep.subr.mxu0 0.0
    %874 = vmatpush1.msra.mxu0 %v836
    %875 = vmatprep.subr.mxu0 0.0
    %876 = vmatpush1.msra.mxu0 %v834
    %877 = vmatprep.subr.mxu0 0.0
    %878 = vmatpush2.msra.mxu0 0.0
    %879 = vmatprep.subr.mxu0 0.0
    %880 = vmatpush2.msra.mxu0 0.0
    %881 = vmatprep.subr.mxu0 0.0
    %882 = vmatpush2.msra.mxu0 0.0
    %883 = vmatprep.subr.mxu0 0.0
    %884 = vmatpush2.msra.mxu0 0.0
    %885 = vmatprep.subr.mxu0 0.0
    %886 = vmatpush2.msra.mxu0 0.0
    %887 = vmatprep.subr.mxu0 0.0
    %888 = vmatpush2.msra.mxu0 0.0
    %889 = vmatprep.subr.mxu0 0.0
    %890 = vmatpush2.msra.mxu0 0.0
    %891 = vmatprep.subr.mxu0 0.0
    %892 = vmatpush2.msra.mxu0 0.0
    %893 = vmatprep.subr.mxu0 0.0
    %894 = vmatpush2.msra.mxu0 0.0
    %895 = vmatprep.subr.mxu0 0.0
    %896 = vmatpush2.msra.mxu0 0.0
    %897 = vmatprep.subr.mxu0 0.0
    %898 = vmatpush2.msra.mxu0 0.0
    %899 = vmatprep.subr.mxu0 0.0
    %900 = vmatpush2.msra.mxu0 0.0
    %901 = vmatprep.subr.mxu0 0.0
    %902 = vmatpush2.msra.mxu0 0.0
    %903 = vmatprep.subr.mxu0 0.0
    %904 = vmatpush2.msra.mxu0 0.0
    %905 = vmatprep.subr.mxu0 0.0
    %906 = vmatpush2.msra.mxu0 0.0
    %907 = vmatprep.subr.mxu0 0.0
    %908 = vmatpush2.msra.mxu0 0.0
    %909 = vmatprep.mubr.f32.mxu0 0.0
    %910 = vmatmul.mubr.f32.gmra.mxu0 %v840
    %v911 = vpop.f32.mrf.mxu0
    %v912 = vadd.f32 0.0, %v911
    %v913 = vpop.f32.mrf.mxu0
    %914 = vmatprep.mubr.f32.mxu0 0.0
    %915 = vmatmul.mubr.f32.gmra.mxu0 %v843
    %v916 = vpop.f32.mrf.mxu0
    %v917 = vadd.f32 0.0, %v916
    %v918 = vpop.f32.mrf.mxu0
    %919 = vdwg.mxu0
    %922 = vrot.lane.b32.xlu0 %v912, 16
    %v923 = vpop.permute.xlu0 %922
    %924 = vrot.lane.b32.xlu0 %v917, 16
    %v925 = vpop.permute.xlu0 %924
    %vm928 = vcmask 195712
    %929 = vst.msk [vmem:[#allocation2] sm:$0xff] %vm928, %v923
    %930 = vst.msk [vmem:[#allocation2 + $0x8] sm:$0xff] %vm928, %v925
    %931 = vrot.lane.b32.xlu0 %v299, 104
    %v932 = vpop.permute.xlu0 %931
    %933 = vrot.lane.b32.xlu0 %v304, 104
    %v934 = vpop.permute.xlu0 %933
    %935 = vrot.lane.b32.xlu0 %v299, 72
    %v936 = vpop.permute.xlu0 %935
    %937 = vrot.lane.b32.xlu0 %v304, 72
    %v938 = vpop.permute.xlu0 %937
    %v939 = vsel %vm313, %v932, 0
    %v941 = vsel %vm313, %v934, 0
    %v943 = vsel %vm313, %v936, 0
    %v945 = vsel %vm313, %v938, 0
    %947 = vmatprep.subr.mxu0 0.0
    %948 = vmatpush1.xpose.msra.mxu0 0.0
    %949 = vmatprep.subr.mxu0 0.0
    %950 = vmatpush1.xpose.msra.mxu0 0.0
    %951 = vmatprep.subr.mxu0 0.0
    %952 = vmatpush1.xpose.msra.mxu0 0.0
    %953 = vmatprep.subr.mxu0 0.0
    %954 = vmatpush1.xpose.msra.mxu0 0.0
    %955 = vmatprep.subr.mxu0 0.0
    %956 = vmatpush1.xpose.msra.mxu0 0.0
    %957 = vmatprep.subr.mxu0 0.0
    %958 = vmatpush1.xpose.msra.mxu0 0.0
    %959 = vmatprep.subr.mxu0 0.0
    %960 = vmatpush1.xpose.msra.mxu0 0.0
    %961 = vmatprep.subr.mxu0 0.0
    %962 = vmatpush1.xpose.msra.mxu0 0.0
    %963 = vmatprep.subr.mxu0 0.0
    %964 = vmatpush1.xpose.msra.mxu0 0.0
    %965 = vmatprep.subr.mxu0 0.0
    %966 = vmatpush1.xpose.msra.mxu0 0.0
    %967 = vmatprep.subr.mxu0 0.0
    %968 = vmatpush1.xpose.msra.mxu0 0.0
    %969 = vmatprep.subr.mxu0 0.0
    %970 = vmatpush1.xpose.msra.mxu0 0.0
    %971 = vmatprep.subr.mxu0 0.0
    %972 = vmatpush1.xpose.msra.mxu0 0.0
    %973 = vmatprep.subr.mxu0 0.0
    %974 = vmatpush1.xpose.msra.mxu0 0.0
    %975 = vmatprep.subr.mxu0 0.0
    %976 = vmatpush1.xpose.msra.mxu0 %v945
    %977 = vmatprep.subr.mxu0 0.0
    %978 = vmatpush1.xpose.msra.mxu0 %v943
    %979 = vmatprep.subr.mxu0 0.0
    %980 = vmatpush2.xpose.msra.mxu0 0.0
    %981 = vmatprep.subr.mxu0 0.0
    %982 = vmatpush2.xpose.msra.mxu0 0.0
    %983 = vmatprep.subr.mxu0 0.0
    %984 = vmatpush2.xpose.msra.mxu0 0.0
    %985 = vmatprep.subr.mxu0 0.0
    %986 = vmatpush2.xpose.msra.mxu0 0.0
    %987 = vmatprep.subr.mxu0 0.0
    %988 = vmatpush2.xpose.msra.mxu0 0.0
    %989 = vmatprep.subr.mxu0 0.0
    %990 = vmatpush2.xpose.msra.mxu0 0.0
    %991 = vmatprep.subr.mxu0 0.0
    %992 = vmatpush2.xpose.msra.mxu0 0.0
    %993 = vmatprep.subr.mxu0 0.0
    %994 = vmatpush2.xpose.msra.mxu0 0.0
    %995 = vmatprep.subr.mxu0 0.0
    %996 = vmatpush2.xpose.msra.mxu0 0.0
    %997 = vmatprep.subr.mxu0 0.0
    %998 = vmatpush2.xpose.msra.mxu0 0.0
    %999 = vmatprep.subr.mxu0 0.0
    %1000 = vmatpush2.xpose.msra.mxu0 0.0
    %1001 = vmatprep.subr.mxu0 0.0
    %1002 = vmatpush2.xpose.msra.mxu0 0.0
    %1003 = vmatprep.subr.mxu0 0.0
    %1004 = vmatpush2.xpose.msra.mxu0 0.0
    %1005 = vmatprep.subr.mxu0 0.0
    %1006 = vmatpush2.xpose.msra.mxu0 0.0
    %1007 = vmatprep.subr.mxu0 0.0
    %1008 = vmatpush2.xpose.msra.mxu0 0.0
    %1009 = vmatprep.subr.mxu0 0.0
    %1010 = vmatpush2.xpose.msra.mxu0 0.0
    %1011 = vmatprep.mubr.f32.mxu0 0.0
    %1012 = vmatmul.mubr.f32.gmra.mxu0 %v939
    %v1013 = vpop.f32.mrf.mxu0
    %v1014 = vadd.f32 %v216, %v1013
    %v1015 = vpop.f32.mrf.mxu0
    %1016 = vmatprep.mubr.f32.mxu0 0.0
    %1017 = vmatmul.mubr.f32.gmra.mxu0 %v941
    %v1018 = vpop.f32.mrf.mxu0
    %v1019 = vadd.f32 %v217, %v1018
    %v1020 = vpop.f32.mrf.mxu0
    %1021 = vdwg.mxu0
    %v1022 = vsel %vm397, %v1014, -inf
    %1023 = vmax.xlane.f32.xlu0 %v1022
    %v1024 = vpop.xlane.xlu0 %1023
    %v1025 = vsel %vm397, %v1019, -inf
    %1026 = vmax.xlane.f32.xlu0 %v1025
    %v1027 = vpop.xlane.xlu0 %1026
    %v1028 = vsub.f32 %v1014, %v1024
    %v1029 = vsub.f32 %v1019, %v1027
    %v1030 = vmul.f32 %v1028, 1.442695
    %v1031 = vpow.pop %v1030
    %v1032 = vmul.f32 %v1029, 1.442695
    %v1033 = vpow.pop %v1032
    %v1034 = vsel %vm397, %v1031, 0.0
    %1035 = vadd.xlane.f32.xlu0 %v1034
    %v1036 = vpop.xlane.xlu0 %1035
    %v1037 = vsel %vm397, %v1033, 0.0
    %1038 = vadd.xlane.f32.xlu0 %v1037
    %v1039 = vpop.xlane.xlu0 %1038
    %v1040 = vrcp.pop %v1036
    %v1041 = vrcp.pop %v1039
    %v1042 = vmul.f32 %v1031, %v1040
    %v1043 = vmul.f32 %v1033, %v1041
    %1044 = vrot.lane.b32.xlu0 %v299, 40
    %v1045 = vpop.permute.xlu0 %1044
    %1046 = vrot.lane.b32.xlu0 %v304, 40
    %v1047 = vpop.permute.xlu0 %1046
    %v1051 = vsel %vm397, %v1042, 0
    %v1054 = vsel %vm397, %v1043, 0
    %1056 = vmatprep.subr.mxu0 0.0
    %1057 = vmatpush1.msra.mxu0 0.0
    %1058 = vmatprep.subr.mxu0 0.0
    %1059 = vmatpush1.msra.mxu0 0.0
    %1060 = vmatprep.subr.mxu0 0.0
    %1061 = vmatpush1.msra.mxu0 0.0
    %1062 = vmatprep.subr.mxu0 0.0
    %1063 = vmatpush1.msra.mxu0 0.0
    %1064 = vmatprep.subr.mxu0 0.0
    %1065 = vmatpush1.msra.mxu0 0.0
    %1066 = vmatprep.subr.mxu0 0.0
    %1067 = vmatpush1.msra.mxu0 0.0
    %1068 = vmatprep.subr.mxu0 0.0
    %1069 = vmatpush1.msra.mxu0 0.0
    %1070 = vmatprep.subr.mxu0 0.0
    %1071 = vmatpush1.msra.mxu0 0.0
    %1072 = vmatprep.subr.mxu0 0.0
    %1073 = vmatpush1.msra.mxu0 0.0
    %1074 = vmatprep.subr.mxu0 0.0
    %1075 = vmatpush1.msra.mxu0 0.0
    %1076 = vmatprep.subr.mxu0 0.0
    %1077 = vmatpush1.msra.mxu0 0.0
    %1078 = vmatprep.subr.mxu0 0.0
    %1079 = vmatpush1.msra.mxu0 0.0
    %1080 = vmatprep.subr.mxu0 0.0
    %1081 = vmatpush1.msra.mxu0 0.0
    %1082 = vmatprep.subr.mxu0 0.0
    %1083 = vmatpush1.msra.mxu0 0.0
    %1084 = vmatprep.subr.mxu0 0.0
    %1085 = vmatpush1.msra.mxu0 %v1047
    %1086 = vmatprep.subr.mxu0 0.0
    %1087 = vmatpush1.msra.mxu0 %v1045
    %1088 = vmatprep.subr.mxu0 0.0
    %1089 = vmatpush2.msra.mxu0 0.0
    %1090 = vmatprep.subr.mxu0 0.0
    %1091 = vmatpush2.msra.mxu0 0.0
    %1092 = vmatprep.subr.mxu0 0.0
    %1093 = vmatpush2.msra.mxu0 0.0
    %1094 = vmatprep.subr.mxu0 0.0
    %1095 = vmatpush2.msra.mxu0 0.0
    %1096 = vmatprep.subr.mxu0 0.0
    %1097 = vmatpush2.msra.mxu0 0.0
    %1098 = vmatprep.subr.mxu0 0.0
    %1099 = vmatpush2.msra.mxu0 0.0
    %1100 = vmatprep.subr.mxu0 0.0
    %1101 = vmatpush2.msra.mxu0 0.0
    %1102 = vmatprep.subr.mxu0 0.0
    %1103 = vmatpush2.msra.mxu0 0.0
    %1104 = vmatprep.subr.mxu0 0.0
    %1105 = vmatpush2.msra.mxu0 0.0
    %1106 = vmatprep.subr.mxu0 0.0
    %1107 = vmatpush2.msra.mxu0 0.0
    %1108 = vmatprep.subr.mxu0 0.0
    %1109 = vmatpush2.msra.mxu0 0.0
    %1110 = vmatprep.subr.mxu0 0.0
    %1111 = vmatpush2.msra.mxu0 0.0
    %1112 = vmatprep.subr.mxu0 0.0
    %1113 = vmatpush2.msra.mxu0 0.0
    %1114 = vmatprep.subr.mxu0 0.0
    %1115 = vmatpush2.msra.mxu0 0.0
    %1116 = vmatprep.subr.mxu0 0.0
    %1117 = vmatpush2.msra.mxu0 0.0
    %1118 = vmatprep.subr.mxu0 0.0
    %1119 = vmatpush2.msra.mxu0 0.0
    %1120 = vmatprep.mubr.f32.mxu0 0.0
    %1121 = vmatmul.mubr.f32.gmra.mxu0 %v1051
    %v1122 = vpop.f32.mrf.mxu0
    %v1123 = vadd.f32 0.0, %v1122
    %v1124 = vpop.f32.mrf.mxu0
    %1125 = vmatprep.mubr.f32.mxu0 0.0
    %1126 = vmatmul.mubr.f32.gmra.mxu0 %v1054
    %v1127 = vpop.f32.mrf.mxu0
    %v1128 = vadd.f32 0.0, %v1127
    %v1129 = vpop.f32.mrf.mxu0
    %1130 = vdwg.mxu0
    %1133 = vrot.lane.b32.xlu0 %v1123, 24
    %v1134 = vpop.permute.xlu0 %1133
    %1135 = vrot.lane.b32.xlu0 %v1128, 24
    %v1136 = vpop.permute.xlu0 %1135
    %vm1139 = vcmask 261312
    %1140 = vst.msk [vmem:[#allocation2] sm:$0xff] %vm1139, %v1134
    %1141 = vst.msk [vmem:[#allocation2 + $0x8] sm:$0xff] %vm1139, %v1136
    %v1142 = vld [vmem:[#allocation2] sm:$0xff]
    %v1143 = vld [vmem:[#allocation2 + $0x8] sm:$0xff]
    %v1144 = vld [vmem:[%s4] sm:$0xff]
    %v1145 = vld [vmem:[%s4 + $0x8] sm:$0xff]
    %v1146 = vld [vmem:[%s4 + $0x10] sm:$0xff]
    %v1147 = vld [vmem:[%s4 + $0x18] sm:$0xff]
    %v1148 = vlaneseq
    %v1149 = vshrl.u32 %v1148, 7
    %v1150 = vsub.s32 3, %v1149
    %v1151 = vrot.slane %v30, %v1150
    %v1153 = vsel %vm149, %v1142, 0
    %v1156 = vsel %vm149, %v1143, 0
    %1158 = vmatprep.subr.mxu0 0.0
    %1159 = vmatpush1.msra.mxu0 0.0
    %1160 = vmatprep.subr.mxu0 0.0
    %1161 = vmatpush1.msra.mxu0 0.0
    %1162 = vmatprep.subr.mxu0 0.0
    %1163 = vmatpush1.msra.mxu0 0.0
    %1164 = vmatprep.subr.mxu0 0.0
    %1165 = vmatpush1.msra.mxu0 0.0
    %1166 = vmatprep.subr.mxu0 0.0
    %1167 = vmatpush1.msra.mxu0 0.0
    %1168 = vmatprep.subr.mxu0 0.0
    %1169 = vmatpush1.msra.mxu0 0.0
    %1170 = vmatprep.subr.mxu0 0.0
    %1171 = vmatpush1.msra.mxu0 0.0
    %1172 = vmatprep.subr.mxu0 0.0
    %1173 = vmatpush1.msra.mxu0 0.0
    %1174 = vmatprep.subr.mxu0 0.0
    %1175 = vmatpush1.msra.mxu0 0.0
    %1176 = vmatprep.subr.mxu0 0.0
    %1177 = vmatpush1.msra.mxu0 0.0
    %1178 = vmatprep.subr.mxu0 0.0
    %1179 = vmatpush1.msra.mxu0 0.0
    %1180 = vmatprep.subr.mxu0 0.0
    %1181 = vmatpush1.msra.mxu0 0.0
    %1182 = vmatprep.subr.mxu0 0.0
    %1183 = vmatpush1.msra.mxu0 %v1147
    %1184 = vmatprep.subr.mxu0 0.0
    %1185 = vmatpush1.msra.mxu0 %v1146
    %1186 = vmatprep.subr.mxu0 0.0
    %1187 = vmatpush1.msra.mxu0 %v1145
    %1188 = vmatprep.subr.mxu0 0.0
    %1189 = vmatpush1.msra.mxu0 %v1144
    %1190 = vmatprep.subr.mxu0 0.0
    %1191 = vmatpush2.msra.mxu0 0.0
    %1192 = vmatprep.subr.mxu0 0.0
    %1193 = vmatpush2.msra.mxu0 0.0
    %1194 = vmatprep.subr.mxu0 0.0
    %1195 = vmatpush2.msra.mxu0 0.0
    %1196 = vmatprep.subr.mxu0 0.0
    %1197 = vmatpush2.msra.mxu0 0.0
    %1198 = vmatprep.subr.mxu0 0.0
    %1199 = vmatpush2.msra.mxu0 0.0
    %1200 = vmatprep.subr.mxu0 0.0
    %1201 = vmatpush2.msra.mxu0 0.0
    %1202 = vmatprep.subr.mxu0 0.0
    %1203 = vmatpush2.msra.mxu0 0.0
    %1204 = vmatprep.subr.mxu0 0.0
    %1205 = vmatpush2.msra.mxu0 0.0
    %1206 = vmatprep.subr.mxu0 0.0
    %1207 = vmatpush2.msra.mxu0 0.0
    %1208 = vmatprep.subr.mxu0 0.0
    %1209 = vmatpush2.msra.mxu0 0.0
    %1210 = vmatprep.subr.mxu0 0.0
    %1211 = vmatpush2.msra.mxu0 0.0
    %1212 = vmatprep.subr.mxu0 0.0
    %1213 = vmatpush2.msra.mxu0 0.0
    %1214 = vmatprep.subr.mxu0 0.0
    %1215 = vmatpush2.msra.mxu0 0.0
    %1216 = vmatprep.subr.mxu0 0.0
    %1217 = vmatpush2.msra.mxu0 0.0
    %1218 = vmatprep.subr.mxu0 0.0
    %1219 = vmatpush2.msra.mxu0 0.0
    %1220 = vmatprep.subr.mxu0 0.0
    %1221 = vmatpush2.msra.mxu0 0.0
    %1222 = vmatprep.mubr.f32.mxu0 0.0
    %1223 = vmatmul.mubr.f32.gmra.mxu0 %v1153
    %v1224 = vpop.f32.mrf.mxu0
    %v1225 = vadd.f32 %v1151, %v1224
    %v1226 = vpop.f32.mrf.mxu0
    %1227 = vmatprep.mubr.f32.mxu0 0.0
    %1228 = vmatmul.mubr.f32.gmra.mxu0 %v1156
    %v1229 = vpop.f32.mrf.mxu0
    %v1230 = vadd.f32 %v1151, %v1229
    %v1231 = vpop.f32.mrf.mxu0
    %1232 = vdwg.mxu0
    %v1233 = vadd.f32 %v1225, %v187
    %v1234 = vadd.f32 %v1230, %v188
    %v1235 = vsel %vm149, %v1233, 0.0
    %1236 = vadd.xlane.f32.xlu0 %v1235
    %v1237 = vpop.xlane.xlu0 %1236
    %v1238 = vsel %vm149, %v1234, 0.0
    %1239 = vadd.xlane.f32.xlu0 %v1238
    %v1240 = vpop.xlane.xlu0 %1239
    %v1241 = vmul.f32 %v1237, %v156
    %v1242 = vmul.f32 %v1240, %v156
    %v1243 = vsub.f32 %v1233, %v1241
    %v1244 = vsub.f32 %v1234, %v1242
    %v1245 = vmul.f32 %v1243, %v1243
    %v1246 = vmul.f32 %v1244, %v1244
    %v1247 = vsel %vm149, %v1245, 0.0
    %1248 = vadd.xlane.f32.xlu0 %v1247
    %v1249 = vpop.xlane.xlu0 %1248
    %v1250 = vsel %vm149, %v1246, 0.0
    %1251 = vadd.xlane.f32.xlu0 %v1250
    %v1252 = vpop.xlane.xlu0 %1251
    %v1253 = vmul.f32 %v1249, %v156
    %v1254 = vmul.f32 %v1252, %v156
    %v1255 = vadd.f32 %v1253, 1e-12
    %v1256 = vadd.f32 %v1254, 1e-12
    %v1257 = vrsqrt.pop %v1255
    %v1258 = vrsqrt.pop %v1256
    %v1259 = vmul.f32 %v1243, %v1257
    %v1260 = vmul.f32 %v1244, %v1258
    %v1261 = vlaneseq
    %v1262 = vshrl.u32 %v1261, 7
    %v1263 = vsub.s32 4, %v1262
    %v1264 = vrot.slane %v30, %v1263
    %v1265 = vmul.f32 %v1259, %v1264
    %v1266 = vmul.f32 %v1260, %v1264
    %v1267 = vlaneseq
    %v1268 = vshrl.u32 %v1267, 7
    %v1269 = vsub.s32 5, %v1268
    %v1270 = vrot.slane %v30, %v1269
    %v1271 = vadd.f32 %v1265, %v1270
    %v1272 = vadd.f32 %v1266, %v1270
    %v1273 = vld [vmem:[%s5] sm:$0xff]
    %v1274 = vld [vmem:[%s5 + $0x8] sm:$0xff]
    %v1275 = vld [vmem:[%s5 + $0x10] sm:$0xff]
    %v1276 = vld [vmem:[%s5 + $0x18] sm:$0xff]
    %v1277 = vlaneseq
    %v1278 = vshrl.u32 %v1277, 7
    %v1279 = vsub.s32 6, %v1278
    %v1280 = vrot.slane %v30, %v1279
    %v1282 = vsel %vm149, %v1271, 0
    %v1285 = vsel %vm149, %v1272, 0
    %1287 = vmatprep.subr.mxu0 0.0
    %1288 = vmatpush1.msra.mxu0 0.0
    %1289 = vmatprep.subr.mxu0 0.0
    %1290 = vmatpush1.msra.mxu0 0.0
    %1291 = vmatprep.subr.mxu0 0.0
    %1292 = vmatpush1.msra.mxu0 0.0
    %1293 = vmatprep.subr.mxu0 0.0
    %1294 = vmatpush1.msra.mxu0 0.0
    %1295 = vmatprep.subr.mxu0 0.0
    %1296 = vmatpush1.msra.mxu0 0.0
    %1297 = vmatprep.subr.mxu0 0.0
    %1298 = vmatpush1.msra.mxu0 0.0
    %1299 = vmatprep.subr.mxu0 0.0
    %1300 = vmatpush1.msra.mxu0 0.0
    %1301 = vmatprep.subr.mxu0 0.0
    %1302 = vmatpush1.msra.mxu0 0.0
    %1303 = vmatprep.subr.mxu0 0.0
    %1304 = vmatpush1.msra.mxu0 0.0
    %1305 = vmatprep.subr.mxu0 0.0
    %1306 = vmatpush1.msra.mxu0 0.0
    %1307 = vmatprep.subr.mxu0 0.0
    %1308 = vmatpush1.msra.mxu0 0.0
    %1309 = vmatprep.subr.mxu0 0.0
    %1310 = vmatpush1.msra.mxu0 0.0
    %1311 = vmatprep.subr.mxu0 0.0
    %1312 = vmatpush1.msra.mxu0 %v1276
    %1313 = vmatprep.subr.mxu0 0.0
    %1314 = vmatpush1.msra.mxu0 %v1275
    %1315 = vmatprep.subr.mxu0 0.0
    %1316 = vmatpush1.msra.mxu0 %v1274
    %1317 = vmatprep.subr.mxu0 0.0
    %1318 = vmatpush1.msra.mxu0 %v1273
    %1319 = vmatprep.subr.mxu0 0.0
    %1320 = vmatpush2.msra.mxu0 0.0
    %1321 = vmatprep.subr.mxu0 0.0
    %1322 = vmatpush2.msra.mxu0 0.0
    %1323 = vmatprep.subr.mxu0 0.0
    %1324 = vmatpush2.msra.mxu0 0.0
    %1325 = vmatprep.subr.mxu0 0.0
    %1326 = vmatpush2.msra.mxu0 0.0
    %1327 = vmatprep.subr.mxu0 0.0
    %1328 = vmatpush2.msra.mxu0 0.0
    %1329 = vmatprep.subr.mxu0 0.0
    %1330 = vmatpush2.msra.mxu0 0.0
    %1331 = vmatprep.subr.mxu0 0.0
    %1332 = vmatpush2.msra.mxu0 0.0
    %1333 = vmatprep.subr.mxu0 0.0
    %1334 = vmatpush2.msra.mxu0 0.0
    %1335 = vmatprep.subr.mxu0 0.0
    %1336 = vmatpush2.msra.mxu0 0.0
    %1337 = vmatprep.subr.mxu0 0.0
    %1338 = vmatpush2.msra.mxu0 0.0
    %1339 = vmatprep.subr.mxu0 0.0
    %1340 = vmatpush2.msra.mxu0 0.0
    %1341 = vmatprep.subr.mxu0 0.0
    %1342 = vmatpush2.msra.mxu0 0.0
    %1343 = vmatprep.subr.mxu0 0.0
    %1344 = vmatpush2.msra.mxu0 0.0
    %1345 = vmatprep.subr.mxu0 0.0
    %1346 = vmatpush2.msra.mxu0 0.0
    %1347 = vmatprep.subr.mxu0 0.0
    %1348 = vmatpush2.msra.mxu0 0.0
    %1349 = vmatprep.subr.mxu0 0.0
    %1350 = vmatpush2.msra.mxu0 0.0
    %1351 = vmatprep.mubr.f32.mxu0 0.0
    %1352 = vmatmul.mubr.f32.gmra.mxu0 %v1282
    %v1353 = vpop.f32.mrf.mxu0
    %v1354 = vadd.f32 %v1280, %v1353
    %v1355 = vpop.f32.mrf.mxu0
    %1356 = vmatprep.mubr.f32.mxu0 0.0
    %1357 = vmatmul.mubr.f32.gmra.mxu0 %v1285
    %v1358 = vpop.f32.mrf.mxu0
    %v1359 = vadd.f32 %v1280, %v1358
    %v1360 = vpop.f32.mrf.mxu0
    %1361 = vdwg.mxu0
    %v1362 = vmul.f32 %v1354, 0.5
    %v1363 = vmul.f32 %v1359, 0.5
    %v1364 = vmul.f32 %v1354, 0.044715
    %v1365 = vmul.f32 %v1359, 0.044715
    %v1366 = vmul.f32 %v1364, %v1354
    %v1367 = vmul.f32 %v1365, %v1359
    %v1368 = vmul.f32 %v1366, %v1354
    %v1369 = vmul.f32 %v1367, %v1359
    %v1370 = vadd.f32 %v1354, %v1368
    %v1371 = vadd.f32 %v1359, %v1369
    %v1372 = vmul.f32 %v1370, 0.7978846
    %v1373 = vmul.f32 %v1371, 0.7978846
    %v1374 = vtanh.pop %v1372
    %v1375 = vtanh.pop %v1373
    %v1376 = vadd.f32 %v1374, 1.0
    %v1377 = vadd.f32 %v1375, 1.0
    %v1378 = vmul.f32 %v1362, %v1376
    %v1379 = vmul.f32 %v1363, %v1377
    %v1380 = vld [vmem:[%s6] sm:$0xff]
    %v1381 = vld [vmem:[%s6 + $0x8] sm:$0xff]
    %v1382 = vld [vmem:[%s6 + $0x10] sm:$0xff]
    %v1383 = vld [vmem:[%s6 + $0x18] sm:$0xff]
    %v1384 = vld [vmem:[%s6 + $0x20] sm:$0xff]
    %v1385 = vld [vmem:[%s6 + $0x28] sm:$0xff]
    %v1386 = vld [vmem:[%s6 + $0x30] sm:$0xff]
    %v1387 = vld [vmem:[%s6 + $0x38] sm:$0xff]
    %v1388 = vlaneseq
    %v1389 = vshrl.u32 %v1388, 7
    %v1390 = vsub.s32 7, %v1389
    %v1391 = vrot.slane %v30, %v1390
    %vm1392 = vcmask 523264
    %v1394 = vsel %vm1392, %v1378, 0
    %v1397 = vsel %vm1392, %v1379, 0
    %1399 = vmatprep.subr.mxu0 0.0
    %1400 = vmatpush1.msra.mxu0 0.0
    %1401 = vmatprep.subr.mxu0 0.0
    %1402 = vmatpush1.msra.mxu0 0.0
    %1403 = vmatprep.subr.mxu0 0.0
    %1404 = vmatpush1.msra.mxu0 0.0
    %1405 = vmatprep.subr.mxu0 0.0
    %1406 = vmatpush1.msra.mxu0 0.0
    %1407 = vmatprep.subr.mxu0 0.0
    %1408 = vmatpush1.msra.mxu0 0.0
    %1409 = vmatprep.subr.mxu0 0.0
    %1410 = vmatpush1.msra.mxu0 0.0
    %1411 = vmatprep.subr.mxu0 0.0
    %1412 = vmatpush1.msra.mxu0 0.0
    %1413 = vmatprep.subr.mxu0 0.0
    %1414 = vmatpush1.msra.mxu0 0.0
    %1415 = vmatprep.subr.mxu0 0.0
    %1416 = vmatpush1.msra.mxu0 %v1387
    %1417 = vmatprep.subr.mxu0 0.0
    %1418 = vmatpush1.msra.mxu0 %v1386
    %1419 = vmatprep.subr.mxu0 0.0
    %1420 = vmatpush1.msra.mxu0 %v1385
    %1421 = vmatprep.subr.mxu0 0.0
    %1422 = vmatpush1.msra.mxu0 %v1384
    %1423 = vmatprep.subr.mxu0 0.0
    %1424 = vmatpush1.msra.mxu0 %v1383
    %1425 = vmatprep.subr.mxu0 0.0
    %1426 = vmatpush1.msra.mxu0 %v1382
    %1427 = vmatprep.subr.mxu0 0.0
    %1428 = vmatpush1.msra.mxu0 %v1381
    %1429 = vmatprep.subr.mxu0 0.0
    %1430 = vmatpush1.msra.mxu0 %v1380
    %1431 = vmatprep.subr.mxu0 0.0
    %1432 = vmatpush2.msra.mxu0 0.0
    %1433 = vmatprep.subr.mxu0 0.0
    %1434 = vmatpush2.msra.mxu0 0.0
    %1435 = vmatprep.subr.mxu0 0.0
    %1436 = vmatpush2.msra.mxu0 0.0
    %1437 = vmatprep.subr.mxu0 0.0
    %1438 = vmatpush2.msra.mxu0 0.0
    %1439 = vmatprep.subr.mxu0 0.0
    %1440 = vmatpush2.msra.mxu0 0.0
    %1441 = vmatprep.subr.mxu0 0.0
    %1442 = vmatpush2.msra.mxu0 0.0
    %1443 = vmatprep.subr.mxu0 0.0
    %1444 = vmatpush2.msra.mxu0 0.0
    %1445 = vmatprep.subr.mxu0 0.0
    %1446 = vmatpush2.msra.mxu0 0.0
    %1447 = vmatprep.subr.mxu0 0.0
    %1448 = vmatpush2.msra.mxu0 0.0
    %1449 = vmatprep.subr.mxu0 0.0
    %1450 = vmatpush2.msra.mxu0 0.0
    %1451 = vmatprep.subr.mxu0 0.0
    %1452 = vmatpush2.msra.mxu0 0.0
    %1453 = vmatprep.subr.mxu0 0.0
    %1454 = vmatpush2.msra.mxu0 0.0
    %1455 = vmatprep.subr.mxu0 0.0
    %1456 = vmatpush2.msra.mxu0 0.0
    %1457 = vmatprep.subr.mxu0 0.0
    %1458 = vmatpush2.msra.mxu0 0.0
    %1459 = vmatprep.subr.mxu0 0.0
    %1460 = vmatpush2.msra.mxu0 0.0
    %1461 = vmatprep.subr.mxu0 0.0
    %1462 = vmatpush2.msra.mxu0 0.0
    %1463 = vmatprep.mubr.f32.mxu0 0.0
    %1464 = vmatmul.mubr.f32.gmra.mxu0 %v1394
    %v1465 = vpop.f32.mrf.mxu0
    %v1466 = vadd.f32 %v1391, %v1465
    %v1467 = vpop.f32.mrf.mxu0
    %1468 = vmatprep.mubr.f32.mxu0 0.0
    %1469 = vmatmul.mubr.f32.gmra.mxu0 %v1397
    %v1470 = vpop.f32.mrf.mxu0
    %v1471 = vadd.f32 %v1391, %v1470
    %v1472 = vpop.f32.mrf.mxu0
    %1473 = vdwg.mxu0
    %v1474 = vadd.f32 %v1466, %v1271
    %v1475 = vadd.f32 %v1471, %v1272
    %v1476 = vsel %vm149, %v1474, 0.0
    %1477 = vadd.xlane.f32.xlu0 %v1476
    %v1478 = vpop.xlane.xlu0 %1477
    %v1479 = vsel %vm149, %v1475, 0.0
    %1480 = vadd.xlane.f32.xlu0 %v1479
    %v1481 = vpop.xlane.xlu0 %1480
    %v1482 = vmul.f32 %v1478, %v156
    %v1483 = vmul.f32 %v1481, %v156
    %v1484 = vsub.f32 %v1474, %v1482
    %v1485 = vsub.f32 %v1475, %v1483
    %v1486 = vmul.f32 %v1484, %v1484
    %v1487 = vmul.f32 %v1485, %v1485
    %v1488 = vsel %vm149, %v1486, 0.0
    %1489 = vadd.xlane.f32.xlu0 %v1488
    %v1490 = vpop.xlane.xlu0 %1489
    %v1491 = vsel %vm149, %v1487, 0.0
    %1492 = vadd.xlane.f32.xlu0 %v1491
    %v1493 = vpop.xlane.xlu0 %1492
    %v1494 = vmul.f32 %v1490, %v156
    %v1495 = vmul.f32 %v1493, %v156
    %v1496 = vadd.f32 %v1494, 1e-12
    %v1497 = vadd.f32 %v1495, 1e-12
    %v1498 = vrsqrt.pop %v1496
    %v1499 = vrsqrt.pop %v1497
    %v1500 = vmul.f32 %v1484, %v1498
    %v1501 = vmul.f32 %v1485, %v1499
    %v1502 = vlaneseq
    %v1503 = vshrl.u32 %v1502, 7
    %v1504 = vsub.s32 0, %v1503
    %v1505 = vrot.slane %v31, %v1504
    %v1506 = vmul.f32 %v1500, %v1505
    %v1507 = vmul.f32 %v1501, %v1505
    %v1508 = vlaneseq
    %v1509 = vshrl.u32 %v1508, 7
    %v1510 = vsub.s32 1, %v1509
    %v1511 = vrot.slane %v31, %v1510
    %v1512 = vadd.f32 %v1506, %v1511
    %v1513 = vadd.f32 %v1507, %v1511
    %s1514 = scalar_lea.vmem %s3, 32
    %v1515 = vld [vmem:[%s1514] sm:$0xff]
    %v1516 = vld [vmem:[%s1514 + $0x8] sm:$0xff]
    %v1517 = vld [vmem:[%s1514 + $0x10] sm:$0xff]
    %v1518 = vld [vmem:[%s1514 + $0x18] sm:$0xff]
    %v1519 = vlaneseq
    %v1520 = vshrl.u32 %v1519, 7
    %v1521 = vsub.s32 2, %v1520
    %v1522 = vrot.slane %v31, %v1521
    %v1524 = vsel %vm149, %v1512, 0
    %v1527 = vsel %vm149, %v1513, 0
    %1529 = vmatprep.subr.mxu0 0.0
    %1530 = vmatpush1.msra.mxu0 0.0
    %1531 = vmatprep.subr.mxu0 0.0
    %1532 = vmatpush1.msra.mxu0 0.0
    %1533 = vmatprep.subr.mxu0 0.0
    %1534 = vmatpush1.msra.mxu0 0.0
    %1535 = vmatprep.subr.mxu0 0.0
    %1536 = vmatpush1.msra.mxu0 0.0
    %1537 = vmatprep.subr.mxu0 0.0
    %1538 = vmatpush1.msra.mxu0 0.0
    %1539 = vmatprep.subr.mxu0 0.0
    %1540 = vmatpush1.msra.mxu0 0.0
    %1541 = vmatprep.subr.mxu0 0.0
    %1542 = vmatpush1.msra.mxu0 0.0
    %1543 = vmatprep.subr.mxu0 0.0
    %1544 = vmatpush1.msra.mxu0 0.0
    %1545 = vmatprep.subr.mxu0 0.0
    %1546 = vmatpush1.msra.mxu0 0.0
    %1547 = vmatprep.subr.mxu0 0.0
    %1548 = vmatpush1.msra.mxu0 0.0
    %1549 = vmatprep.subr.mxu0 0.0
    %1550 = vmatpush1.msra.mxu0 0.0
    %1551 = vmatprep.subr.mxu0 0.0
    %1552 = vmatpush1.msra.mxu0 0.0
    %1553 = vmatprep.subr.mxu0 0.0
    %1554 = vmatpush1.msra.mxu0 %v1518
    %1555 = vmatprep.subr.mxu0 0.0
    %1556 = vmatpush1.msra.mxu0 %v1517
    %1557 = vmatprep.subr.mxu0 0.0
    %1558 = vmatpush1.msra.mxu0 %v1516
    %1559 = vmatprep.subr.mxu0 0.0
    %1560 = vmatpush1.msra.mxu0 %v1515
    %1561 = vmatprep.subr.mxu0 0.0
    %1562 = vmatpush2.msra.mxu0 0.0
    %1563 = vmatprep.subr.mxu0 0.0
    %1564 = vmatpush2.msra.mxu0 0.0
    %1565 = vmatprep.subr.mxu0 0.0
    %1566 = vmatpush2.msra.mxu0 0.0
    %1567 = vmatprep.subr.mxu0 0.0
    %1568 = vmatpush2.msra.mxu0 0.0
    %1569 = vmatprep.subr.mxu0 0.0
    %1570 = vmatpush2.msra.mxu0 0.0
    %1571 = vmatprep.subr.mxu0 0.0
    %1572 = vmatpush2.msra.mxu0 0.0
    %1573 = vmatprep.subr.mxu0 0.0
    %1574 = vmatpush2.msra.mxu0 0.0
    %1575 = vmatprep.subr.mxu0 0.0
    %1576 = vmatpush2.msra.mxu0 0.0
    %1577 = vmatprep.subr.mxu0 0.0
    %1578 = vmatpush2.msra.mxu0 0.0
    %1579 = vmatprep.subr.mxu0 0.0
    %1580 = vmatpush2.msra.mxu0 0.0
    %1581 = vmatprep.subr.mxu0 0.0
    %1582 = vmatpush2.msra.mxu0 0.0
    %1583 = vmatprep.subr.mxu0 0.0
    %1584 = vmatpush2.msra.mxu0 0.0
    %1585 = vmatprep.subr.mxu0 0.0
    %1586 = vmatpush2.msra.mxu0 0.0
    %1587 = vmatprep.subr.mxu0 0.0
    %1588 = vmatpush2.msra.mxu0 0.0
    %1589 = vmatprep.subr.mxu0 0.0
    %1590 = vmatpush2.msra.mxu0 0.0
    %1591 = vmatprep.subr.mxu0 0.0
    %1592 = vmatpush2.msra.mxu0 0.0
    %1593 = vmatprep.mubr.f32.mxu0 0.0
    %1594 = vmatmul.mubr.f32.gmra.mxu0 %v1524
    %v1595 = vpop.f32.mrf.mxu0
    %v1596 = vadd.f32 %v1522, %v1595
    %v1597 = vpop.f32.mrf.mxu0
    %1598 = vmatprep.mubr.f32.mxu0 0.0
    %1599 = vmatmul.mubr.f32.gmra.mxu0 %v1527
    %v1600 = vpop.f32.mrf.mxu0
    %v1601 = vadd.f32 %v1522, %v1600
    %v1602 = vpop.f32.mrf.mxu0
    %1603 = vdwg.mxu0
    %1606 = vrot.lane.b32.xlu0 %v1596, 96
    %v1607 = vpop.permute.xlu0 %1606
    %1608 = vrot.lane.b32.xlu0 %v1601, 96
    %v1609 = vpop.permute.xlu0 %1608
    %v1610 = vsel %vm313, %v1596, 0
    %v1612 = vsel %vm313, %v1601, 0
    %v1614 = vsel %vm313, %v1607, 0
    %v1616 = vsel %vm313, %v1609, 0
    %1618 = vmatprep.subr.mxu0 0.0
    %1619 = vmatpush1.xpose.msra.mxu0 0.0
    %1620 = vmatprep.subr.mxu0 0.0
    %1621 = vmatpush1.xpose.msra.mxu0 0.0
    %1622 = vmatprep.subr.mxu0 0.0
    %1623 = vmatpush1.xpose.msra.mxu0 0.0
    %1624 = vmatprep.subr.mxu0 0.0
    %1625 = vmatpush1.xpose.msra.mxu0 0.0
    %1626 = vmatprep.subr.mxu0 0.0
    %1627 = vmatpush1.xpose.msra.mxu0 0.0
    %1628 = vmatprep.subr.mxu0 0.0
    %1629 = vmatpush1.xpose.msra.mxu0 0.0
    %1630 = vmatprep.subr.mxu0 0.0
    %1631 = vmatpush1.xpose.msra.mxu0 0.0
    %1632 = vmatprep.subr.mxu0 0.0
    %1633 = vmatpush1.xpose.msra.mxu0 0.0
    %1634 = vmatprep.subr.mxu0 0.0
    %1635 = vmatpush1.xpose.msra.mxu0 0.0
    %1636 = vmatprep.subr.mxu0 0.0
    %1637 = vmatpush1.xpose.msra.mxu0 0.0
    %1638 = vmatprep.subr.mxu0 0.0
    %1639 = vmatpush1.xpose.msra.mxu0 0.0
    %1640 = vmatprep.subr.mxu0 0.0
    %1641 = vmatpush1.xpose.msra.mxu0 0.0
    %1642 = vmatprep.subr.mxu0 0.0
    %1643 = vmatpush1.xpose.msra.mxu0 0.0
    %1644 = vmatprep.subr.mxu0 0.0
    %1645 = vmatpush1.xpose.msra.mxu0 0.0
    %1646 = vmatprep.subr.mxu0 0.0
    %1647 = vmatpush1.xpose.msra.mxu0 %v1616
    %1648 = vmatprep.subr.mxu0 0.0
    %1649 = vmatpush1.xpose.msra.mxu0 %v1614
    %1650 = vmatprep.subr.mxu0 0.0
    %1651 = vmatpush2.xpose.msra.mxu0 0.0
    %1652 = vmatprep.subr.mxu0 0.0
    %1653 = vmatpush2.xpose.msra.mxu0 0.0
    %1654 = vmatprep.subr.mxu0 0.0
    %1655 = vmatpush2.xpose.msra.mxu0 0.0
    %1656 = vmatprep.subr.mxu0 0.0
    %1657 = vmatpush2.xpose.msra.mxu0 0.0
    %1658 = vmatprep.subr.mxu0 0.0
    %1659 = vmatpush2.xpose.msra.mxu0 0.0
    %1660 = vmatprep.subr.mxu0 0.0
    %1661 = vmatpush2.xpose.msra.mxu0 0.0
    %1662 = vmatprep.subr.mxu0 0.0
    %1663 = vmatpush2.xpose.msra.mxu0 0.0
    %1664 = vmatprep.subr.mxu0 0.0
    %1665 = vmatpush2.xpose.msra.mxu0 0.0
    %1666 = vmatprep.subr.mxu0 0.0
    %1667 = vmatpush2.xpose.msra.mxu0 0.0
    %1668 = vmatprep.subr.mxu0 0.0
    %1669 = vmatpush2.xpose.msra.mxu0 0.0
    %1670 = vmatprep.subr.mxu0 0.0
    %1671 = vmatpush2.xpose.msra.mxu0 0.0
    %1672 = vmatprep.subr.mxu0 0.0
    %1673 = vmatpush2.xpose.msra.mxu0 0.0
    %1674 = vmatprep.subr.mxu0 0.0
    %1675 = vmatpush2.xpose.msra.mxu0 0.0
    %1676 = vmatprep.subr.mxu0 0.0
    %1677 = vmatpush2.xpose.msra.mxu0 0.0
    %1678 = vmatprep.subr.mxu0 0.0
    %1679 = vmatpush2.xpose.msra.mxu0 0.0
    %1680 = vmatprep.subr.mxu0 0.0
    %1681 = vmatpush2.xpose.msra.mxu0 0.0
    %1682 = vmatprep.mubr.f32.mxu0 0.0
    %1683 = vmatmul.mubr.f32.gmra.mxu0 %v1610
    %v1684 = vpop.f32.mrf.mxu0
    %v1685 = vadd.f32 %v216, %v1684
    %v1686 = vpop.f32.mrf.mxu0
    %1687 = vmatprep.mubr.f32.mxu0 0.0
    %1688 = vmatmul.mubr.f32.gmra.mxu0 %v1612
    %v1689 = vpop.f32.mrf.mxu0
    %v1690 = vadd.f32 %v217, %v1689
    %v1691 = vpop.f32.mrf.mxu0
    %1692 = vdwg.mxu0
    %v1693 = vsel %vm397, %v1685, -inf
    %1694 = vmax.xlane.f32.xlu0 %v1693
    %v1695 = vpop.xlane.xlu0 %1694
    %v1696 = vsel %vm397, %v1690, -inf
    %1697 = vmax.xlane.f32.xlu0 %v1696
    %v1698 = vpop.xlane.xlu0 %1697
    %v1699 = vsub.f32 %v1685, %v1695
    %v1700 = vsub.f32 %v1690, %v1698
    %v1701 = vmul.f32 %v1699, 1.442695
    %v1702 = vpow.pop %v1701
    %v1703 = vmul.f32 %v1700, 1.442695
    %v1704 = vpow.pop %v1703
    %v1705 = vsel %vm397, %v1702, 0.0
    %1706 = vadd.xlane.f32.xlu0 %v1705
    %v1707 = vpop.xlane.xlu0 %1706
    %v1708 = vsel %vm397, %v1704, 0.0
    %1709 = vadd.xlane.f32.xlu0 %v1708
    %v1710 = vpop.xlane.xlu0 %1709
    %v1711 = vrcp.pop %v1707
    %v1712 = vrcp.pop %v1710
    %v1713 = vmul.f32 %v1702, %v1711
    %v1714 = vmul.f32 %v1704, %v1712
    %1715 = vrot.lane.b32.xlu0 %v1596, 64
    %v1716 = vpop.permute.xlu0 %1715
    %1717 = vrot.lane.b32.xlu0 %v1601, 64
    %v1718 = vpop.permute.xlu0 %1717
    %v1722 = vsel %vm397, %v1713, 0
    %v1725 = vsel %vm397, %v1714, 0
    %1727 = vmatprep.subr.mxu0 0.0
    %1728 = vmatpush1.msra.mxu0 0.0
    %1729 = vmatprep.subr.mxu0 0.0
    %1730 = vmatpush1.msra.mxu0 0.0
    %1731 = vmatprep.subr.mxu0 0.0
    %1732 = vmatpush1.msra.mxu0 0.0
    %1733 = vmatprep.subr.mxu0 0.0
    %1734 = vmatpush1.msra.mxu0 0.0
    %1735 = vmatprep.subr.mxu0 0.0
    %1736 = vmatpush1.msra.mxu0 0.0
    %1737 = vmatprep.subr.mxu0 0.0
    %1738 = vmatpush1.msra.mxu0 0.0
    %1739 = vmatprep.subr.mxu0 0.0
    %1740 = vmatpush1.msra.mxu0 0.0
    %1741 = vmatprep.subr.mxu0 0.0
    %1742 = vmatpush1.msra.mxu0 0.0
    %1743 = vmatprep.subr.mxu0 0.0
    %1744 = vmatpush1.msra.mxu0 0.0
    %1745 = vmatprep.subr.mxu0 0.0
    %1746 = vmatpush1.msra.mxu0 0.0
    %1747 = vmatprep.subr.mxu0 0.0
    %1748 = vmatpush1.msra.mxu0 0.0
    %1749 = vmatprep.subr.mxu0 0.0
    %1750 = vmatpush1.msra.mxu0 0.0
    %1751 = vmatprep.subr.mxu0 0.0
    %1752 = vmatpush1.msra.mxu0 0.0
    %1753 = vmatprep.subr.mxu0 0.0
    %1754 = vmatpush1.msra.mxu0 0.0
    %1755 = vmatprep.subr.mxu0 0.0
    %1756 = vmatpush1.msra.mxu0 %v1718
    %1757 = vmatprep.subr.mxu0 0.0
    %1758 = vmatpush1.msra.mxu0 %v1716
    %1759 = vmatprep.subr.mxu0 0.0
    %1760 = vmatpush2.msra.mxu0 0.0
    %1761 = vmatprep.subr.mxu0 0.0
    %1762 = vmatpush2.msra.mxu0 0.0
    %1763 = vmatprep.subr.mxu0 0.0
    %1764 = vmatpush2.msra.mxu0 0.0
    %1765 = vmatprep.subr.mxu0 0.0
    %1766 = vmatpush2.msra.mxu0 0.0
    %1767 = vmatprep.subr.mxu0 0.0
    %1768 = vmatpush2.msra.mxu0 0.0
    %1769 = vmatprep.subr.mxu0 0.0
    %1770 = vmatpush2.msra.mxu0 0.0
    %1771 = vmatprep.subr.mxu0 0.0
    %1772 = vmatpush2.msra.mxu0 0.0
    %1773 = vmatprep.subr.mxu0 0.0
    %1774 = vmatpush2.msra.mxu0 0.0
    %1775 = vmatprep.subr.mxu0 0.0
    %1776 = vmatpush2.msra.mxu0 0.0
    %1777 = vmatprep.subr.mxu0 0.0
    %1778 = vmatpush2.msra.mxu0 0.0
    %1779 = vmatprep.subr.mxu0 0.0
    %1780 = vmatpush2.msra.mxu0 0.0
    %1781 = vmatprep.subr.mxu0 0.0
    %1782 = vmatpush2.msra.mxu0 0.0
    %1783 = vmatprep.subr.mxu0 0.0
    %1784 = vmatpush2.msra.mxu0 0.0
    %1785 = vmatprep.subr.mxu0 0.0
    %1786 = vmatpush2.msra.mxu0 0.0
    %1787 = vmatprep.subr.mxu0 0.0
    %1788 = vmatpush2.msra.mxu0 0.0
    %1789 = vmatprep.subr.mxu0 0.0
    %1790 = vmatpush2.msra.mxu0 0.0
    %1791 = vmatprep.mubr.f32.mxu0 0.0
    %1792 = vmatmul.mubr.f32.gmra.mxu0 %v1722
    %v1793 = vpop.f32.mrf.mxu0
    %v1794 = vadd.f32 0.0, %v1793
    %v1795 = vpop.f32.mrf.mxu0
    %1796 = vmatprep.mubr.f32.mxu0 0.0
    %1797 = vmatmul.mubr.f32.gmra.mxu0 %v1725
    %v1798 = vpop.f32.mrf.mxu0
    %v1799 = vadd.f32 0.0, %v1798
    %v1800 = vpop.f32.mrf.mxu0
    %1801 = vdwg.mxu0
    %1802 = vst.msk [vmem:[#allocation2] sm:$0xff] %vm313, %v1794
    %1803 = vst.msk [vmem:[#allocation2 + $0x8] sm:$0xff] %vm313, %v1799
    %1804 = vrot.lane.b32.xlu0 %v1596, 120
    %v1805 = vpop.permute.xlu0 %1804
    %1806 = vrot.lane.b32.xlu0 %v1601, 120
    %v1807 = vpop.permute.xlu0 %1806
    %1808 = vrot.lane.b32.xlu0 %v1596, 88
    %v1809 = vpop.permute.xlu0 %1808
    %1810 = vrot.lane.b32.xlu0 %v1601, 88
    %v1811 = vpop.permute.xlu0 %1810
    %v1812 = vsel %vm313, %v1805, 0
    %v1814 = vsel %vm313, %v1807, 0
    %v1816 = vsel %vm313, %v1809, 0
    %v1818 = vsel %vm313, %v1811, 0
    %1820 = vmatprep.subr.mxu0 0.0
    %1821 = vmatpush1.xpose.msra.mxu0 0.0
    %1822 = vmatprep.subr.mxu0 0.0
    %1823 = vmatpush1.xpose.msra.mxu0 0.0
    %1824 = vmatprep.subr.mxu0 0.0
    %1825 = vmatpush1.xpose.msra.mxu0 0.0
    %1826 = vmatprep.subr.mxu0 0.0
    %1827 = vmatpush1.xpose.msra.mxu0 0.0
    %1828 = vmatprep.subr.mxu0 0.0
    %1829 = vmatpush1.xpose.msra.mxu0 0.0
    %1830 = vmatprep.subr.mxu0 0.0
    %1831 = vmatpush1.xpose.msra.mxu0 0.0
    %1832 = vmatprep.subr.mxu0 0.0
    %1833 = vmatpush1.xpose.msra.mxu0 0.0
    %1834 = vmatprep.subr.mxu0 0.0
    %1835 = vmatpush1.xpose.msra.mxu0 0.0
    %1836 = vmatprep.subr.mxu0 0.0
    %1837 = vmatpush1.xpose.msra.mxu0 0.0
    %1838 = vmatprep.subr.mxu0 0.0
    %1839 = vmatpush1.xpose.msra.mxu0 0.0
    %1840 = vmatprep.subr.mxu0 0.0
    %1841 = vmatpush1.xpose.msra.mxu0 0.0
    %1842 = vmatprep.subr.mxu0 0.0
    %1843 = vmatpush1.xpose.msra.mxu0 0.0
    %1844 = vmatprep.subr.mxu0 0.0
    %1845 = vmatpush1.xpose.msra.mxu0 0.0
    %1846 = vmatprep.subr.mxu0 0.0
    %1847 = vmatpush1.xpose.msra.mxu0 0.0
    %1848 = vmatprep.subr.mxu0 0.0
    %1849 = vmatpush1.xpose.msra.mxu0 %v1818
    %1850 = vmatprep.subr.mxu0 0.0
    %1851 = vmatpush1.xpose.msra.mxu0 %v1816
    %1852 = vmatprep.subr.mxu0 0.0
    %1853 = vmatpush2.xpose.msra.mxu0 0.0
    %1854 = vmatprep.subr.mxu0 0.0
    %1855 = vmatpush2.xpose.msra.mxu0 0.0
    %1856 = vmatprep.subr.mxu0 0.0
    %1857 = vmatpush2.xpose.msra.mxu0 0.0
    %1858 = vmatprep.subr.mxu0 0.0
    %1859 = vmatpush2.xpose.msra.mxu0 0.0
    %1860 = vmatprep.subr.mxu0 0.0
    %1861 = vmatpush2.xpose.msra.mxu0 0.0
    %1862 = vmatprep.subr.mxu0 0.0
    %1863 = vmatpush2.xpose.msra.mxu0 0.0
    %1864 = vmatprep.subr.mxu0 0.0
    %1865 = vmatpush2.xpose.msra.mxu0 0.0
    %1866 = vmatprep.subr.mxu0 0.0
    %1867 = vmatpush2.xpose.msra.mxu0 0.0
    %1868 = vmatprep.subr.mxu0 0.0
    %1869 = vmatpush2.xpose.msra.mxu0 0.0
    %1870 = vmatprep.subr.mxu0 0.0
    %1871 = vmatpush2.xpose.msra.mxu0 0.0
    %1872 = vmatprep.subr.mxu0 0.0
    %1873 = vmatpush2.xpose.msra.mxu0 0.0
    %1874 = vmatprep.subr.mxu0 0.0
    %1875 = vmatpush2.xpose.msra.mxu0 0.0
    %1876 = vmatprep.subr.mxu0 0.0
    %1877 = vmatpush2.xpose.msra.mxu0 0.0
    %1878 = vmatprep.subr.mxu0 0.0
    %1879 = vmatpush2.xpose.msra.mxu0 0.0
    %1880 = vmatprep.subr.mxu0 0.0
    %1881 = vmatpush2.xpose.msra.mxu0 0.0
    %1882 = vmatprep.subr.mxu0 0.0
    %1883 = vmatpush2.xpose.msra.mxu0 0.0
    %1884 = vmatprep.mubr.f32.mxu0 0.0
    %1885 = vmatmul.mubr.f32.gmra.mxu0 %v1812
    %v1886 = vpop.f32.mrf.mxu0
    %v1887 = vadd.f32 %v216, %v1886
    %v1888 = vpop.f32.mrf.mxu0
    %1889 = vmatprep.mubr.f32.mxu0 0.0
    %1890 = vmatmul.mubr.f32.gmra.mxu0 %v1814
    %v1891 = vpop.f32.mrf.mxu0
    %v1892 = vadd.f32 %v217, %v1891
    %v1893 = vpop.f32.mrf.mxu0
    %1894 = vdwg.mxu0
    %v1895 = vsel %vm397, %v1887, -inf
    %1896 = vmax.xlane.f32.xlu0 %v1895
    %v1897 = vpop.xlane.xlu0 %1896
    %v1898 = vsel %vm397, %v1892, -inf
    %1899 = vmax.xlane.f32.xlu0 %v1898
    %v1900 = vpop.xlane.xlu0 %1899
    %v1901 = vsub.f32 %v1887, %v1897
    %v1902 = vsub.f32 %v1892, %v1900
    %v1903 = vmul.f32 %v1901, 1.442695
    %v1904 = vpow.pop %v1903
    %v1905 = vmul.f32 %v1902, 1.442695
    %v1906 = vpow.pop %v1905
    %v1907 = vsel %vm397, %v1904, 0.0
    %1908 = vadd.xlane.f32.xlu0 %v1907
    %v1909 = vpop.xlane.xlu0 %1908
    %v1910 = vsel %vm397, %v1906, 0.0
    %1911 = vadd.xlane.f32.xlu0 %v1910
    %v1912 = vpop.xlane.xlu0 %1911
    %v1913 = vrcp.pop %v1909
    %v1914 = vrcp.pop %v1912
    %v1915 = vmul.f32 %v1904, %v1913
    %v1916 = vmul.f32 %v1906, %v1914
    %1917 = vrot.lane.b32.xlu0 %v1596, 56
    %v1918 = vpop.permute.xlu0 %1917
    %1919 = vrot.lane.b32.xlu0 %v1601, 56
    %v1920 = vpop.permute.xlu0 %1919
    %v1924 = vsel %vm397, %v1915, 0
    %v1927 = vsel %vm397, %v1916, 0
    %1929 = vmatprep.subr.mxu0 0.0
    %1930 = vmatpush1.msra.mxu0 0.0
    %1931 = vmatprep.subr.mxu0 0.0
    %1932 = vmatpush1.msra.mxu0 0.0
    %1933 = vmatprep.subr.mxu0 0.0
    %1934 = vmatpush1.msra.mxu0 0.0
    %1935 = vmatprep.subr.mxu0 0.0
    %1936 = vmatpush1.msra.mxu0 0.0
    %1937 = vmatprep.subr.mxu0 0.0
    %1938 = vmatpush1.msra.mxu0 0.0
    %1939 = vmatprep.subr.mxu0 0.0
    %1940 = vmatpush1.msra.mxu0 0.0
    %1941 = vmatprep.subr.mxu0 0.0
    %1942 = vmatpush1.msra.mxu0 0.0
    %1943 = vmatprep.subr.mxu0 0.0
    %1944 = vmatpush1.msra.mxu0 0.0
    %1945 = vmatprep.subr.mxu0 0.0
    %1946 = vmatpush1.msra.mxu0 0.0
    %1947 = vmatprep.subr.mxu0 0.0
    %1948 = vmatpush1.msra.mxu0 0.0
    %1949 = vmatprep.subr.mxu0 0.0
    %1950 = vmatpush1.msra.mxu0 0.0
    %1951 = vmatprep.subr.mxu0 0.0
    %1952 = vmatpush1.msra.mxu0 0.0
    %1953 = vmatprep.subr.mxu0 0.0
    %1954 = vmatpush1.msra.mxu0 0.0
    %1955 = vmatprep.subr.mxu0 0.0
    %1956 = vmatpush1.msra.mxu0 0.0
    %1957 = vmatprep.subr.mxu0 0.0
    %1958 = vmatpush1.msra.mxu0 %v1920
    %1959 = vmatprep.subr.mxu0 0.0
    %1960 = vmatpush1.msra.mxu0 %v1918
    %1961 = vmatprep.subr.mxu0 0.0
    %1962 = vmatpush2.msra.mxu0 0.0
    %1963 = vmatprep.subr.mxu0 0.0
    %1964 = vmatpush2.msra.mxu0 0.0
    %1965 = vmatprep.subr.mxu0 0.0
    %1966 = vmatpush2.msra.mxu0 0.0
    %1967 = vmatprep.subr.mxu0 0.0
    %1968 = vmatpush2.msra.mxu0 0.0
    %1969 = vmatprep.subr.mxu0 0.0
    %1970 = vmatpush2.msra.mxu0 0.0
    %1971 = vmatprep.subr.mxu0 0.0
    %1972 = vmatpush2.msra.mxu0 0.0
    %1973 = vmatprep.subr.mxu0 0.0
    %1974 = vmatpush2.msra.mxu0 0.0
    %1975 = vmatprep.subr.mxu0 0.0
    %1976 = vmatpush2.msra.mxu0 0.0
    %1977 = vmatprep.subr.mxu0 0.0
    %1978 = vmatpush2.msra.mxu0 0.0
    %1979 = vmatprep.subr.mxu0 0.0
    %1980 = vmatpush2.msra.mxu0 0.0
    %1981 = vmatprep.subr.mxu0 0.0
    %1982 = vmatpush2.msra.mxu0 0.0
    %1983 = vmatprep.subr.mxu0 0.0
    %1984 = vmatpush2.msra.mxu0 0.0
    %1985 = vmatprep.subr.mxu0 0.0
    %1986 = vmatpush2.msra.mxu0 0.0
    %1987 = vmatprep.subr.mxu0 0.0
    %1988 = vmatpush2.msra.mxu0 0.0
    %1989 = vmatprep.subr.mxu0 0.0
    %1990 = vmatpush2.msra.mxu0 0.0
    %1991 = vmatprep.subr.mxu0 0.0
    %1992 = vmatpush2.msra.mxu0 0.0
    %1993 = vmatprep.mubr.f32.mxu0 0.0
    %1994 = vmatmul.mubr.f32.gmra.mxu0 %v1924
    %v1995 = vpop.f32.mrf.mxu0
    %v1996 = vadd.f32 0.0, %v1995
    %v1997 = vpop.f32.mrf.mxu0
    %1998 = vmatprep.mubr.f32.mxu0 0.0
    %1999 = vmatmul.mubr.f32.gmra.mxu0 %v1927
    %v2000 = vpop.f32.mrf.mxu0
    %v2001 = vadd.f32 0.0, %v2000
    %v2002 = vpop.f32.mrf.mxu0
    %2003 = vdwg.mxu0
    %2006 = vrot.lane.b32.xlu0 %v1996, 8
    %v2007 = vpop.permute.xlu0 %2006
    %2008 = vrot.lane.b32.xlu0 %v2001, 8
    %v2009 = vpop.permute.xlu0 %2008
    %2012 = vst.msk [vmem:[#allocation2] sm:$0xff] %vm717, %v2007
    %2013 = vst.msk [vmem:[#allocation2 + $0x8] sm:$0xff] %vm717, %v2009
    %2014 = vrot.lane.b32.xlu0 %v1596, 112
    %v2015 = vpop.permute.xlu0 %2014
    %2016 = vrot.lane.b32.xlu0 %v1601, 112
    %v2017 = vpop.permute.xlu0 %2016
    %2018 = vrot.lane.b32.xlu0 %v1596, 80
    %v2019 = vpop.permute.xlu0 %2018
    %2020 = vrot.lane.b32.xlu0 %v1601, 80
    %v2021 = vpop.permute.xlu0 %2020
    %v2022 = vsel %vm313, %v2015, 0
    %v2024 = vsel %vm313, %v2017, 0
    %v2026 = vsel %vm313, %v2019, 0
    %v2028 = vsel %vm313, %v2021, 0
    %2030 = vmatprep.subr.mxu0 0.0
    %2031 = vmatpush1.xpose.msra.mxu0 0.0
    %2032 = vmatprep.subr.mxu0 0.0
    %2033 = vmatpush1.xpose.msra.mxu0 0.0
    %2034 = vmatprep.subr.mxu0 0.0
    %2035 = vmatpush1.xpose.msra.mxu0 0.0
    %2036 = vmatprep.subr.mxu0 0.0
    %2037 = vmatpush1.xpose.msra.mxu0 0.0
    %2038 = vmatprep.subr.mxu0 0.0
    %2039 = vmatpush1.xpose.msra.mxu0 0.0
    %2040 = vmatprep.subr.mxu0 0.0
    %2041 = vmatpush1.xpose.msra.mxu0 0.0
    %2042 = vmatprep.subr.mxu0 0.0
    %2043 = vmatpush1.xpose.msra.mxu0 0.0
    %2044 = vmatprep.subr.mxu0 0.0
    %2045 = vmatpush1.xpose.msra.mxu0 0.0
    %2046 = vmatprep.subr.mxu0 0.0
    %2047 = vmatpush1.xpose.msra.mxu0 0.0
    %2048 = vmatprep.subr.mxu0 0.0
    %2049 = vmatpush1.xpose.msra.mxu0 0.0
    %2050 = vmatprep.subr.mxu0 0.0
    %2051 = vmatpush1.xpose.msra.mxu0 0.0
    %2052 = vmatprep.subr.mxu0 0.0
    %2053 = vmatpush1.xpose.msra.mxu0 0.0
    %2054 = vmatprep.subr.mxu0 0.0
    %2055 = vmatpush1.xpose.msra.mxu0 0.0
    %2056 = vmatprep.subr.mxu0 0.0
    %2057 = vmatpush1.xpose.msra.mxu0 0.0
    %2058 = vmatprep.subr.mxu0 0.0
    %2059 = vmatpush1.xpose.msra.mxu0 %v2028
    %2060 = vmatprep.subr.mxu0 0.0
    %2061 = vmatpush1.xpose.msra.mxu0 %v2026
    %2062 = vmatprep.subr.mxu0 0.0
    %2063 = vmatpush2.xpose.msra.mxu0 0.0
    %2064 = vmatprep.subr.mxu0 0.0
    %2065 = vmatpush2.xpose.msra.mxu0 0.0
    %2066 = vmatprep.subr.mxu0 0.0
    %2067 = vmatpush2.xpose.msra.mxu0 0.0
    %2068 = vmatprep.subr.mxu0 0.0
    %2069 = vmatpush2.xpose.msra.mxu0 0.0
    %2070 = vmatprep.subr.mxu0 0.0
    %2071 = vmatpush2.xpose.msra.mxu0 0.0
    %2072 = vmatprep.subr.mxu0 0.0
    %2073 = vmatpush2.xpose.msra.mxu0 0.0
    %2074 = vmatprep.subr.mxu0 0.0
    %2075 = vmatpush2.xpose.msra.mxu0 0.0
    %2076 = vmatprep.subr.mxu0 0.0
    %2077 = vmatpush2.xpose.msra.mxu0 0.0
    %2078 = vmatprep.subr.mxu0 0.0
    %2079 = vmatpush2.xpose.msra.mxu0 0.0
    %2080 = vmatprep.subr.mxu0 0.0
    %2081 = vmatpush2.xpose.msra.mxu0 0.0
    %2082 = vmatprep.subr.mxu0 0.0
    %2083 = vmatpush2.xpose.msra.mxu0 0.0
    %2084 = vmatprep.subr.mxu0 0.0
    %2085 = vmatpush2.xpose.msra.mxu0 0.0
    %2086 = vmatprep.subr.mxu0 0.0
    %2087 = vmatpush2.xpose.msra.mxu0 0.0
    %2088 = vmatprep.subr.mxu0 0.0
    %2089 = vmatpush2.xpose.msra.mxu0 0.0
    %2090 = vmatprep.subr.mxu0 0.0
    %2091 = vmatpush2.xpose.msra.mxu0 0.0
    %2092 = vmatprep.subr.mxu0 0.0
    %2093 = vmatpush2.xpose.msra.mxu0 0.0
    %2094 = vmatprep.mubr.f32.mxu0 0.0
    %2095 = vmatmul.mubr.f32.gmra.mxu0 %v2022
    %v2096 = vpop.f32.mrf.mxu0
    %v2097 = vadd.f32 %v216, %v2096
    %v2098 = vpop.f32.mrf.mxu0
    %2099 = vmatprep.mubr.f32.mxu0 0.0
    %2100 = vmatmul.mubr.f32.gmra.mxu0 %v2024
    %v2101 = vpop.f32.mrf.mxu0
    %v2102 = vadd.f32 %v217, %v2101
    %v2103 = vpop.f32.mrf.mxu0
    %2104 = vdwg.mxu0
    %v2105 = vsel %vm397, %v2097, -inf
    %2106 = vmax.xlane.f32.xlu0 %v2105
    %v2107 = vpop.xlane.xlu0 %2106
    %v2108 = vsel %vm397, %v2102, -inf
    %2109 = vmax.xlane.f32.xlu0 %v2108
    %v2110 = vpop.xlane.xlu0 %2109
    %v2111 = vsub.f32 %v2097, %v2107
    %v2112 = vsub.f32 %v2102, %v2110
    %v2113 = vmul.f32 %v2111, 1.442695
    %v2114 = vpow.pop %v2113
    %v2115 = vmul.f32 %v2112, 1.442695
    %v2116 = vpow.pop %v2115
    %v2117 = vsel %vm397, %v2114, 0.0
    %2118 = vadd.xlane.f32.xlu0 %v2117
    %v2119 = vpop.xlane.xlu0 %2118
    %v2120 = vsel %vm397, %v2116, 0.0
    %2121 = vadd.xlane.f32.xlu0 %v2120
    %v2122 = vpop.xlane.xlu0 %2121
    %v2123 = vrcp.pop %v2119
    %v2124 = vrcp.pop %v2122
    %v2125 = vmul.f32 %v2114, %v2123
    %v2126 = vmul.f32 %v2116, %v2124
    %2127 = vrot.lane.b32.xlu0 %v1596, 48
    %v2128 = vpop.permute.xlu0 %2127
    %2129 = vrot.lane.b32.xlu0 %v1601, 48
    %v2130 = vpop.permute.xlu0 %2129
    %v2134 = vsel %vm397, %v2125, 0
    %v2137 = vsel %vm397, %v2126, 0
    %2139 = vmatprep.subr.mxu0 0.0
    %2140 = vmatpush1.msra.mxu0 0.0
    %2141 = vmatprep.subr.mxu0 0.0
    %2142 = vmatpush1.msra.mxu0 0.0
    %2143 = vmatprep.subr.mxu0 0.0
    %2144 = vmatpush1.msra.mxu0 0.0
    %2145 = vmatprep.subr.mxu0 0.0
    %2146 = vmatpush1.msra.mxu0 0.0
    %2147 = vmatprep.subr.mxu0 0.0
    %2148 = vmatpush1.msra.mxu0 0.0
    %2149 = vmatprep.subr.mxu0 0.0
    %2150 = vmatpush1.msra.mxu0 0.0
    %2151 = vmatprep.subr.mxu0 0.0
    %2152 = vmatpush1.msra.mxu0 0.0
    %2153 = vmatprep.subr.mxu0 0.0
    %2154 = vmatpush1.msra.mxu0 0.0
    %2155 = vmatprep.subr.mxu0 0.0
    %2156 = vmatpush1.msra.mxu0 0.0
    %2157 = vmatprep.subr.mxu0 0.0
    %2158 = vmatpush1.msra.mxu0 0.0
    %2159 = vmatprep.subr.mxu0 0.0
    %2160 = vmatpush1.msra.mxu0 0.0
    %2161 = vmatprep.subr.mxu0 0.0
    %2162 = vmatpush1.msra.mxu0 0.0
    %2163 = vmatprep.subr.mxu0 0.0
    %2164 = vmatpush1.msra.mxu0 0.0
    %2165 = vmatprep.subr.mxu0 0.0
    %2166 = vmatpush1.msra.mxu0 0.0
    %2167 = vmatprep.subr.mxu0 0.0
    %2168 = vmatpush1.msra.mxu0 %v2130
    %2169 = vmatprep.subr.mxu0 0.0
    %2170 = vmatpush1.msra.mxu0 %v2128
    %2171 = vmatprep.subr.mxu0 0.0
    %2172 = vmatpush2.msra.mxu0 0.0
    %2173 = vmatprep.subr.mxu0 0.0
    %2174 = vmatpush2.msra.mxu0 0.0
    %2175 = vmatprep.subr.mxu0 0.0
    %2176 = vmatpush2.msra.mxu0 0.0
    %2177 = vmatprep.subr.mxu0 0.0
    %2178 = vmatpush2.msra.mxu0 0.0
    %2179 = vmatprep.subr.mxu0 0.0
    %2180 = vmatpush2.msra.mxu0 0.0
    %2181 = vmatprep.subr.mxu0 0.0
    %2182 = vmatpush2.msra.mxu0 0.0
    %2183 = vmatprep.subr.mxu0 0.0
    %2184 = vmatpush2.msra.mxu0 0.0
    %2185 = vmatprep.subr.mxu0 0.0
    %2186 = vmatpush2.msra.mxu0 0.0
    %2187 = vmatprep.subr.mxu0 0.0
    %2188 = vmatpush2.msra.mxu0 0.0
    %2189 = vmatprep.subr.mxu0 0.0
    %2190 = vmatpush2.msra.mxu0 0.0
    %2191 = vmatprep.subr.mxu0 0.0
    %2192 = vmatpush2.msra.mxu0 0.0
    %2193 = vmatprep.subr.mxu0 0.0
    %2194 = vmatpush2.msra.mxu0 0.0
    %2195 = vmatprep.subr.mxu0 0.0
    %2196 = vmatpush2.msra.mxu0 0.0
    %2197 = vmatprep.subr.mxu0 0.0
    %2198 = vmatpush2.msra.mxu0 0.0
    %2199 = vmatprep.subr.mxu0 0.0
    %2200 = vmatpush2.msra.mxu0 0.0
    %2201 = vmatprep.subr.mxu0 0.0
    %2202 = vmatpush2.msra.mxu0 0.0
    %2203 = vmatprep.mubr.f32.mxu0 0.0
    %2204 = vmatmul.mubr.f32.gmra.mxu0 %v2134
    %v2205 = vpop.f32.mrf.mxu0
    %v2206 = vadd.f32 0.0, %v2205
    %v2207 = vpop.f32.mrf.mxu0
    %2208 = vmatprep.mubr.f32.mxu0 0.0
    %2209 = vmatmul.mubr.f32.gmra.mxu0 %v2137
    %v2210 = vpop.f32.mrf.mxu0
    %v2211 = vadd.f32 0.0, %v2210
    %v2212 = vpop.f32.mrf.mxu0
    %2213 = vdwg.mxu0
    %2216 = vrot.lane.b32.xlu0 %v2206, 16
    %v2217 = vpop.permute.xlu0 %2216
    %2218 = vrot.lane.b32.xlu0 %v2211, 16
    %v2219 = vpop.permute.xlu0 %2218
    %2222 = vst.msk [vmem:[#allocation2] sm:$0xff] %vm928, %v2217
    %2223 = vst.msk [vmem:[#allocation2 + $0x8] sm:$0xff] %vm928, %v2219
    %2224 = vrot.lane.b32.xlu0 %v1596, 104
    %v2225 = vpop.permute.xlu0 %2224
    %2226 = vrot.lane.b32.xlu0 %v1601, 104
    %v2227 = vpop.permute.xlu0 %2226
    %2228 = vrot.lane.b32.xlu0 %v1596, 72
    %v2229 = vpop.permute.xlu0 %2228
    %2230 = vrot.lane.b32.xlu0 %v1601, 72
    %v2231 = vpop.permute.xlu0 %2230
    %v2232 = vsel %vm313, %v2225, 0
    %v2234 = vsel %vm313, %v2227, 0
    %v2236 = vsel %vm313, %v2229, 0
    %v2238 = vsel %vm313, %v2231, 0
    %2240 = vmatprep.subr.mxu0 0.0
    %2241 = vmatpush1.xpose.msra.mxu0 0.0
    %2242 = vmatprep.subr.mxu0 0.0
    %2243 = vmatpush1.xpose.msra.mxu0 0.0
    %2244 = vmatprep.subr.mxu0 0.0
    %2245 = vmatpush1.xpose.msra.mxu0 0.0
    %2246 = vmatprep.subr.mxu0 0.0
    %2247 = vmatpush1.xpose.msra.mxu0 0.0
    %2248 = vmatprep.subr.mxu0 0.0
    %2249 = vmatpush1.xpose.msra.mxu0 0.0
    %2250 = vmatprep.subr.mxu0 0.0
    %2251 = vmatpush1.xpose.msra.mxu0 0.0
    %2252 = vmatprep.subr.mxu0 0.0
    %2253 = vmatpush1.xpose.msra.mxu0 0.0
    %2254 = vmatprep.subr.mxu0 0.0
    %2255 = vmatpush1.xpose.msra.mxu0 0.0
    %2256 = vmatprep.subr.mxu0 0.0
    %2257 = vmatpush1.xpose.msra.mxu0 0.0
    %2258 = vmatprep.subr.mxu0 0.0
    %2259 = vmatpush1.xpose.msra.mxu0 0.0
    %2260 = vmatprep.subr.mxu0 0.0
    %2261 = vmatpush1.xpose.msra.mxu0 0.0
    %2262 = vmatprep.subr.mxu0 0.0
    %2263 = vmatpush1.xpose.msra.mxu0 0.0
    %2264 = vmatprep.subr.mxu0 0.0
    %2265 = vmatpush1.xpose.msra.mxu0 0.0
    %2266 = vmatprep.subr.mxu0 0.0
    %2267 = vmatpush1.xpose.msra.mxu0 0.0
    %2268 = vmatprep.subr.mxu0 0.0
    %2269 = vmatpush1.xpose.msra.mxu0 %v2238
    %2270 = vmatprep.subr.mxu0 0.0
    %2271 = vmatpush1.xpose.msra.mxu0 %v2236
    %2272 = vmatprep.subr.mxu0 0.0
    %2273 = vmatpush2.xpose.msra.mxu0 0.0
    %2274 = vmatprep.subr.mxu0 0.0
    %2275 = vmatpush2.xpose.msra.mxu0 0.0
    %2276 = vmatprep.subr.mxu0 0.0
    %2277 = vmatpush2.xpose.msra.mxu0 0.0
    %2278 = vmatprep.subr.mxu0 0.0
    %2279 = vmatpush2.xpose.msra.mxu0 0.0
    %2280 = vmatprep.subr.mxu0 0.0
    %2281 = vmatpush2.xpose.msra.mxu0 0.0
    %2282 = vmatprep.subr.mxu0 0.0
    %2283 = vmatpush2.xpose.msra.mxu0 0.0
    %2284 = vmatprep.subr.mxu0 0.0
    %2285 = vmatpush2.xpose.msra.mxu0 0.0
    %2286 = vmatprep.subr.mxu0 0.0
    %2287 = vmatpush2.xpose.msra.mxu0 0.0
    %2288 = vmatprep.subr.mxu0 0.0
    %2289 = vmatpush2.xpose.msra.mxu0 0.0
    %2290 = vmatprep.subr.mxu0 0.0
    %2291 = vmatpush2.xpose.msra.mxu0 0.0
    %2292 = vmatprep.subr.mxu0 0.0
    %2293 = vmatpush2.xpose.msra.mxu0 0.0
    %2294 = vmatprep.subr.mxu0 0.0
    %2295 = vmatpush2.xpose.msra.mxu0 0.0
    %2296 = vmatprep.subr.mxu0 0.0
    %2297 = vmatpush2.xpose.msra.mxu0 0.0
    %2298 = vmatprep.subr.mxu0 0.0
    %2299 = vmatpush2.xpose.msra.mxu0 0.0
    %2300 = vmatprep.subr.mxu0 0.0
    %2301 = vmatpush2.xpose.msra.mxu0 0.0
    %2302 = vmatprep.subr.mxu0 0.0
    %2303 = vmatpush2.xpose.msra.mxu0 0.0
    %2304 = vmatprep.mubr.f32.mxu0 0.0
    %2305 = vmatmul.mubr.f32.gmra.mxu0 %v2232
    %v2306 = vpop.f32.mrf.mxu0
    %v2307 = vadd.f32 %v216, %v2306
    %v2308 = vpop.f32.mrf.mxu0
    %2309 = vmatprep.mubr.f32.mxu0 0.0
    %2310 = vmatmul.mubr.f32.gmra.mxu0 %v2234
    %v2311 = vpop.f32.mrf.mxu0
    %v2312 = vadd.f32 %v217, %v2311
    %v2313 = vpop.f32.mrf.mxu0
    %2314 = vdwg.mxu0
    %v2315 = vsel %vm397, %v2307, -inf
    %2316 = vmax.xlane.f32.xlu0 %v2315
    %v2317 = vpop.xlane.xlu0 %2316
    %v2318 = vsel %vm397, %v2312, -inf
    %2319 = vmax.xlane.f32.xlu0 %v2318
    %v2320 = vpop.xlane.xlu0 %2319
    %v2321 = vsub.f32 %v2307, %v2317
    %v2322 = vsub.f32 %v2312, %v2320
    %v2323 = vmul.f32 %v2321, 1.442695
    %v2324 = vpow.pop %v2323
    %v2325 = vmul.f32 %v2322, 1.442695
    %v2326 = vpow.pop %v2325
    %v2327 = vsel %vm397, %v2324, 0.0
    %2328 = vadd.xlane.f32.xlu0 %v2327
    %v2329 = vpop.xlane.xlu0 %2328
    %v2330 = vsel %vm397, %v2326, 0.0
    %2331 = vadd.xlane.f32.xlu0 %v2330
    %v2332 = vpop.xlane.xlu0 %2331
    %v2333 = vrcp.pop %v2329
    %v2334 = vrcp.pop %v2332
    %v2335 = vmul.f32 %v2324, %v2333
    %v2336 = vmul.f32 %v2326, %v2334
    %2337 = vrot.lane.b32.xlu0 %v1596, 40
    %v2338 = vpop.permute.xlu0 %2337
    %2339 = vrot.lane.b32.xlu0 %v1601, 40
    %v2340 = vpop.permute.xlu0 %2339
    %v2344 = vsel %vm397, %v2335, 0
    %v2347 = vsel %vm397, %v2336, 0
    %2349 = vmatprep.subr.mxu0 0.0
    %2350 = vmatpush1.msra.mxu0 0.0
    %2351 = vmatprep.subr.mxu0 0.0
    %2352 = vmatpush1.msra.mxu0 0.0
    %2353 = vmatprep.subr.mxu0 0.0
    %2354 = vmatpush1.msra.mxu0 0.0
    %2355 = vmatprep.subr.mxu0 0.0
    %2356 = vmatpush1.msra.mxu0 0.0
    %2357 = vmatprep.subr.mxu0 0.0
    %2358 = vmatpush1.msra.mxu0 0.0
    %2359 = vmatprep.subr.mxu0 0.0
    %2360 = vmatpush1.msra.mxu0 0.0
    %2361 = vmatprep.subr.mxu0 0.0
    %2362 = vmatpush1.msra.mxu0 0.0
    %2363 = vmatprep.subr.mxu0 0.0
    %2364 = vmatpush1.msra.mxu0 0.0
    %2365 = vmatprep.subr.mxu0 0.0
    %2366 = vmatpush1.msra.mxu0 0.0
    %2367 = vmatprep.subr.mxu0 0.0
    %2368 = vmatpush1.msra.mxu0 0.0
    %2369 = vmatprep.subr.mxu0 0.0
    %2370 = vmatpush1.msra.mxu0 0.0
    %2371 = vmatprep.subr.mxu0 0.0
    %2372 = vmatpush1.msra.mxu0 0.0
    %2373 = vmatprep.subr.mxu0 0.0
    %2374 = vmatpush1.msra.mxu0 0.0
    %2375 = vmatprep.subr.mxu0 0.0
    %2376 = vmatpush1.msra.mxu0 0.0
    %2377 = vmatprep.subr.mxu0 0.0
    %2378 = vmatpush1.msra.mxu0 %v2340
    %2379 = vmatprep.subr.mxu0 0.0
    %2380 = vmatpush1.msra.mxu0 %v2338
    %2381 = vmatprep.subr.mxu0 0.0
    %2382 = vmatpush2.msra.mxu0 0.0
    %2383 = vmatprep.subr.mxu0 0.0
    %2384 = vmatpush2.msra.mxu0 0.0
    %2385 = vmatprep.subr.mxu0 0.0
    %2386 = vmatpush2.msra.mxu0 0.0
    %2387 = vmatprep.subr.mxu0 0.0
    %2388 = vmatpush2.msra.mxu0 0.0
    %2389 = vmatprep.subr.mxu0 0.0
    %2390 = vmatpush2.msra.mxu0 0.0
    %2391 = vmatprep.subr.mxu0 0.0
    %2392 = vmatpush2.msra.mxu0 0.0
    %2393 = vmatprep.subr.mxu0 0.0
    %2394 = vmatpush2.msra.mxu0 0.0
    %2395 = vmatprep.subr.mxu0 0.0
    %2396 = vmatpush2.msra.mxu0 0.0
    %2397 = vmatprep.subr.mxu0 0.0
    %2398 = vmatpush2.msra.mxu0 0.0
    %2399 = vmatprep.subr.mxu0 0.0
    %2400 = vmatpush2.msra.mxu0 0.0
    %2401 = vmatprep.subr.mxu0 0.0
    %2402 = vmatpush2.msra.mxu0 0.0
    %2403 = vmatprep.subr.mxu0 0.0
    %2404 = vmatpush2.msra.mxu0 0.0
    %2405 = vmatprep.subr.mxu0 0.0
    %2406 = vmatpush2.msra.mxu0 0.0
    %2407 = vmatprep.subr.mxu0 0.0
    %2408 = vmatpush2.msra.mxu0 0.0
    %2409 = vmatprep.subr.mxu0 0.0
    %2410 = vmatpush2.msra.mxu0 0.0
    %2411 = vmatprep.subr.mxu0 0.0
    %2412 = vmatpush2.msra.mxu0 0.0
    %2413 = vmatprep.mubr.f32.mxu0 0.0
    %2414 = vmatmul.mubr.f32.gmra.mxu0 %v2344
    %v2415 = vpop.f32.mrf.mxu0
    %v2416 = vadd.f32 0.0, %v2415
    %v2417 = vpop.f32.mrf.mxu0
    %2418 = vmatprep.mubr.f32.mxu0 0.0
    %2419 = vmatmul.mubr.f32.gmra.mxu0 %v2347
    %v2420 = vpop.f32.mrf.mxu0
    %v2421 = vadd.f32 0.0, %v2420
    %v2422 = vpop.f32.mrf.mxu0
    %2423 = vdwg.mxu0
    %2426 = vrot.lane.b32.xlu0 %v2416, 24
    %v2427 = vpop.permute.xlu0 %2426
    %2428 = vrot.lane.b32.xlu0 %v2421, 24
    %v2429 = vpop.permute.xlu0 %2428
    %2432 = vst.msk [vmem:[#allocation2] sm:$0xff] %vm1139, %v2427
    %2433 = vst.msk [vmem:[#allocation2 + $0x8] sm:$0xff] %vm1139, %v2429
    %v2434 = vld [vmem:[#allocation2] sm:$0xff]
    %v2435 = vld [vmem:[#allocation2 + $0x8] sm:$0xff]
    %s2436 = scalar_lea.vmem %s4, 32
    %v2437 = vld [vmem:[%s2436] sm:$0xff]
    %v2438 = vld [vmem:[%s2436 + $0x8] sm:$0xff]
    %v2439 = vld [vmem:[%s2436 + $0x10] sm:$0xff]
    %v2440 = vld [vmem:[%s2436 + $0x18] sm:$0xff]
    %v2441 = vlaneseq
    %v2442 = vshrl.u32 %v2441, 7
    %v2443 = vsub.s32 3, %v2442
    %v2444 = vrot.slane %v31, %v2443
    %v2446 = vsel %vm149, %v2434, 0
    %v2449 = vsel %vm149, %v2435, 0
    %2451 = vmatprep.subr.mxu0 0.0
    %2452 = vmatpush1.msra.mxu0 0.0
    %2453 = vmatprep.subr.mxu0 0.0
    %2454 = vmatpush1.msra.mxu0 0.0
    %2455 = vmatprep.subr.mxu0 0.0
    %2456 = vmatpush1.msra.mxu0 0.0
    %2457 = vmatprep.subr.mxu0 0.0
    %2458 = vmatpush1.msra.mxu0 0.0
    %2459 = vmatprep.subr.mxu0 0.0
    %2460 = vmatpush1.msra.mxu0 0.0
    %2461 = vmatprep.subr.mxu0 0.0
    %2462 = vmatpush1.msra.mxu0 0.0
    %2463 = vmatprep.subr.mxu0 0.0
    %2464 = vmatpush1.msra.mxu0 0.0
    %2465 = vmatprep.subr.mxu0 0.0
    %2466 = vmatpush1.msra.mxu0 0.0
    %2467 = vmatprep.subr.mxu0 0.0
    %2468 = vmatpush1.msra.mxu0 0.0
    %2469 = vmatprep.subr.mxu0 0.0
    %2470 = vmatpush1.msra.mxu0 0.0
    %2471 = vmatprep.subr.mxu0 0.0
    %2472 = vmatpush1.msra.mxu0 0.0
    %2473 = vmatprep.subr.mxu0 0.0
    %2474 = vmatpush1.msra.mxu0 0.0
    %2475 = vmatprep.subr.mxu0 0.0
    %2476 = vmatpush1.msra.mxu0 %v2440
    %2477 = vmatprep.subr.mxu0 0.0
    %2478 = vmatpush1.msra.mxu0 %v2439
    %2479 = vmatprep.subr.mxu0 0.0
    %2480 = vmatpush1.msra.mxu0 %v2438
    %2481 = vmatprep.subr.mxu0 0.0
    %2482 = vmatpush1.msra.mxu0 %v2437
    %2483 = vmatprep.subr.mxu0 0.0
    %2484 = vmatpush2.msra.mxu0 0.0
    %2485 = vmatprep.subr.mxu0 0.0
    %2486 = vmatpush2.msra.mxu0 0.0
    %2487 = vmatprep.subr.mxu0 0.0
    %2488 = vmatpush2.msra.mxu0 0.0
    %2489 = vmatprep.subr.mxu0 0.0
    %2490 = vmatpush2.msra.mxu0 0.0
    %2491 = vmatprep.subr.mxu0 0.0
    %2492 = vmatpush2.msra.mxu0 0.0
    %2493 = vmatprep.subr.mxu0 0.0
    %2494 = vmatpush2.msra.mxu0 0.0
    %2495 = vmatprep.subr.mxu0 0.0
    %2496 = vmatpush2.msra.mxu0 0.0
    %2497 = vmatprep.subr.mxu0 0.0
    %2498 = vmatpush2.msra.mxu0 0.0
    %2499 = vmatprep.subr.mxu0 0.0
    %2500 = vmatpush2.msra.mxu0 0.0
    %2501 = vmatprep.subr.mxu0 0.0
    %2502 = vmatpush2.msra.mxu0 0.0
    %2503 = vmatprep.subr.mxu0 0.0
    %2504 = vmatpush2.msra.mxu0 0.0
    %2505 = vmatprep.subr.mxu0 0.0
    %2506 = vmatpush2.msra.mxu0 0.0
    %2507 = vmatprep.subr.mxu0 0.0
    %2508 = vmatpush2.msra.mxu0 0.0
    %2509 = vmatprep.subr.mxu0 0.0
    %2510 = vmatpush2.msra.mxu0 0.0
    %2511 = vmatprep.subr.mxu0 0.0
    %2512 = vmatpush2.msra.mxu0 0.0
    %2513 = vmatprep.subr.mxu0 0.0
    %2514 = vmatpush2.msra.mxu0 0.0
    %2515 = vmatprep.mubr.f32.mxu0 0.0
    %2516 = vmatmul.mubr.f32.gmra.mxu0 %v2446
    %v2517 = vpop.f32.mrf.mxu0
    %v2518 = vadd.f32 %v2444, %v2517
    %v2519 = vpop.f32.mrf.mxu0
    %2520 = vmatprep.mubr.f32.mxu0 0.0
    %2521 = vmatmul.mubr.f32.gmra.mxu0 %v2449
    %v2522 = vpop.f32.mrf.mxu0
    %v2523 = vadd.f32 %v2444, %v2522
    %v2524 = vpop.f32.mrf.mxu0
    %2525 = vdwg.mxu0
    %v2526 = vadd.f32 %v2518, %v1512
    %v2527 = vadd.f32 %v2523, %v1513
    %v2528 = vsel %vm149, %v2526, 0.0
    %2529 = vadd.xlane.f32.xlu0 %v2528
    %v2530 = vpop.xlane.xlu0 %2529
    %v2531 = vsel %vm149, %v2527, 0.0
    %2532 = vadd.xlane.f32.xlu0 %v2531
    %v2533 = vpop.xlane.xlu0 %2532
    %v2534 = vmul.f32 %v2530, %v156
    %v2535 = vmul.f32 %v2533, %v156
    %v2536 = vsub.f32 %v2526, %v2534
    %v2537 = vsub.f32 %v2527, %v2535
    %v2538 = vmul.f32 %v2536, %v2536
    %v2539 = vmul.f32 %v2537, %v2537
    %v2540 = vsel %vm149, %v2538, 0.0
    %2541 = vadd.xlane.f32.xlu0 %v2540
    %v2542 = vpop.xlane.xlu0 %2541
    %v2543 = vsel %vm149, %v2539, 0.0
    %2544 = vadd.xlane.f32.xlu0 %v2543
    %v2545 = vpop.xlane.xlu0 %2544
    %v2546 = vmul.f32 %v2542, %v156
    %v2547 = vmul.f32 %v2545, %v156
    %v2548 = vadd.f32 %v2546, 1e-12
    %v2549 = vadd.f32 %v2547, 1e-12
    %v2550 = vrsqrt.pop %v2548
    %v2551 = vrsqrt.pop %v2549
    %v2552 = vmul.f32 %v2536, %v2550
    %v2553 = vmul.f32 %v2537, %v2551
    %v2554 = vlaneseq
    %v2555 = vshrl.u32 %v2554, 7
    %v2556 = vsub.s32 4, %v2555
    %v2557 = vrot.slane %v31, %v2556
    %v2558 = vmul.f32 %v2552, %v2557
    %v2559 = vmul.f32 %v2553, %v2557
    %v2560 = vlaneseq
    %v2561 = vshrl.u32 %v2560, 7
    %v2562 = vsub.s32 5, %v2561
    %v2563 = vrot.slane %v31, %v2562
    %v2564 = vadd.f32 %v2558, %v2563
    %v2565 = vadd.f32 %v2559, %v2563
    %s2566 = scalar_lea.vmem %s5, 32
    %v2567 = vld [vmem:[%s2566] sm:$0xff]
    %v2568 = vld [vmem:[%s2566 + $0x8] sm:$0xff]
    %v2569 = vld [vmem:[%s2566 + $0x10] sm:$0xff]
    %v2570 = vld [vmem:[%s2566 + $0x18] sm:$0xff]
    %v2571 = vlaneseq
    %v2572 = vshrl.u32 %v2571, 7
    %v2573 = vsub.s32 6, %v2572
    %v2574 = vrot.slane %v31, %v2573
    %v2576 = vsel %vm149, %v2564, 0
    %v2579 = vsel %vm149, %v2565, 0
    %2581 = vmatprep.subr.mxu0 0.0
    %2582 = vmatpush1.msra.mxu0 0.0
    %2583 = vmatprep.subr.mxu0 0.0
    %2584 = vmatpush1.msra.mxu0 0.0
    %2585 = vmatprep.subr.mxu0 0.0
    %2586 = vmatpush1.msra.mxu0 0.0
    %2587 = vmatprep.subr.mxu0 0.0
    %2588 = vmatpush1.msra.mxu0 0.0
    %2589 = vmatprep.subr.mxu0 0.0
    %2590 = vmatpush1.msra.mxu0 0.0
    %2591 = vmatprep.subr.mxu0 0.0
    %2592 = vmatpush1.msra.mxu0 0.0
    %2593 = vmatprep.subr.mxu0 0.0
    %2594 = vmatpush1.msra.mxu0 0.0
    %2595 = vmatprep.subr.mxu0 0.0
    %2596 = vmatpush1.msra.mxu0 0.0
    %2597 = vmatprep.subr.mxu0 0.0
    %2598 = vmatpush1.msra.mxu0 0.0
    %2599 = vmatprep.subr.mxu0 0.0
    %2600 = vmatpush1.msra.mxu0 0.0
    %2601 = vmatprep.subr.mxu0 0.0
    %2602 = vmatpush1.msra.mxu0 0.0
    %2603 = vmatprep.subr.mxu0 0.0
    %2604 = vmatpush1.msra.mxu0 0.0
    %2605 = vmatprep.subr.mxu0 0.0
    %2606 = vmatpush1.msra.mxu0 %v2570
    %2607 = vmatprep.subr.mxu0 0.0
    %2608 = vmatpush1.msra.mxu0 %v2569
    %2609 = vmatprep.subr.mxu0 0.0
    %2610 = vmatpush1.msra.mxu0 %v2568
    %2611 = vmatprep.subr.mxu0 0.0
    %2612 = vmatpush1.msra.mxu0 %v2567
    %2613 = vmatprep.subr.mxu0 0.0
    %2614 = vmatpush2.msra.mxu0 0.0
    %2615 = vmatprep.subr.mxu0 0.0
    %2616 = vmatpush2.msra.mxu0 0.0
    %2617 = vmatprep.subr.mxu0 0.0
    %2618 = vmatpush2.msra.mxu0 0.0
    %2619 = vmatprep.subr.mxu0 0.0
    %2620 = vmatpush2.msra.mxu0 0.0
    %2621 = vmatprep.subr.mxu0 0.0
    %2622 = vmatpush2.msra.mxu0 0.0
    %2623 = vmatprep.subr.mxu0 0.0
    %2624 = vmatpush2.msra.mxu0 0.0
    %2625 = vmatprep.subr.mxu0 0.0
    %2626 = vmatpush2.msra.mxu0 0.0
    %2627 = vmatprep.subr.mxu0 0.0
    %2628 = vmatpush2.msra.mxu0 0.0
    %2629 = vmatprep.subr.mxu0 0.0
    %2630 = vmatpush2.msra.mxu0 0.0
    %2631 = vmatprep.subr.mxu0 0.0
    %2632 = vmatpush2.msra.mxu0 0.0
    %2633 = vmatprep.subr.mxu0 0.0
    %2634 = vmatpush2.msra.mxu0 0.0
    %2635 = vmatprep.subr.mxu0 0.0
    %2636 = vmatpush2.msra.mxu0 0.0
    %2637 = vmatprep.subr.mxu0 0.0
    %2638 = vmatpush2.msra.mxu0 0.0
    %2639 = vmatprep.subr.mxu0 0.0
    %2640 = vmatpush2.msra.mxu0 0.0
    %2641 = vmatprep.subr.mxu0 0.0
    %2642 = vmatpush2.msra.mxu0 0.0
    %2643 = vmatprep.subr.mxu0 0.0
    %2644 = vmatpush2.msra.mxu0 0.0
    %2645 = vmatprep.mubr.f32.mxu0 0.0
    %2646 = vmatmul.mubr.f32.gmra.mxu0 %v2576
    %v2647 = vpop.f32.mrf.mxu0
    %v2648 = vadd.f32 %v2574, %v2647
    %v2649 = vpop.f32.mrf.mxu0
    %2650 = vmatprep.mubr.f32.mxu0 0.0
    %2651 = vmatmul.mubr.f32.gmra.mxu0 %v2579
    %v2652 = vpop.f32.mrf.mxu0
    %v2653 = vadd.f32 %v2574, %v2652
    %v2654 = vpop.f32.mrf.mxu0
    %2655 = vdwg.mxu0
    %v2656 = vmul.f32 %v2648, 0.5
    %v2657 = vmul.f32 %v2653, 0.5
    %v2658 = vmul.f32 %v2648, 0.044715
    %v2659 = vmul.f32 %v2653, 0.044715
    %v2660 = vmul.f32 %v2658, %v2648
    %v2661 = vmul.f32 %v2659, %v2653
    %v2662 = vmul.f32 %v2660, %v2648
    %v2663 = vmul.f32 %v2661, %v2653
    %v2664 = vadd.f32 %v2648, %v2662
    %v2665 = vadd.f32 %v2653, %v2663
    %v2666 = vmul.f32 %v2664, 0.7978846
    %v2667 = vmul.f32 %v2665, 0.7978846
    %v2668 = vtanh.pop %v2666
    %v2669 = vtanh.pop %v2667
    %v2670 = vadd.f32 %v2668, 1.0
    %v2671 = vadd.f32 %v2669, 1.0
    %v2672 = vmul.f32 %v2656, %v2670
    %v2673 = vmul.f32 %v2657, %v2671
    %s2674 = scalar_lea.vmem %s6, 64
    %v2675 = vld [vmem:[%s2674] sm:$0xff]
    %v2676 = vld [vmem:[%s2674 + $0x8] sm:$0xff]
    %v2677 = vld [vmem:[%s2674 + $0x10] sm:$0xff]
    %v2678 = vld [vmem:[%s2674 + $0x18] sm:$0xff]
    %v2679 = vld [vmem:[%s2674 + $0x20] sm:$0xff]
    %v2680 = vld [vmem:[%s2674 + $0x28] sm:$0xff]
    %v2681 = vld [vmem:[%s2674 + $0x30] sm:$0xff]
    %v2682 = vld [vmem:[%s2674 + $0x38] sm:$0xff]
    %v2683 = vlaneseq
    %v2684 = vshrl.u32 %v2683, 7
    %v2685 = vsub.s32 7, %v2684
    %v2686 = vrot.slane %v31, %v2685
    %v2688 = vsel %vm1392, %v2672, 0
    %v2691 = vsel %vm1392, %v2673, 0
    %2693 = vmatprep.subr.mxu0 0.0
    %2694 = vmatpush1.msra.mxu0 0.0
    %2695 = vmatprep.subr.mxu0 0.0
    %2696 = vmatpush1.msra.mxu0 0.0
    %2697 = vmatprep.subr.mxu0 0.0
    %2698 = vmatpush1.msra.mxu0 0.0
    %2699 = vmatprep.subr.mxu0 0.0
    %2700 = vmatpush1.msra.mxu0 0.0
    %2701 = vmatprep.subr.mxu0 0.0
    %2702 = vmatpush1.msra.mxu0 0.0
    %2703 = vmatprep.subr.mxu0 0.0
    %2704 = vmatpush1.msra.mxu0 0.0
    %2705 = vmatprep.subr.mxu0 0.0
    %2706 = vmatpush1.msra.mxu0 0.0
    %2707 = vmatprep.subr.mxu0 0.0
    %2708 = vmatpush1.msra.mxu0 0.0
    %2709 = vmatprep.subr.mxu0 0.0
    %2710 = vmatpush1.msra.mxu0 %v2682
    %2711 = vmatprep.subr.mxu0 0.0
    %2712 = vmatpush1.msra.mxu0 %v2681
    %2713 = vmatprep.subr.mxu0 0.0
    %2714 = vmatpush1.msra.mxu0 %v2680
    %2715 = vmatprep.subr.mxu0 0.0
    %2716 = vmatpush1.msra.mxu0 %v2679
    %2717 = vmatprep.subr.mxu0 0.0
    %2718 = vmatpush1.msra.mxu0 %v2678
    %2719 = vmatprep.subr.mxu0 0.0
    %2720 = vmatpush1.msra.mxu0 %v2677
    %2721 = vmatprep.subr.mxu0 0.0
    %2722 = vmatpush1.msra.mxu0 %v2676
    %2723 = vmatprep.subr.mxu0 0.0
    %2724 = vmatpush1.msra.mxu0 %v2675
    %2725 = vmatprep.subr.mxu0 0.0
    %2726 = vmatpush2.msra.mxu0 0.0
    %2727 = vmatprep.subr.mxu0 0.0
    %2728 = vmatpush2.msra.mxu0 0.0
    %2729 = vmatprep.subr.mxu0 0.0
    %2730 = vmatpush2.msra.mxu0 0.0
    %2731 = vmatprep.subr.mxu0 0.0
    %2732 = vmatpush2.msra.mxu0 0.0
    %2733 = vmatprep.subr.mxu0 0.0
    %2734 = vmatpush2.msra.mxu0 0.0
    %2735 = vmatprep.subr.mxu0 0.0
    %2736 = vmatpush2.msra.mxu0 0.0
    %2737 = vmatprep.subr.mxu0 0.0
    %2738 = vmatpush2.msra.mxu0 0.0
    %2739 = vmatprep.subr.mxu0 0.0
    %2740 = vmatpush2.msra.mxu0 0.0
    %2741 = vmatprep.subr.mxu0 0.0
    %2742 = vmatpush2.msra.mxu0 0.0
    %2743 = vmatprep.subr.mxu0 0.0
    %2744 = vmatpush2.msra.mxu0 0.0
    %2745 = vmatprep.subr.mxu0 0.0
    %2746 = vmatpush2.msra.mxu0 0.0
    %2747 = vmatprep.subr.mxu0 0.0
    %2748 = vmatpush2.msra.mxu0 0.0
    %2749 = vmatprep.subr.mxu0 0.0
    %2750 = vmatpush2.msra.mxu0 0.0
    %2751 = vmatprep.subr.mxu0 0.0
    %2752 = vmatpush2.msra.mxu0 0.0
    %2753 = vmatprep.subr.mxu0 0.0
    %2754 = vmatpush2.msra.mxu0 0.0
    %2755 = vmatprep.subr.mxu0 0.0
    %2756 = vmatpush2.msra.mxu0 0.0
    %2757 = vmatprep.mubr.f32.mxu0 0.0
    %2758 = vmatmul.mubr.f32.gmra.mxu0 %v2688
    %v2759 = vpop.f32.mrf.mxu0
    %v2760 = vadd.f32 %v2686, %v2759
    %v2761 = vpop.f32.mrf.mxu0
    %2762 = vmatprep.mubr.f32.mxu0 0.0
    %2763 = vmatmul.mubr.f32.gmra.mxu0 %v2691
    %v2764 = vpop.f32.mrf.mxu0
    %v2765 = vadd.f32 %v2686, %v2764
    %v2766 = vpop.f32.mrf.mxu0
    %2767 = vdwg.mxu0
    %v2768 = vadd.f32 %v2760, %v2564
    %v2769 = vadd.f32 %v2765, %v2565
    %v2770 = vsel %vm149, %v2768, 0.0
    %2771 = vadd.xlane.f32.xlu0 %v2770
    %v2772 = vpop.xlane.xlu0 %2771
    %v2773 = vsel %vm149, %v2769, 0.0
    %2774 = vadd.xlane.f32.xlu0 %v2773
    %v2775 = vpop.xlane.xlu0 %2774
    %v2776 = vmul.f32 %v2772, %v156
    %v2777 = vmul.f32 %v2775, %v156
    %v2778 = vsub.f32 %v2768, %v2776
    %v2779 = vsub.f32 %v2769, %v2777
    %v2780 = vmul.f32 %v2778, %v2778
    %v2781 = vmul.f32 %v2779, %v2779
    %v2782 = vsel %vm149, %v2780, 0.0
    %2783 = vadd.xlane.f32.xlu0 %v2782
    %v2784 = vpop.xlane.xlu0 %2783
    %v2785 = vsel %vm149, %v2781, 0.0
    %2786 = vadd.xlane.f32.xlu0 %v2785
    %v2787 = vpop.xlane.xlu0 %2786
    %v2788 = vmul.f32 %v2784, %v156
    %v2789 = vmul.f32 %v2787, %v156
    %v2790 = vadd.f32 %v2788, 1e-12
    %v2791 = vadd.f32 %v2789, 1e-12
    %v2792 = vrsqrt.pop %v2790
    %v2793 = vrsqrt.pop %v2791
    %v2794 = vmul.f32 %v2778, %v2792
    %v2795 = vmul.f32 %v2779, %v2793
    %v2796 = vlaneseq
    %v2797 = vshrl.u32 %v2796, 7
    %v2798 = vsub.s32 0, %v2797
    %v2799 = vrot.slane %v32, %v2798
    %v2800 = vmul.f32 %v2794, %v2799
    %v2801 = vmul.f32 %v2795, %v2799
    %v2802 = vlaneseq
    %v2803 = vshrl.u32 %v2802, 7
    %v2804 = vsub.s32 1, %v2803
    %v2805 = vrot.slane %v32, %v2804
    %v2806 = vadd.f32 %v2800, %v2805
    %v2807 = vadd.f32 %v2801, %v2805
    %v2808 = vsel %vm149, %v2806, 0.0
    %v2809 = vrot.slane %v2808, 4
    %v2810 = vadd.f32 %v2808, %v2809
    %v2811 = vrot.slane %v2810, 2
    %v2812 = vadd.f32 %v2810, %v2811
    %v2813 = vrot.slane %v2812, 1
    %v2814 = vadd.f32 %v2812, %v2813
    %v2815 = vsel %vm149, %v2807, 0.0
    %v2816 = vrot.slane %v2815, 4
    %v2817 = vadd.f32 %v2815, %v2816
    %v2818 = vrot.slane %v2817, 2
    %v2819 = vadd.f32 %v2817, %v2818
    %v2820 = vrot.slane %v2819, 1
    %v2821 = vadd.f32 %v2819, %v2820
    %vm2822 = vcmask 1040384
    %v2823 = vsel %vm2822, %v2814, %v2821
    %vm2824 = vcmask 254976
    %2825 = vst.msk [vmem:[#allocation3] sm:$0x3] %vm2824, %v2823
    // Predicated region
    $region34: #{bert_model_forward.1} parent=1 // pred_check
      _
    $region35: #{bert_model_forward.1} parent=1 // pred_check_branch
      %2827 = sbr.rel (0) target = $region37
    $region36: #{bert_model_forward.1} parent=1 // pred_region
      %s2829 = ssub.s32 32, 32
      %2830 = vsyncadd [#allocation4], %s2829
      %s2832 = sshll.u32 [#allocation3], 4
      %s2833 = int_to_ptr.vmem [resolvable:$true] %s2832
      %2835 = dma.vmem_to_hbm [thread:$0]  %s2833, 32, %s8, [#allocation4]
    $region37: #{bert_model_forward.1} parent=1 // pred_fallthru
      _
    // Predicated region
    $region38: #{bert_model_forward.1} parent=1 // pred_check
      _
    $region39: #{bert_model_forward.1} parent=1 // pred_check_branch
      %2837 = sbr.rel (0) target = $region41
    $region40: #{bert_model_forward.1} parent=1 // pred_region
      %2838 = dma.done [#allocation4], 32
    $region41: #{bert_model_forward.1} parent=1 // pred_fallthru
      _
    %2839 = vsyncpa [#allocation4], 1

</llo_original>
